<compile_context>
chip_gen: v5e
topology: v5e:2x2
jax: 0.10.0
libtpu: 0.0.40
codegen_flags: <defaults>
</compile_context>

<pallas_src>
import jax
import jax.numpy as jnp
from jax import lax
from jax.experimental import pallas as pl
from jax.experimental.pallas import tpu as pltpu

# ---- model hyper-parameters (small, consistent with the module structure) ----
N_MELS = 40          # input feature dim (Linear(40, d_model))
N_MELS_PAD = 64      # zero-padded feature dim for lane-dense loads / K=64 matmul
D_MODEL = 64         # d_model (scaled down from 256 for a small test)
N_HEADS = 2          # nhead=2 (as in the module)
HEAD_DIM = D_MODEL // N_HEADS
D_FF = 2 * D_MODEL   # dim_feedforward = d_model * 2
N_LAYERS = 3         # num_layers = 3
N_SPKS = 48          # n_spks (scaled down from 1251)
N_SPKS_PAD = 128     # logits padded to a full 128-lane vreg for dense stores
VEC_W = 3 * D_MODEL  # lane width of the packed per-layer vector array (192)
LN_EPS = 1e-5
BN_EPS = 1e-5


def _layer_norm(x, gamma, beta):
    mu = jnp.mean(x, axis=-1, keepdims=True)
    var = jnp.mean((x - mu) ** 2, axis=-1, keepdims=True)
    return (x - mu) * lax.rsqrt(var + LN_EPS) * gamma + beta


# --------------------------- fused forward kernel ----------------------------
def _fused_kernel(x_ref, pw_ref, wqkv_ref, wo_ref, w1_ref, w2_ref, wh_ref,
                  vec_ref, hb_ref, o_ref):
    tb, seq_len, _ = x_ref.shape
    rows = tb * seq_len

    hb = hb_ref[...]                       # (2, 128) f32
    pb = hb[0:1, :D_MODEL]                 # prenet bias
    bhead = hb[1:2, :]                     # (padded) head bias

    # ---- prenet: Linear(40->D) over all TB*L rows (input already bf16/padded) ----
    x2d = x_ref[...].reshape(rows, N_MELS_PAD)
    h = jnp.dot(x2d, pw_ref[...], preferred_element_type=jnp.float32) + pb

    # ---- 3 post-norm TransformerEncoderLayers (dropout == identity, eval) ----
    for li in range(N_LAYERS):
        vec = vec_ref[li]                  # (8, 192) f32: packed per-layer vectors
        bqkv = vec[0:1, :]
        bo = vec[1:2, :D_MODEL]
        g1, bt1 = vec[2:3, :D_MODEL], vec[3:4, :D_MODEL]
        bf1 = vec[4:5, :D_FF]
        bf2 = vec[5:6, :D_MODEL]
        g2, bt2 = vec[6:7, :D_MODEL], vec[7:8, :D_MODEL]

        # fused QKV projection; q-scale pre-folded into W_q/b_q on the host
        qkv = jnp.dot(h.astype(jnp.bfloat16), wqkv_ref[li],
                      preferred_element_type=jnp.float32) + bqkv     # (rows, 3D)
        # head-major layout: one reshape, heads picked by static index
        qkv = qkv.reshape(tb, seq_len, 3 * N_HEADS, HEAD_DIM)

        ctx_heads = []
        for hh in range(N_HEADS):
            qh = qkv[:, :, hh].astype(jnp.bfloat16)                  # (tb, L, hd)
            kh = qkv[:, :, N_HEADS + hh].astype(jnp.bfloat16)
            vh = qkv[:, :, 2 * N_HEADS + hh].astype(jnp.bfloat16)

            s = jnp.einsum('bld,bmd->blm', qh, kh,
                           preferred_element_type=jnp.float32)
            s = s - jnp.max(s, axis=-1, keepdims=True)
            p = jnp.exp(s)
            p = p * pl.reciprocal(jnp.sum(p, axis=-1, keepdims=True), approx=True)
            ctx_heads.append(
                jnp.einsum('blm,bmd->bld', p.astype(jnp.bfloat16), vh,
                           preferred_element_type=jnp.float32))

        # single K=64 output projection on the concatenated head contexts
        ctx = jnp.concatenate(ctx_heads, axis=-1).reshape(rows, D_MODEL)
        attn = jnp.dot(ctx.astype(jnp.bfloat16), wo_ref[li],
                       preferred_element_type=jnp.float32) + bo

        h1 = _layer_norm(h + attn, g1, bt1)                  # residual + norm1
        ff = jnp.maximum(
            jnp.dot(h1.astype(jnp.bfloat16), w1_ref[li],
                    preferred_element_type=jnp.float32) + bf1, 0.0)
        ff = jnp.dot(ff.astype(jnp.bfloat16), w2_ref[li],
                     preferred_element_type=jnp.float32) + bf2
        h = _layer_norm(h1 + ff, g2, bt2)                    # residual + norm2

    # ---- mean pool over seq; BN(eval) folded into the head Linear on the host ----
    stats = jnp.mean(h.reshape(tb, seq_len, D_MODEL), axis=1)        # (tb, D)
    logits = jnp.dot(stats.astype(jnp.bfloat16), wh_ref[...],
                     preferred_element_type=jnp.float32) + bhead
    o_ref[...] = logits                                              # (tb, 128)


# ------------------------------ host wrapper ----------------------------------
def classifier_forward(mels, params, *, batch_block=None):
    pw, wqkv, wo, w1, w2, wh, vecs, hb = params
    B, L, F = mels.shape
    assert F == N_MELS

    # pad 40 -> 64 features and pre-cast to bf16 on the host (zero cols match
    # zero weight rows, so the result is unchanged).
    x = jnp.zeros((B, L, N_MELS_PAD), jnp.bfloat16).at[:, :, :N_MELS].set(
        mels.astype(jnp.bfloat16))

    if batch_block is None:
        # Megacore split only pays on 2-TC chips (v7x) and only when each half
        # keeps >=128 rows; on single-TC v5e/v6e (and tiny batches) a split is
        # pure per-step overhead, so default to a single grid step.
        if B % 2 == 0 and (B * L) // 2 >= 128 and (B // 2) % 8 == 0:
            batch_block = B // 2
        else:
            batch_block = B
    assert B % batch_block == 0
    nb = B // batch_block

    def full(a):
        return pl.BlockSpec(a.shape, lambda b: (0,) * a.ndim)

    in_specs = ([pl.BlockSpec((batch_block, L, N_MELS_PAD), lambda b: (b, 0, 0))]
                + [full(a) for a in (pw, wqkv, wo, w1, w2, wh, vecs, hb)])
    out_spec = pl.BlockSpec((batch_block, N_SPKS_PAD), lambda b: (b, 0))

    out = pl.pallas_call(
        _fused_kernel,
        out_shape=jax.ShapeDtypeStruct((B, N_SPKS_PAD), jnp.float32),
        grid_spec=pltpu.PrefetchScalarGridSpec(
            num_scalar_prefetch=0,
            grid=(nb,),
            in_specs=in_specs,
            out_specs=out_spec,
        ),
        compiler_params=pltpu.CompilerParams(
            dimension_semantics=("parallel",)),
    )(x, pw, wqkv, wo, w1, w2, wh, vecs, hb)

    return out[:, :N_SPKS]


# -------------------- pure-JAX reference (tolerance check) --------------------
def _reference_forward(mels, params):
    pw, wqkv, wo, w1, w2, wh, vecs, hb = [jnp.asarray(p, jnp.float32) for p in params]
    B, L, _ = mels.shape
    x = jnp.zeros((B, L, N_MELS_PAD), jnp.float32).at[:, :, :N_MELS].set(mels)
    h = x.reshape(B * L, N_MELS_PAD) @ pw + hb[0:1, :D_MODEL]
    for li in range(N_LAYERS):
        v = vecs[li]
        bqkv, bo = v[0:1, :], v[1:2, :D_MODEL]
        g1, bt1 = v[2:3, :D_MODEL], v[3:4, :D_MODEL]
        bf1, bf2 = v[4:5, :D_FF], v[5:6, :D_MODEL]
        g2, bt2 = v[6:7, :D_MODEL], v[7:8, :D_MODEL]
        qkv = (h @ wqkv[li] + bqkv).reshape(B, L, 3, N_HEADS, HEAD_DIM)
        q, k, vv = qkv[:, :, 0], qkv[:, :, 1], qkv[:, :, 2]
        s = jnp.einsum('blhd,bmhd->bhlm', q, k)
        p = jax.nn.softmax(s, axis=-1)
        ctx = jnp.einsum('bhlm,bmhd->blhd', p, vv).reshape(B * L, D_MODEL)
        h1 = _layer_norm(h + ctx @ wo[li] + bo, g1, bt1)
        ff = jnp.maximum(h1 @ w1[li] + bf1, 0.0) @ w2[li] + bf2
        h = _layer_norm(h1 + ff, g2, bt2)
    stats = jnp.mean(h.reshape(B, L, D_MODEL), axis=1)
    return (stats @ wh + hb[1:2, :])[:, :N_SPKS]


# ------------------------------ parameter init --------------------------------
def init_params(key):
    def nrm(k, shape, s=0.05):
        return jax.random.normal(k, shape, dtype=jnp.float32) * s

    keys = iter(jax.random.split(key, 64))
    scale = HEAD_DIM ** -0.5

    # prenet: Linear(40, D); stored (in, out), zero-padded to 64 input rows
    pw_real = nrm(next(keys), (N_MELS, D_MODEL))
    pb = nrm(next(keys), (1, D_MODEL), 0.01)
    pw = jnp.zeros((N_MELS_PAD, D_MODEL), jnp.float32).at[:N_MELS].set(pw_real)

    def pad_row(v):
        return jnp.zeros((1, VEC_W), jnp.float32).at[:, :v.shape[1]].set(v)

    wqkv_l, wo_l, w1_l, w2_l, vec_l = [], [], [], [], []
    for _ in range(N_LAYERS):
        wq = nrm(next(keys), (D_MODEL, D_MODEL))
        wk = nrm(next(keys), (D_MODEL, D_MODEL))
        wv = nrm(next(keys), (D_MODEL, D_MODEL))
        bq = nrm(next(keys), (1, D_MODEL), 0.01)
        bk = nrm(next(keys), (1, D_MODEL), 0.01)
        bv = nrm(next(keys), (1, D_MODEL), 0.01)
        # fused QKV, head-major lanes (Q h0|h1, K h0|h1, V h0|h1),
        # 1/sqrt(head_dim) folded into the Q projection
        wqkv_l.append(jnp.concatenate([wq * scale, wk, wv], axis=1))
        bqkv = jnp.concatenate([bq * scale, bk, bv], axis=1)

        wo_l.append(nrm(next(keys), (D_MODEL, D_MODEL)))     # out_proj (in, out)
        bo = nrm(next(keys), (1, D_MODEL), 0.01)
        w1_l.append(nrm(next(keys), (D_MODEL, D_FF)))        # ffn linear1
        bf1 = nrm(next(keys), (1, D_FF), 0.01)
        w2_l.append(nrm(next(keys), (D_FF, D_MODEL)))        # ffn linear2
        bf2 = nrm(next(keys), (1, D_MODEL), 0.01)
        g1 = jnp.ones((1, D_MODEL), jnp.float32)
        bt1 = jnp.zeros((1, D_MODEL), jnp.float32)
        g2 = jnp.ones((1, D_MODEL), jnp.float32)
        bt2 = jnp.zeros((1, D_MODEL), jnp.float32)

        vec_l.append(jnp.concatenate(
            [pad_row(v) for v in (bqkv, bo, g1, bt1, bf1, bf2, g2, bt2)], axis=0))

    # pred_layer: BatchNorm1d(D) eval-mode folded into Linear(D, N_SPKS)
    running_mean = nrm(next(keys), (1, D_MODEL), 0.02)
    running_var = jnp.abs(nrm(next(keys), (1, D_MODEL), 0.1)) + 1.0
    bn_gamma = jnp.ones((1, D_MODEL), jnp.float32) + nrm(next(keys), (1, D_MODEL), 0.02)
    bn_beta = nrm(next(keys), (1, D_MODEL), 0.01)
    w_fin = nrm(next(keys), (D_MODEL, N_SPKS))
    b_fin = nrm(next(keys), (1, N_SPKS), 0.01)

    s = bn_gamma * lax.rsqrt(running_var + BN_EPS)           # BN eval = affine
    t = bn_beta - running_mean * s
    w_fold = w_fin * s.reshape(D_MODEL, 1)
    b_fold = b_fin + jnp.dot(t, w_fin)

    wh = jnp.zeros((D_MODEL, N_SPKS_PAD), jnp.float32).at[:, :N_SPKS].set(w_fold)
    bh = jnp.zeros((1, N_SPKS_PAD), jnp.float32).at[:, :N_SPKS].set(b_fold)

    # prenet bias + head bias packed into one (2, 128) array
    hb = jnp.concatenate(
        [jnp.zeros((1, N_SPKS_PAD), jnp.float32).at[:, :D_MODEL].set(pb), bh], axis=0)

    bf16 = lambda a: a.astype(jnp.bfloat16)   # MXU operands; biases/LN stay f32
    return (bf16(pw), bf16(jnp.stack(wqkv_l)), bf16(jnp.stack(wo_l)),
            bf16(jnp.stack(w1_l)), bf16(jnp.stack(w2_l)), bf16(wh),
            jnp.stack(vec_l), hb)


if __name__ == "__main__":
    key = jax.random.PRNGKey(0)
    k_params, k_x = jax.random.split(key)
    params = init_params(k_params)

    B, L = 2, 8
    mels = jax.random.normal(k_x, (B, L, N_MELS), dtype=jnp.float32)

    out = jax.block_until_ready(classifier_forward(mels, params))

    assert out.shape == (B, N_SPKS), out.shape
    assert bool(jnp.all(jnp.isfinite(out)))

    # loose tolerance: bf16 MXU operands + approx-reciprocal softmax vs f32 ref
    ref = _reference_forward(mels, params)
    assert float(jnp.max(jnp.abs(out - ref))) < 0.1

    print("KERNEL_OK")
</pallas_src>

<mosaic_0001>
module attributes {stable_mosaic.version = 11 : i64} {
  func.func @_fused_kernel(%arg0: i32, %arg1: memref<2x8x64xbf16, #tpu.memory_space<vmem>>, %arg2: memref<64x64xbf16, #tpu.memory_space<vmem>>, %arg3: memref<3x64x192xbf16, #tpu.memory_space<vmem>>, %arg4: memref<3x64x64xbf16, #tpu.memory_space<vmem>>, %arg5: memref<3x64x128xbf16, #tpu.memory_space<vmem>>, %arg6: memref<3x128x64xbf16, #tpu.memory_space<vmem>>, %arg7: memref<64x128xbf16, #tpu.memory_space<vmem>>, %arg8: memref<3x8x192xf32, #tpu.memory_space<vmem>>, %arg9: memref<2x128xf32, #tpu.memory_space<vmem>>, %arg10: memref<2x128xf32, #tpu.memory_space<vmem>>) attributes {dimension_semantics = [#tpu.dimension_semantics<parallel>], iteration_bounds = array<i64: 1>, scalar_prefetch = 0 : i64, scratch_operands = 0 : i64, tpu.core_type = #tpu.core_type<tc>, window_params = [{transform_indices = @transform_0, window_bounds = array<i64: 2, 8, 64>}, {pipeline_mode = #tpu.pipeline_mode<synchronous>, transform_indices = @transform_1, window_bounds = array<i64: 64, 64>}, {pipeline_mode = #tpu.pipeline_mode<synchronous>, transform_indices = @transform_2, window_bounds = array<i64: 3, 64, 192>}, {pipeline_mode = #tpu.pipeline_mode<synchronous>, transform_indices = @transform_3, window_bounds = array<i64: 3, 64, 64>}, {pipeline_mode = #tpu.pipeline_mode<synchronous>, transform_indices = @transform_4, window_bounds = array<i64: 3, 64, 128>}, {pipeline_mode = #tpu.pipeline_mode<synchronous>, transform_indices = @transform_5, window_bounds = array<i64: 3, 128, 64>}, {pipeline_mode = #tpu.pipeline_mode<synchronous>, transform_indices = @transform_6, window_bounds = array<i64: 64, 128>}, {pipeline_mode = #tpu.pipeline_mode<synchronous>, transform_indices = @transform_7, window_bounds = array<i64: 3, 8, 192>}, {pipeline_mode = #tpu.pipeline_mode<synchronous>, transform_indices = @transform_8, window_bounds = array<i64: 2, 128>}, {transform_indices = @transform_9, window_bounds = array<i64: 2, 128>}]} {
    %c0 = arith.constant 0 : index
    %c0_0 = arith.constant 0 : index
    %0 = vector.load %arg9[%c0, %c0_0] : memref<2x128xf32, #tpu.memory_space<vmem>>, vector<2x128xf32>
    %1 = vector.extract_strided_slice %0 {offsets = [0, 0], sizes = [1, 64], strides = [1, 1]} : vector<2x128xf32> to vector<1x64xf32>
    %2 = vector.extract_strided_slice %0 {offsets = [1, 0], sizes = [1, 128], strides = [1, 1]} : vector<2x128xf32> to vector<1x128xf32>
    %c0_1 = arith.constant 0 : index
    %c0_2 = arith.constant 0 : index
    %c0_3 = arith.constant 0 : index
    %3 = vector.load %arg1[%c0_1, %c0_2, %c0_3] : memref<2x8x64xbf16, #tpu.memory_space<vmem>>, vector<2x8x64xbf16>
    %4 = vector.shape_cast %3 : vector<2x8x64xbf16> to vector<16x64xbf16>
    %c0_4 = arith.constant 0 : index
    %c0_5 = arith.constant 0 : index
    %5 = vector.load %arg2[%c0_4, %c0_5] : memref<64x64xbf16, #tpu.memory_space<vmem>>, vector<64x64xbf16>
    %cst = arith.constant dense<0.000000e+00> : vector<16x64xf32>
    %6 = tpu.matmul %4, %5, %cst {dimension_numbers = #tpu.dot_dimension_numbers<[1], [0], [0], [1], [0, 0, 1, 1], [], []>} : vector<16x64xbf16>, vector<64x64xbf16>, vector<16x64xf32> -> vector<16x64xf32>
    %7 = vector.broadcast %1 : vector<1x64xf32> to vector<16x64xf32>
    %8 = arith.addf %6, %7 : vector<16x64xf32>
    %c0_6 = arith.constant 0 : index
    %c0_7 = arith.constant 0 : index
    %c0_8 = arith.constant 0 : index
    %9 = vector.load %arg8[%c0_6, %c0_7, %c0_8] : memref<3x8x192xf32, #tpu.memory_space<vmem>>, vector<1x8x192xf32>
    %10 = vector.shape_cast %9 : vector<1x8x192xf32> to vector<8x192xf32>
    %11 = vector.extract_strided_slice %10 {offsets = [0, 0], sizes = [1, 192], strides = [1, 1]} : vector<8x192xf32> to vector<1x192xf32>
    %12 = vector.extract_strided_slice %10 {offsets = [1, 0], sizes = [1, 64], strides = [1, 1]} : vector<8x192xf32> to vector<1x64xf32>
    %13 = vector.extract_strided_slice %10 {offsets = [2, 0], sizes = [1, 64], strides = [1, 1]} : vector<8x192xf32> to vector<1x64xf32>
    %14 = vector.extract_strided_slice %10 {offsets = [3, 0], sizes = [1, 64], strides = [1, 1]} : vector<8x192xf32> to vector<1x64xf32>
    %15 = vector.extract_strided_slice %10 {offsets = [4, 0], sizes = [1, 128], strides = [1, 1]} : vector<8x192xf32> to vector<1x128xf32>
    %16 = vector.extract_strided_slice %10 {offsets = [5, 0], sizes = [1, 64], strides = [1, 1]} : vector<8x192xf32> to vector<1x64xf32>
    %17 = vector.extract_strided_slice %10 {offsets = [6, 0], sizes = [1, 64], strides = [1, 1]} : vector<8x192xf32> to vector<1x64xf32>
    %18 = vector.extract_strided_slice %10 {offsets = [7, 0], sizes = [1, 64], strides = [1, 1]} : vector<8x192xf32> to vector<1x64xf32>
    %19 = arith.truncf %8 : vector<16x64xf32> to vector<16x64xbf16>
    %c0_9 = arith.constant 0 : index
    %c0_10 = arith.constant 0 : index
    %c0_11 = arith.constant 0 : index
    %20 = vector.load %arg3[%c0_9, %c0_10, %c0_11] : memref<3x64x192xbf16, #tpu.memory_space<vmem>>, vector<1x64x192xbf16>
    %21 = vector.shape_cast %20 : vector<1x64x192xbf16> to vector<64x192xbf16>
    %cst_12 = arith.constant dense<0.000000e+00> : vector<16x192xf32>
    %22 = tpu.matmul %19, %21, %cst_12 {dimension_numbers = #tpu.dot_dimension_numbers<[1], [0], [0], [1], [0, 0, 1, 1], [], []>} : vector<16x64xbf16>, vector<64x192xbf16>, vector<16x192xf32> -> vector<16x192xf32>
    %23 = vector.broadcast %11 : vector<1x192xf32> to vector<16x192xf32>
    %24 = arith.addf %22, %23 : vector<16x192xf32>
    %25 = vector.shape_cast %24 : vector<16x192xf32> to vector<2x8x6x32xf32>
    %26 = vector.extract_strided_slice %25 {offsets = [0, 0, 0, 0], sizes = [2, 8, 1, 32], strides = [1, 1, 1, 1]} : vector<2x8x6x32xf32> to vector<2x8x1x32xf32>
    %27 = vector.shape_cast %26 : vector<2x8x1x32xf32> to vector<2x8x32xf32>
    %28 = arith.truncf %27 : vector<2x8x32xf32> to vector<2x8x32xbf16>
    %29 = vector.extract_strided_slice %25 {offsets = [0, 0, 2, 0], sizes = [2, 8, 1, 32], strides = [1, 1, 1, 1]} : vector<2x8x6x32xf32> to vector<2x8x1x32xf32>
    %30 = vector.shape_cast %29 : vector<2x8x1x32xf32> to vector<2x8x32xf32>
    %31 = arith.truncf %30 : vector<2x8x32xf32> to vector<2x8x32xbf16>
    %32 = vector.extract_strided_slice %25 {offsets = [0, 0, 4, 0], sizes = [2, 8, 1, 32], strides = [1, 1, 1, 1]} : vector<2x8x6x32xf32> to vector<2x8x1x32xf32>
    %33 = vector.shape_cast %32 : vector<2x8x1x32xf32> to vector<2x8x32xf32>
    %34 = arith.truncf %33 : vector<2x8x32xf32> to vector<2x8x32xbf16>
    "tpu.trace_start"() <{level = 10 : i32, message = "bld,bmd->blm"}> : () -> ()
    %cst_13 = arith.constant dense<0.000000e+00> : vector<2x8x8xf32>
    %35 = tpu.matmul %28, %31, %cst_13 {dimension_numbers = #tpu.dot_dimension_numbers<[2], [2], [1], [1], [0, 0, 0, 1, 1, 1], [0], [0]>} : vector<2x8x32xbf16>, vector<2x8x32xbf16>, vector<2x8x8xf32> -> vector<2x8x8xf32>
    "tpu.trace_stop"() : () -> ()
    %cst_14 = arith.constant dense<0xFF800000> : vector<2x8xf32>
    %36 = vector.multi_reduction <maximumf>, %35, %cst_14 [2] : vector<2x8x8xf32> to vector<2x8xf32>
    %37 = vector.shape_cast %36 : vector<2x8xf32> to vector<2x8x1xf32>
    %38 = vector.broadcast %37 : vector<2x8x1xf32> to vector<2x8x8xf32>
    %39 = arith.subf %35, %38 : vector<2x8x8xf32>
    %40 = math.exp %39 : vector<2x8x8xf32>
    %cst_15 = arith.constant dense<0.000000e+00> : vector<2x8xf32>
    %41 = vector.multi_reduction <add>, %40, %cst_15 [2] : vector<2x8x8xf32> to vector<2x8xf32>
    %42 = vector.shape_cast %41 : vector<2x8xf32> to vector<2x8x1xf32>
    %43 = tpu.reciprocal %42 {approx = true} : vector<2x8x1xf32> -> vector<2x8x1xf32>
    %44 = vector.broadcast %43 : vector<2x8x1xf32> to vector<2x8x8xf32>
    %45 = arith.mulf %40, %44 : vector<2x8x8xf32>
    %46 = arith.truncf %45 : vector<2x8x8xf32> to vector<2x8x8xbf16>
    "tpu.trace_start"() <{level = 10 : i32, message = "blm,bmd->bld"}> : () -> ()
    %cst_16 = arith.constant dense<0.000000e+00> : vector<2x8x32xf32>
    %47 = tpu.matmul %46, %34, %cst_16 {dimension_numbers = #tpu.dot_dimension_numbers<[2], [1], [1], [2], [0, 0, 0, 1, 1, 2], [0], [0]>} : vector<2x8x8xbf16>, vector<2x8x32xbf16>, vector<2x8x32xf32> -> vector<2x8x32xf32>
    "tpu.trace_stop"() : () -> ()
    %48 = vector.extract_strided_slice %25 {offsets = [0, 0, 1, 0], sizes = [2, 8, 1, 32], strides = [1, 1, 1, 1]} : vector<2x8x6x32xf32> to vector<2x8x1x32xf32>
    %49 = vector.shape_cast %48 : vector<2x8x1x32xf32> to vector<2x8x32xf32>
    %50 = arith.truncf %49 : vector<2x8x32xf32> to vector<2x8x32xbf16>
    %51 = vector.extract_strided_slice %25 {offsets = [0, 0, 3, 0], sizes = [2, 8, 1, 32], strides = [1, 1, 1, 1]} : vector<2x8x6x32xf32> to vector<2x8x1x32xf32>
    %52 = vector.shape_cast %51 : vector<2x8x1x32xf32> to vector<2x8x32xf32>
    %53 = arith.truncf %52 : vector<2x8x32xf32> to vector<2x8x32xbf16>
    %54 = vector.extract_strided_slice %25 {offsets = [0, 0, 5, 0], sizes = [2, 8, 1, 32], strides = [1, 1, 1, 1]} : vector<2x8x6x32xf32> to vector<2x8x1x32xf32>
    %55 = vector.shape_cast %54 : vector<2x8x1x32xf32> to vector<2x8x32xf32>
    %56 = arith.truncf %55 : vector<2x8x32xf32> to vector<2x8x32xbf16>
    "tpu.trace_start"() <{level = 10 : i32, message = "bld,bmd->blm"}> : () -> ()
    %cst_17 = arith.constant dense<0.000000e+00> : vector<2x8x8xf32>
    %57 = tpu.matmul %50, %53, %cst_17 {dimension_numbers = #tpu.dot_dimension_numbers<[2], [2], [1], [1], [0, 0, 0, 1, 1, 1], [0], [0]>} : vector<2x8x32xbf16>, vector<2x8x32xbf16>, vector<2x8x8xf32> -> vector<2x8x8xf32>
    "tpu.trace_stop"() : () -> ()
    %cst_18 = arith.constant dense<0xFF800000> : vector<2x8xf32>
    %58 = vector.multi_reduction <maximumf>, %57, %cst_18 [2] : vector<2x8x8xf32> to vector<2x8xf32>
    %59 = vector.shape_cast %58 : vector<2x8xf32> to vector<2x8x1xf32>
    %60 = vector.broadcast %59 : vector<2x8x1xf32> to vector<2x8x8xf32>
    %61 = arith.subf %57, %60 : vector<2x8x8xf32>
    %62 = math.exp %61 : vector<2x8x8xf32>
    %cst_19 = arith.constant dense<0.000000e+00> : vector<2x8xf32>
    %63 = vector.multi_reduction <add>, %62, %cst_19 [2] : vector<2x8x8xf32> to vector<2x8xf32>
    %64 = vector.shape_cast %63 : vector<2x8xf32> to vector<2x8x1xf32>
    %65 = tpu.reciprocal %64 {approx = true} : vector<2x8x1xf32> -> vector<2x8x1xf32>
    %66 = vector.broadcast %65 : vector<2x8x1xf32> to vector<2x8x8xf32>
    %67 = arith.mulf %62, %66 : vector<2x8x8xf32>
    %68 = arith.truncf %67 : vector<2x8x8xf32> to vector<2x8x8xbf16>
    "tpu.trace_start"() <{level = 10 : i32, message = "blm,bmd->bld"}> : () -> ()
    %cst_20 = arith.constant dense<0.000000e+00> : vector<2x8x32xf32>
    %69 = tpu.matmul %68, %56, %cst_20 {dimension_numbers = #tpu.dot_dimension_numbers<[2], [1], [1], [2], [0, 0, 0, 1, 1, 2], [0], [0]>} : vector<2x8x8xbf16>, vector<2x8x32xbf16>, vector<2x8x32xf32> -> vector<2x8x32xf32>
    "tpu.trace_stop"() : () -> ()
    %70 = tpu.concatenate %47, %69 in 2 : vector<2x8x32xf32>, vector<2x8x32xf32> -> vector<2x8x64xf32>
    %71 = vector.shape_cast %70 : vector<2x8x64xf32> to vector<16x64xf32>
    %72 = arith.truncf %71 : vector<16x64xf32> to vector<16x64xbf16>
    %c0_21 = arith.constant 0 : index
    %c0_22 = arith.constant 0 : index
    %c0_23 = arith.constant 0 : index
    %73 = vector.load %arg4[%c0_21, %c0_22, %c0_23] : memref<3x64x64xbf16, #tpu.memory_space<vmem>>, vector<1x64x64xbf16>
    %74 = vector.shape_cast %73 : vector<1x64x64xbf16> to vector<64x64xbf16>
    %cst_24 = arith.constant dense<0.000000e+00> : vector<16x64xf32>
    %75 = tpu.matmul %72, %74, %cst_24 {dimension_numbers = #tpu.dot_dimension_numbers<[1], [0], [0], [1], [0, 0, 1, 1], [], []>} : vector<16x64xbf16>, vector<64x64xbf16>, vector<16x64xf32> -> vector<16x64xf32>
    %76 = vector.broadcast %12 : vector<1x64xf32> to vector<16x64xf32>
    %77 = arith.addf %75, %76 : vector<16x64xf32>
    %78 = arith.addf %8, %77 : vector<16x64xf32>
    %cst_25 = arith.constant dense<0.000000e+00> : vector<16xf32>
    %79 = vector.multi_reduction <add>, %78, %cst_25 [1] : vector<16x64xf32> to vector<16xf32>
    %80 = vector.shape_cast %79 : vector<16xf32> to vector<16x1xf32>
    %cst_26 = arith.constant 6.400000e+01 : f32
    %81 = vector.broadcast %cst_26 : f32 to vector<16x1xf32>
    %82 = arith.divf %80, %81 : vector<16x1xf32>
    %83 = vector.broadcast %82 : vector<16x1xf32> to vector<16x64xf32>
    %84 = arith.subf %78, %83 : vector<16x64xf32>
    %85 = arith.mulf %84, %84 : vector<16x64xf32>
    %cst_27 = arith.constant dense<0.000000e+00> : vector<16xf32>
    %86 = vector.multi_reduction <add>, %85, %cst_27 [1] : vector<16x64xf32> to vector<16xf32>
    %87 = vector.shape_cast %86 : vector<16xf32> to vector<16x1xf32>
    %cst_28 = arith.constant 6.400000e+01 : f32
    %88 = vector.broadcast %cst_28 : f32 to vector<16x1xf32>
    %89 = arith.divf %87, %88 : vector<16x1xf32>
    %90 = vector.broadcast %82 : vector<16x1xf32> to vector<16x64xf32>
    %91 = arith.subf %78, %90 : vector<16x64xf32>
    %cst_29 = arith.constant 9.99999974E-6 : f32
    %92 = vector.broadcast %cst_29 : f32 to vector<16x1xf32>
    %93 = arith.addf %89, %92 : vector<16x1xf32>
    %94 = math.rsqrt %93 : vector<16x1xf32>
    %95 = vector.broadcast %94 : vector<16x1xf32> to vector<16x64xf32>
    %96 = arith.mulf %91, %95 : vector<16x64xf32>
    %97 = vector.broadcast %13 : vector<1x64xf32> to vector<16x64xf32>
    %98 = arith.mulf %96, %97 : vector<16x64xf32>
    %99 = vector.broadcast %14 : vector<1x64xf32> to vector<16x64xf32>
    %100 = arith.addf %98, %99 : vector<16x64xf32>
    %101 = arith.truncf %100 : vector<16x64xf32> to vector<16x64xbf16>
    %c0_30 = arith.constant 0 : index
    %c0_31 = arith.constant 0 : index
    %c0_32 = arith.constant 0 : index
    %102 = vector.load %arg5[%c0_30, %c0_31, %c0_32] : memref<3x64x128xbf16, #tpu.memory_space<vmem>>, vector<1x64x128xbf16>
    %103 = vector.shape_cast %102 : vector<1x64x128xbf16> to vector<64x128xbf16>
    %cst_33 = arith.constant dense<0.000000e+00> : vector<16x128xf32>
    %104 = tpu.matmul %101, %103, %cst_33 {dimension_numbers = #tpu.dot_dimension_numbers<[1], [0], [0], [1], [0, 0, 1, 1], [], []>} : vector<16x64xbf16>, vector<64x128xbf16>, vector<16x128xf32> -> vector<16x128xf32>
    %105 = vector.broadcast %15 : vector<1x128xf32> to vector<16x128xf32>
    %106 = arith.addf %104, %105 : vector<16x128xf32>
    %cst_34 = arith.constant 0.000000e+00 : f32
    %107 = vector.broadcast %cst_34 : f32 to vector<16x128xf32>
    %108 = arith.maximumf %106, %107 : vector<16x128xf32>
    %109 = arith.truncf %108 : vector<16x128xf32> to vector<16x128xbf16>
    %c0_35 = arith.constant 0 : index
    %c0_36 = arith.constant 0 : index
    %c0_37 = arith.constant 0 : index
    %110 = vector.load %arg6[%c0_35, %c0_36, %c0_37] : memref<3x128x64xbf16, #tpu.memory_space<vmem>>, vector<1x128x64xbf16>
    %111 = vector.shape_cast %110 : vector<1x128x64xbf16> to vector<128x64xbf16>
    %cst_38 = arith.constant dense<0.000000e+00> : vector<16x64xf32>
    %112 = tpu.matmul %109, %111, %cst_38 {dimension_numbers = #tpu.dot_dimension_numbers<[1], [0], [0], [1], [0, 0, 1, 1], [], []>} : vector<16x128xbf16>, vector<128x64xbf16>, vector<16x64xf32> -> vector<16x64xf32>
    %113 = vector.broadcast %16 : vector<1x64xf32> to vector<16x64xf32>
    %114 = arith.addf %112, %113 : vector<16x64xf32>
    %115 = arith.addf %100, %114 : vector<16x64xf32>
    %cst_39 = arith.constant dense<0.000000e+00> : vector<16xf32>
    %116 = vector.multi_reduction <add>, %115, %cst_39 [1] : vector<16x64xf32> to vector<16xf32>
    %117 = vector.shape_cast %116 : vector<16xf32> to vector<16x1xf32>
    %cst_40 = arith.constant 6.400000e+01 : f32
    %118 = vector.broadcast %cst_40 : f32 to vector<16x1xf32>
    %119 = arith.divf %117, %118 : vector<16x1xf32>
    %120 = vector.broadcast %119 : vector<16x1xf32> to vector<16x64xf32>
    %121 = arith.subf %115, %120 : vector<16x64xf32>
    %122 = arith.mulf %121, %121 : vector<16x64xf32>
    %cst_41 = arith.constant dense<0.000000e+00> : vector<16xf32>
    %123 = vector.multi_reduction <add>, %122, %cst_41 [1] : vector<16x64xf32> to vector<16xf32>
    %124 = vector.shape_cast %123 : vector<16xf32> to vector<16x1xf32>
    %cst_42 = arith.constant 6.400000e+01 : f32
    %125 = vector.broadcast %cst_42 : f32 to vector<16x1xf32>
    %126 = arith.divf %124, %125 : vector<16x1xf32>
    %127 = vector.broadcast %119 : vector<16x1xf32> to vector<16x64xf32>
    %128 = arith.subf %115, %127 : vector<16x64xf32>
    %cst_43 = arith.constant 9.99999974E-6 : f32
    %129 = vector.broadcast %cst_43 : f32 to vector<16x1xf32>
    %130 = arith.addf %126, %129 : vector<16x1xf32>
    %131 = math.rsqrt %130 : vector<16x1xf32>
    %132 = vector.broadcast %131 : vector<16x1xf32> to vector<16x64xf32>
    %133 = arith.mulf %128, %132 : vector<16x64xf32>
    %134 = vector.broadcast %17 : vector<1x64xf32> to vector<16x64xf32>
    %135 = arith.mulf %133, %134 : vector<16x64xf32>
    %136 = vector.broadcast %18 : vector<1x64xf32> to vector<16x64xf32>
    %137 = arith.addf %135, %136 : vector<16x64xf32>
    %c1 = arith.constant 1 : index
    %c0_44 = arith.constant 0 : index
    %c0_45 = arith.constant 0 : index
    %138 = vector.load %arg8[%c1, %c0_44, %c0_45] : memref<3x8x192xf32, #tpu.memory_space<vmem>>, vector<1x8x192xf32>
    %139 = vector.shape_cast %138 : vector<1x8x192xf32> to vector<8x192xf32>
    %140 = vector.extract_strided_slice %139 {offsets = [0, 0], sizes = [1, 192], strides = [1, 1]} : vector<8x192xf32> to vector<1x192xf32>
    %141 = vector.extract_strided_slice %139 {offsets = [1, 0], sizes = [1, 64], strides = [1, 1]} : vector<8x192xf32> to vector<1x64xf32>
    %142 = vector.extract_strided_slice %139 {offsets = [2, 0], sizes = [1, 64], strides = [1, 1]} : vector<8x192xf32> to vector<1x64xf32>
    %143 = vector.extract_strided_slice %139 {offsets = [3, 0], sizes = [1, 64], strides = [1, 1]} : vector<8x192xf32> to vector<1x64xf32>
    %144 = vector.extract_strided_slice %139 {offsets = [4, 0], sizes = [1, 128], strides = [1, 1]} : vector<8x192xf32> to vector<1x128xf32>
    %145 = vector.extract_strided_slice %139 {offsets = [5, 0], sizes = [1, 64], strides = [1, 1]} : vector<8x192xf32> to vector<1x64xf32>
    %146 = vector.extract_strided_slice %139 {offsets = [6, 0], sizes = [1, 64], strides = [1, 1]} : vector<8x192xf32> to vector<1x64xf32>
    %147 = vector.extract_strided_slice %139 {offsets = [7, 0], sizes = [1, 64], strides = [1, 1]} : vector<8x192xf32> to vector<1x64xf32>
    %148 = arith.truncf %137 : vector<16x64xf32> to vector<16x64xbf16>
    %c1_46 = arith.constant 1 : index
    %c0_47 = arith.constant 0 : index
    %c0_48 = arith.constant 0 : index
    %149 = vector.load %arg3[%c1_46, %c0_47, %c0_48] : memref<3x64x192xbf16, #tpu.memory_space<vmem>>, vector<1x64x192xbf16>
    %150 = vector.shape_cast %149 : vector<1x64x192xbf16> to vector<64x192xbf16>
    %cst_49 = arith.constant dense<0.000000e+00> : vector<16x192xf32>
    %151 = tpu.matmul %148, %150, %cst_49 {dimension_numbers = #tpu.dot_dimension_numbers<[1], [0], [0], [1], [0, 0, 1, 1], [], []>} : vector<16x64xbf16>, vector<64x192xbf16>, vector<16x192xf32> -> vector<16x192xf32>
    %152 = vector.broadcast %140 : vector<1x192xf32> to vector<16x192xf32>
    %153 = arith.addf %151, %152 : vector<16x192xf32>
    %154 = vector.shape_cast %153 : vector<16x192xf32> to vector<2x8x6x32xf32>
    %155 = vector.extract_strided_slice %154 {offsets = [0, 0, 0, 0], sizes = [2, 8, 1, 32], strides = [1, 1, 1, 1]} : vector<2x8x6x32xf32> to vector<2x8x1x32xf32>
    %156 = vector.shape_cast %155 : vector<2x8x1x32xf32> to vector<2x8x32xf32>
    %157 = arith.truncf %156 : vector<2x8x32xf32> to vector<2x8x32xbf16>
    %158 = vector.extract_strided_slice %154 {offsets = [0, 0, 2, 0], sizes = [2, 8, 1, 32], strides = [1, 1, 1, 1]} : vector<2x8x6x32xf32> to vector<2x8x1x32xf32>
    %159 = vector.shape_cast %158 : vector<2x8x1x32xf32> to vector<2x8x32xf32>
    %160 = arith.truncf %159 : vector<2x8x32xf32> to vector<2x8x32xbf16>
    %161 = vector.extract_strided_slice %154 {offsets = [0, 0, 4, 0], sizes = [2, 8, 1, 32], strides = [1, 1, 1, 1]} : vector<2x8x6x32xf32> to vector<2x8x1x32xf32>
    %162 = vector.shape_cast %161 : vector<2x8x1x32xf32> to vector<2x8x32xf32>
    %163 = arith.truncf %162 : vector<2x8x32xf32> to vector<2x8x32xbf16>
    "tpu.trace_start"() <{level = 10 : i32, message = "bld,bmd->blm"}> : () -> ()
    %cst_50 = arith.constant dense<0.000000e+00> : vector<2x8x8xf32>
    %164 = tpu.matmul %157, %160, %cst_50 {dimension_numbers = #tpu.dot_dimension_numbers<[2], [2], [1], [1], [0, 0, 0, 1, 1, 1], [0], [0]>} : vector<2x8x32xbf16>, vector<2x8x32xbf16>, vector<2x8x8xf32> -> vector<2x8x8xf32>
    "tpu.trace_stop"() : () -> ()
    %cst_51 = arith.constant dense<0xFF800000> : vector<2x8xf32>
    %165 = vector.multi_reduction <maximumf>, %164, %cst_51 [2] : vector<2x8x8xf32> to vector<2x8xf32>
    %166 = vector.shape_cast %165 : vector<2x8xf32> to vector<2x8x1xf32>
    %167 = vector.broadcast %166 : vector<2x8x1xf32> to vector<2x8x8xf32>
    %168 = arith.subf %164, %167 : vector<2x8x8xf32>
    %169 = math.exp %168 : vector<2x8x8xf32>
    %cst_52 = arith.constant dense<0.000000e+00> : vector<2x8xf32>
    %170 = vector.multi_reduction <add>, %169, %cst_52 [2] : vector<2x8x8xf32> to vector<2x8xf32>
    %171 = vector.shape_cast %170 : vector<2x8xf32> to vector<2x8x1xf32>
    %172 = tpu.reciprocal %171 {approx = true} : vector<2x8x1xf32> -> vector<2x8x1xf32>
    %173 = vector.broadcast %172 : vector<2x8x1xf32> to vector<2x8x8xf32>
    %174 = arith.mulf %169, %173 : vector<2x8x8xf32>
    %175 = arith.truncf %174 : vector<2x8x8xf32> to vector<2x8x8xbf16>
    "tpu.trace_start"() <{level = 10 : i32, message = "blm,bmd->bld"}> : () -> ()
    %cst_53 = arith.constant dense<0.000000e+00> : vector<2x8x32xf32>
    %176 = tpu.matmul %175, %163, %cst_53 {dimension_numbers = #tpu.dot_dimension_numbers<[2], [1], [1], [2], [0, 0, 0, 1, 1, 2], [0], [0]>} : vector<2x8x8xbf16>, vector<2x8x32xbf16>, vector<2x8x32xf32> -> vector<2x8x32xf32>
    "tpu.trace_stop"() : () -> ()
    %177 = vector.extract_strided_slice %154 {offsets = [0, 0, 1, 0], sizes = [2, 8, 1, 32], strides = [1, 1, 1, 1]} : vector<2x8x6x32xf32> to vector<2x8x1x32xf32>
    %178 = vector.shape_cast %177 : vector<2x8x1x32xf32> to vector<2x8x32xf32>
    %179 = arith.truncf %178 : vector<2x8x32xf32> to vector<2x8x32xbf16>
    %180 = vector.extract_strided_slice %154 {offsets = [0, 0, 3, 0], sizes = [2, 8, 1, 32], strides = [1, 1, 1, 1]} : vector<2x8x6x32xf32> to vector<2x8x1x32xf32>
    %181 = vector.shape_cast %180 : vector<2x8x1x32xf32> to vector<2x8x32xf32>
    %182 = arith.truncf %181 : vector<2x8x32xf32> to vector<2x8x32xbf16>
    %183 = vector.extract_strided_slice %154 {offsets = [0, 0, 5, 0], sizes = [2, 8, 1, 32], strides = [1, 1, 1, 1]} : vector<2x8x6x32xf32> to vector<2x8x1x32xf32>
    %184 = vector.shape_cast %183 : vector<2x8x1x32xf32> to vector<2x8x32xf32>
    %185 = arith.truncf %184 : vector<2x8x32xf32> to vector<2x8x32xbf16>
    "tpu.trace_start"() <{level = 10 : i32, message = "bld,bmd->blm"}> : () -> ()
    %cst_54 = arith.constant dense<0.000000e+00> : vector<2x8x8xf32>
    %186 = tpu.matmul %179, %182, %cst_54 {dimension_numbers = #tpu.dot_dimension_numbers<[2], [2], [1], [1], [0, 0, 0, 1, 1, 1], [0], [0]>} : vector<2x8x32xbf16>, vector<2x8x32xbf16>, vector<2x8x8xf32> -> vector<2x8x8xf32>
    "tpu.trace_stop"() : () -> ()
    %cst_55 = arith.constant dense<0xFF800000> : vector<2x8xf32>
    %187 = vector.multi_reduction <maximumf>, %186, %cst_55 [2] : vector<2x8x8xf32> to vector<2x8xf32>
    %188 = vector.shape_cast %187 : vector<2x8xf32> to vector<2x8x1xf32>
    %189 = vector.broadcast %188 : vector<2x8x1xf32> to vector<2x8x8xf32>
    %190 = arith.subf %186, %189 : vector<2x8x8xf32>
    %191 = math.exp %190 : vector<2x8x8xf32>
    %cst_56 = arith.constant dense<0.000000e+00> : vector<2x8xf32>
    %192 = vector.multi_reduction <add>, %191, %cst_56 [2] : vector<2x8x8xf32> to vector<2x8xf32>
    %193 = vector.shape_cast %192 : vector<2x8xf32> to vector<2x8x1xf32>
    %194 = tpu.reciprocal %193 {approx = true} : vector<2x8x1xf32> -> vector<2x8x1xf32>
    %195 = vector.broadcast %194 : vector<2x8x1xf32> to vector<2x8x8xf32>
    %196 = arith.mulf %191, %195 : vector<2x8x8xf32>
    %197 = arith.truncf %196 : vector<2x8x8xf32> to vector<2x8x8xbf16>
    "tpu.trace_start"() <{level = 10 : i32, message = "blm,bmd->bld"}> : () -> ()
    %cst_57 = arith.constant dense<0.000000e+00> : vector<2x8x32xf32>
    %198 = tpu.matmul %197, %185, %cst_57 {dimension_numbers = #tpu.dot_dimension_numbers<[2], [1], [1], [2], [0, 0, 0, 1, 1, 2], [0], [0]>} : vector<2x8x8xbf16>, vector<2x8x32xbf16>, vector<2x8x32xf32> -> vector<2x8x32xf32>
    "tpu.trace_stop"() : () -> ()
    %199 = tpu.concatenate %176, %198 in 2 : vector<2x8x32xf32>, vector<2x8x32xf32> -> vector<2x8x64xf32>
    %200 = vector.shape_cast %199 : vector<2x8x64xf32> to vector<16x64xf32>
    %201 = arith.truncf %200 : vector<16x64xf32> to vector<16x64xbf16>
    %c1_58 = arith.constant 1 : index
    %c0_59 = arith.constant 0 : index
    %c0_60 = arith.constant 0 : index
    %202 = vector.load %arg4[%c1_58, %c0_59, %c0_60] : memref<3x64x64xbf16, #tpu.memory_space<vmem>>, vector<1x64x64xbf16>
    %203 = vector.shape_cast %202 : vector<1x64x64xbf16> to vector<64x64xbf16>
    %cst_61 = arith.constant dense<0.000000e+00> : vector<16x64xf32>
    %204 = tpu.matmul %201, %203, %cst_61 {dimension_numbers = #tpu.dot_dimension_numbers<[1], [0], [0], [1], [0, 0, 1, 1], [], []>} : vector<16x64xbf16>, vector<64x64xbf16>, vector<16x64xf32> -> vector<16x64xf32>
    %205 = vector.broadcast %141 : vector<1x64xf32> to vector<16x64xf32>
    %206 = arith.addf %204, %205 : vector<16x64xf32>
    %207 = arith.addf %137, %206 : vector<16x64xf32>
    %cst_62 = arith.constant dense<0.000000e+00> : vector<16xf32>
    %208 = vector.multi_reduction <add>, %207, %cst_62 [1] : vector<16x64xf32> to vector<16xf32>
    %209 = vector.shape_cast %208 : vector<16xf32> to vector<16x1xf32>
    %cst_63 = arith.constant 6.400000e+01 : f32
    %210 = vector.broadcast %cst_63 : f32 to vector<16x1xf32>
    %211 = arith.divf %209, %210 : vector<16x1xf32>
    %212 = vector.broadcast %211 : vector<16x1xf32> to vector<16x64xf32>
    %213 = arith.subf %207, %212 : vector<16x64xf32>
    %214 = arith.mulf %213, %213 : vector<16x64xf32>
    %cst_64 = arith.constant dense<0.000000e+00> : vector<16xf32>
    %215 = vector.multi_reduction <add>, %214, %cst_64 [1] : vector<16x64xf32> to vector<16xf32>
    %216 = vector.shape_cast %215 : vector<16xf32> to vector<16x1xf32>
    %cst_65 = arith.constant 6.400000e+01 : f32
    %217 = vector.broadcast %cst_65 : f32 to vector<16x1xf32>
    %218 = arith.divf %216, %217 : vector<16x1xf32>
    %219 = vector.broadcast %211 : vector<16x1xf32> to vector<16x64xf32>
    %220 = arith.subf %207, %219 : vector<16x64xf32>
    %cst_66 = arith.constant 9.99999974E-6 : f32
    %221 = vector.broadcast %cst_66 : f32 to vector<16x1xf32>
    %222 = arith.addf %218, %221 : vector<16x1xf32>
    %223 = math.rsqrt %222 : vector<16x1xf32>
    %224 = vector.broadcast %223 : vector<16x1xf32> to vector<16x64xf32>
    %225 = arith.mulf %220, %224 : vector<16x64xf32>
    %226 = vector.broadcast %142 : vector<1x64xf32> to vector<16x64xf32>
    %227 = arith.mulf %225, %226 : vector<16x64xf32>
    %228 = vector.broadcast %143 : vector<1x64xf32> to vector<16x64xf32>
    %229 = arith.addf %227, %228 : vector<16x64xf32>
    %230 = arith.truncf %229 : vector<16x64xf32> to vector<16x64xbf16>
    %c1_67 = arith.constant 1 : index
    %c0_68 = arith.constant 0 : index
    %c0_69 = arith.constant 0 : index
    %231 = vector.load %arg5[%c1_67, %c0_68, %c0_69] : memref<3x64x128xbf16, #tpu.memory_space<vmem>>, vector<1x64x128xbf16>
    %232 = vector.shape_cast %231 : vector<1x64x128xbf16> to vector<64x128xbf16>
    %cst_70 = arith.constant dense<0.000000e+00> : vector<16x128xf32>
    %233 = tpu.matmul %230, %232, %cst_70 {dimension_numbers = #tpu.dot_dimension_numbers<[1], [0], [0], [1], [0, 0, 1, 1], [], []>} : vector<16x64xbf16>, vector<64x128xbf16>, vector<16x128xf32> -> vector<16x128xf32>
    %234 = vector.broadcast %144 : vector<1x128xf32> to vector<16x128xf32>
    %235 = arith.addf %233, %234 : vector<16x128xf32>
    %cst_71 = arith.constant 0.000000e+00 : f32
    %236 = vector.broadcast %cst_71 : f32 to vector<16x128xf32>
    %237 = arith.maximumf %235, %236 : vector<16x128xf32>
    %238 = arith.truncf %237 : vector<16x128xf32> to vector<16x128xbf16>
    %c1_72 = arith.constant 1 : index
    %c0_73 = arith.constant 0 : index
    %c0_74 = arith.constant 0 : index
    %239 = vector.load %arg6[%c1_72, %c0_73, %c0_74] : memref<3x128x64xbf16, #tpu.memory_space<vmem>>, vector<1x128x64xbf16>
    %240 = vector.shape_cast %239 : vector<1x128x64xbf16> to vector<128x64xbf16>
    %cst_75 = arith.constant dense<0.000000e+00> : vector<16x64xf32>
    %241 = tpu.matmul %238, %240, %cst_75 {dimension_numbers = #tpu.dot_dimension_numbers<[1], [0], [0], [1], [0, 0, 1, 1], [], []>} : vector<16x128xbf16>, vector<128x64xbf16>, vector<16x64xf32> -> vector<16x64xf32>
    %242 = vector.broadcast %145 : vector<1x64xf32> to vector<16x64xf32>
    %243 = arith.addf %241, %242 : vector<16x64xf32>
    %244 = arith.addf %229, %243 : vector<16x64xf32>
    %cst_76 = arith.constant dense<0.000000e+00> : vector<16xf32>
    %245 = vector.multi_reduction <add>, %244, %cst_76 [1] : vector<16x64xf32> to vector<16xf32>
    %246 = vector.shape_cast %245 : vector<16xf32> to vector<16x1xf32>
    %cst_77 = arith.constant 6.400000e+01 : f32
    %247 = vector.broadcast %cst_77 : f32 to vector<16x1xf32>
    %248 = arith.divf %246, %247 : vector<16x1xf32>
    %249 = vector.broadcast %248 : vector<16x1xf32> to vector<16x64xf32>
    %250 = arith.subf %244, %249 : vector<16x64xf32>
    %251 = arith.mulf %250, %250 : vector<16x64xf32>
    %cst_78 = arith.constant dense<0.000000e+00> : vector<16xf32>
    %252 = vector.multi_reduction <add>, %251, %cst_78 [1] : vector<16x64xf32> to vector<16xf32>
    %253 = vector.shape_cast %252 : vector<16xf32> to vector<16x1xf32>
    %cst_79 = arith.constant 6.400000e+01 : f32
    %254 = vector.broadcast %cst_79 : f32 to vector<16x1xf32>
    %255 = arith.divf %253, %254 : vector<16x1xf32>
    %256 = vector.broadcast %248 : vector<16x1xf32> to vector<16x64xf32>
    %257 = arith.subf %244, %256 : vector<16x64xf32>
    %cst_80 = arith.constant 9.99999974E-6 : f32
    %258 = vector.broadcast %cst_80 : f32 to vector<16x1xf32>
    %259 = arith.addf %255, %258 : vector<16x1xf32>
    %260 = math.rsqrt %259 : vector<16x1xf32>
    %261 = vector.broadcast %260 : vector<16x1xf32> to vector<16x64xf32>
    %262 = arith.mulf %257, %261 : vector<16x64xf32>
    %263 = vector.broadcast %146 : vector<1x64xf32> to vector<16x64xf32>
    %264 = arith.mulf %262, %263 : vector<16x64xf32>
    %265 = vector.broadcast %147 : vector<1x64xf32> to vector<16x64xf32>
    %266 = arith.addf %264, %265 : vector<16x64xf32>
    %c2 = arith.constant 2 : index
    %c0_81 = arith.constant 0 : index
    %c0_82 = arith.constant 0 : index
    %267 = vector.load %arg8[%c2, %c0_81, %c0_82] : memref<3x8x192xf32, #tpu.memory_space<vmem>>, vector<1x8x192xf32>
    %268 = vector.shape_cast %267 : vector<1x8x192xf32> to vector<8x192xf32>
    %269 = vector.extract_strided_slice %268 {offsets = [0, 0], sizes = [1, 192], strides = [1, 1]} : vector<8x192xf32> to vector<1x192xf32>
    %270 = vector.extract_strided_slice %268 {offsets = [1, 0], sizes = [1, 64], strides = [1, 1]} : vector<8x192xf32> to vector<1x64xf32>
    %271 = vector.extract_strided_slice %268 {offsets = [2, 0], sizes = [1, 64], strides = [1, 1]} : vector<8x192xf32> to vector<1x64xf32>
    %272 = vector.extract_strided_slice %268 {offsets = [3, 0], sizes = [1, 64], strides = [1, 1]} : vector<8x192xf32> to vector<1x64xf32>
    %273 = vector.extract_strided_slice %268 {offsets = [4, 0], sizes = [1, 128], strides = [1, 1]} : vector<8x192xf32> to vector<1x128xf32>
    %274 = vector.extract_strided_slice %268 {offsets = [5, 0], sizes = [1, 64], strides = [1, 1]} : vector<8x192xf32> to vector<1x64xf32>
    %275 = vector.extract_strided_slice %268 {offsets = [6, 0], sizes = [1, 64], strides = [1, 1]} : vector<8x192xf32> to vector<1x64xf32>
    %276 = vector.extract_strided_slice %268 {offsets = [7, 0], sizes = [1, 64], strides = [1, 1]} : vector<8x192xf32> to vector<1x64xf32>
    %277 = arith.truncf %266 : vector<16x64xf32> to vector<16x64xbf16>
    %c2_83 = arith.constant 2 : index
    %c0_84 = arith.constant 0 : index
    %c0_85 = arith.constant 0 : index
    %278 = vector.load %arg3[%c2_83, %c0_84, %c0_85] : memref<3x64x192xbf16, #tpu.memory_space<vmem>>, vector<1x64x192xbf16>
    %279 = vector.shape_cast %278 : vector<1x64x192xbf16> to vector<64x192xbf16>
    %cst_86 = arith.constant dense<0.000000e+00> : vector<16x192xf32>
    %280 = tpu.matmul %277, %279, %cst_86 {dimension_numbers = #tpu.dot_dimension_numbers<[1], [0], [0], [1], [0, 0, 1, 1], [], []>} : vector<16x64xbf16>, vector<64x192xbf16>, vector<16x192xf32> -> vector<16x192xf32>
    %281 = vector.broadcast %269 : vector<1x192xf32> to vector<16x192xf32>
    %282 = arith.addf %280, %281 : vector<16x192xf32>
    %283 = vector.shape_cast %282 : vector<16x192xf32> to vector<2x8x6x32xf32>
    %284 = vector.extract_strided_slice %283 {offsets = [0, 0, 0, 0], sizes = [2, 8, 1, 32], strides = [1, 1, 1, 1]} : vector<2x8x6x32xf32> to vector<2x8x1x32xf32>
    %285 = vector.shape_cast %284 : vector<2x8x1x32xf32> to vector<2x8x32xf32>
    %286 = arith.truncf %285 : vector<2x8x32xf32> to vector<2x8x32xbf16>
    %287 = vector.extract_strided_slice %283 {offsets = [0, 0, 2, 0], sizes = [2, 8, 1, 32], strides = [1, 1, 1, 1]} : vector<2x8x6x32xf32> to vector<2x8x1x32xf32>
    %288 = vector.shape_cast %287 : vector<2x8x1x32xf32> to vector<2x8x32xf32>
    %289 = arith.truncf %288 : vector<2x8x32xf32> to vector<2x8x32xbf16>
    %290 = vector.extract_strided_slice %283 {offsets = [0, 0, 4, 0], sizes = [2, 8, 1, 32], strides = [1, 1, 1, 1]} : vector<2x8x6x32xf32> to vector<2x8x1x32xf32>
    %291 = vector.shape_cast %290 : vector<2x8x1x32xf32> to vector<2x8x32xf32>
    %292 = arith.truncf %291 : vector<2x8x32xf32> to vector<2x8x32xbf16>
    "tpu.trace_start"() <{level = 10 : i32, message = "bld,bmd->blm"}> : () -> ()
    %cst_87 = arith.constant dense<0.000000e+00> : vector<2x8x8xf32>
    %293 = tpu.matmul %286, %289, %cst_87 {dimension_numbers = #tpu.dot_dimension_numbers<[2], [2], [1], [1], [0, 0, 0, 1, 1, 1], [0], [0]>} : vector<2x8x32xbf16>, vector<2x8x32xbf16>, vector<2x8x8xf32> -> vector<2x8x8xf32>
    "tpu.trace_stop"() : () -> ()
    %cst_88 = arith.constant dense<0xFF800000> : vector<2x8xf32>
    %294 = vector.multi_reduction <maximumf>, %293, %cst_88 [2] : vector<2x8x8xf32> to vector<2x8xf32>
    %295 = vector.shape_cast %294 : vector<2x8xf32> to vector<2x8x1xf32>
    %296 = vector.broadcast %295 : vector<2x8x1xf32> to vector<2x8x8xf32>
    %297 = arith.subf %293, %296 : vector<2x8x8xf32>
    %298 = math.exp %297 : vector<2x8x8xf32>
    %cst_89 = arith.constant dense<0.000000e+00> : vector<2x8xf32>
    %299 = vector.multi_reduction <add>, %298, %cst_89 [2] : vector<2x8x8xf32> to vector<2x8xf32>
    %300 = vector.shape_cast %299 : vector<2x8xf32> to vector<2x8x1xf32>
    %301 = tpu.reciprocal %300 {approx = true} : vector<2x8x1xf32> -> vector<2x8x1xf32>
    %302 = vector.broadcast %301 : vector<2x8x1xf32> to vector<2x8x8xf32>
    %303 = arith.mulf %298, %302 : vector<2x8x8xf32>
    %304 = arith.truncf %303 : vector<2x8x8xf32> to vector<2x8x8xbf16>
    "tpu.trace_start"() <{level = 10 : i32, message = "blm,bmd->bld"}> : () -> ()
    %cst_90 = arith.constant dense<0.000000e+00> : vector<2x8x32xf32>
    %305 = tpu.matmul %304, %292, %cst_90 {dimension_numbers = #tpu.dot_dimension_numbers<[2], [1], [1], [2], [0, 0, 0, 1, 1, 2], [0], [0]>} : vector<2x8x8xbf16>, vector<2x8x32xbf16>, vector<2x8x32xf32> -> vector<2x8x32xf32>
    "tpu.trace_stop"() : () -> ()
    %306 = vector.extract_strided_slice %283 {offsets = [0, 0, 1, 0], sizes = [2, 8, 1, 32], strides = [1, 1, 1, 1]} : vector<2x8x6x32xf32> to vector<2x8x1x32xf32>
    %307 = vector.shape_cast %306 : vector<2x8x1x32xf32> to vector<2x8x32xf32>
    %308 = arith.truncf %307 : vector<2x8x32xf32> to vector<2x8x32xbf16>
    %309 = vector.extract_strided_slice %283 {offsets = [0, 0, 3, 0], sizes = [2, 8, 1, 32], strides = [1, 1, 1, 1]} : vector<2x8x6x32xf32> to vector<2x8x1x32xf32>
    %310 = vector.shape_cast %309 : vector<2x8x1x32xf32> to vector<2x8x32xf32>
    %311 = arith.truncf %310 : vector<2x8x32xf32> to vector<2x8x32xbf16>
    %312 = vector.extract_strided_slice %283 {offsets = [0, 0, 5, 0], sizes = [2, 8, 1, 32], strides = [1, 1, 1, 1]} : vector<2x8x6x32xf32> to vector<2x8x1x32xf32>
    %313 = vector.shape_cast %312 : vector<2x8x1x32xf32> to vector<2x8x32xf32>
    %314 = arith.truncf %313 : vector<2x8x32xf32> to vector<2x8x32xbf16>
    "tpu.trace_start"() <{level = 10 : i32, message = "bld,bmd->blm"}> : () -> ()
    %cst_91 = arith.constant dense<0.000000e+00> : vector<2x8x8xf32>
    %315 = tpu.matmul %308, %311, %cst_91 {dimension_numbers = #tpu.dot_dimension_numbers<[2], [2], [1], [1], [0, 0, 0, 1, 1, 1], [0], [0]>} : vector<2x8x32xbf16>, vector<2x8x32xbf16>, vector<2x8x8xf32> -> vector<2x8x8xf32>
    "tpu.trace_stop"() : () -> ()
    %cst_92 = arith.constant dense<0xFF800000> : vector<2x8xf32>
    %316 = vector.multi_reduction <maximumf>, %315, %cst_92 [2] : vector<2x8x8xf32> to vector<2x8xf32>
    %317 = vector.shape_cast %316 : vector<2x8xf32> to vector<2x8x1xf32>
    %318 = vector.broadcast %317 : vector<2x8x1xf32> to vector<2x8x8xf32>
    %319 = arith.subf %315, %318 : vector<2x8x8xf32>
    %320 = math.exp %319 : vector<2x8x8xf32>
    %cst_93 = arith.constant dense<0.000000e+00> : vector<2x8xf32>
    %321 = vector.multi_reduction <add>, %320, %cst_93 [2] : vector<2x8x8xf32> to vector<2x8xf32>
    %322 = vector.shape_cast %321 : vector<2x8xf32> to vector<2x8x1xf32>
    %323 = tpu.reciprocal %322 {approx = true} : vector<2x8x1xf32> -> vector<2x8x1xf32>
    %324 = vector.broadcast %323 : vector<2x8x1xf32> to vector<2x8x8xf32>
    %325 = arith.mulf %320, %324 : vector<2x8x8xf32>
    %326 = arith.truncf %325 : vector<2x8x8xf32> to vector<2x8x8xbf16>
    "tpu.trace_start"() <{level = 10 : i32, message = "blm,bmd->bld"}> : () -> ()
    %cst_94 = arith.constant dense<0.000000e+00> : vector<2x8x32xf32>
    %327 = tpu.matmul %326, %314, %cst_94 {dimension_numbers = #tpu.dot_dimension_numbers<[2], [1], [1], [2], [0, 0, 0, 1, 1, 2], [0], [0]>} : vector<2x8x8xbf16>, vector<2x8x32xbf16>, vector<2x8x32xf32> -> vector<2x8x32xf32>
    "tpu.trace_stop"() : () -> ()
    %328 = tpu.concatenate %305, %327 in 2 : vector<2x8x32xf32>, vector<2x8x32xf32> -> vector<2x8x64xf32>
    %329 = vector.shape_cast %328 : vector<2x8x64xf32> to vector<16x64xf32>
    %330 = arith.truncf %329 : vector<16x64xf32> to vector<16x64xbf16>
    %c2_95 = arith.constant 2 : index
    %c0_96 = arith.constant 0 : index
    %c0_97 = arith.constant 0 : index
    %331 = vector.load %arg4[%c2_95, %c0_96, %c0_97] : memref<3x64x64xbf16, #tpu.memory_space<vmem>>, vector<1x64x64xbf16>
    %332 = vector.shape_cast %331 : vector<1x64x64xbf16> to vector<64x64xbf16>
    %cst_98 = arith.constant dense<0.000000e+00> : vector<16x64xf32>
    %333 = tpu.matmul %330, %332, %cst_98 {dimension_numbers = #tpu.dot_dimension_numbers<[1], [0], [0], [1], [0, 0, 1, 1], [], []>} : vector<16x64xbf16>, vector<64x64xbf16>, vector<16x64xf32> -> vector<16x64xf32>
    %334 = vector.broadcast %270 : vector<1x64xf32> to vector<16x64xf32>
    %335 = arith.addf %333, %334 : vector<16x64xf32>
    %336 = arith.addf %266, %335 : vector<16x64xf32>
    %cst_99 = arith.constant dense<0.000000e+00> : vector<16xf32>
    %337 = vector.multi_reduction <add>, %336, %cst_99 [1] : vector<16x64xf32> to vector<16xf32>
    %338 = vector.shape_cast %337 : vector<16xf32> to vector<16x1xf32>
    %cst_100 = arith.constant 6.400000e+01 : f32
    %339 = vector.broadcast %cst_100 : f32 to vector<16x1xf32>
    %340 = arith.divf %338, %339 : vector<16x1xf32>
    %341 = vector.broadcast %340 : vector<16x1xf32> to vector<16x64xf32>
    %342 = arith.subf %336, %341 : vector<16x64xf32>
    %343 = arith.mulf %342, %342 : vector<16x64xf32>
    %cst_101 = arith.constant dense<0.000000e+00> : vector<16xf32>
    %344 = vector.multi_reduction <add>, %343, %cst_101 [1] : vector<16x64xf32> to vector<16xf32>
    %345 = vector.shape_cast %344 : vector<16xf32> to vector<16x1xf32>
    %cst_102 = arith.constant 6.400000e+01 : f32
    %346 = vector.broadcast %cst_102 : f32 to vector<16x1xf32>
    %347 = arith.divf %345, %346 : vector<16x1xf32>
    %348 = vector.broadcast %340 : vector<16x1xf32> to vector<16x64xf32>
    %349 = arith.subf %336, %348 : vector<16x64xf32>
    %cst_103 = arith.constant 9.99999974E-6 : f32
    %350 = vector.broadcast %cst_103 : f32 to vector<16x1xf32>
    %351 = arith.addf %347, %350 : vector<16x1xf32>
    %352 = math.rsqrt %351 : vector<16x1xf32>
    %353 = vector.broadcast %352 : vector<16x1xf32> to vector<16x64xf32>
    %354 = arith.mulf %349, %353 : vector<16x64xf32>
    %355 = vector.broadcast %271 : vector<1x64xf32> to vector<16x64xf32>
    %356 = arith.mulf %354, %355 : vector<16x64xf32>
    %357 = vector.broadcast %272 : vector<1x64xf32> to vector<16x64xf32>
    %358 = arith.addf %356, %357 : vector<16x64xf32>
    %359 = arith.truncf %358 : vector<16x64xf32> to vector<16x64xbf16>
    %c2_104 = arith.constant 2 : index
    %c0_105 = arith.constant 0 : index
    %c0_106 = arith.constant 0 : index
    %360 = vector.load %arg5[%c2_104, %c0_105, %c0_106] : memref<3x64x128xbf16, #tpu.memory_space<vmem>>, vector<1x64x128xbf16>
    %361 = vector.shape_cast %360 : vector<1x64x128xbf16> to vector<64x128xbf16>
    %cst_107 = arith.constant dense<0.000000e+00> : vector<16x128xf32>
    %362 = tpu.matmul %359, %361, %cst_107 {dimension_numbers = #tpu.dot_dimension_numbers<[1], [0], [0], [1], [0, 0, 1, 1], [], []>} : vector<16x64xbf16>, vector<64x128xbf16>, vector<16x128xf32> -> vector<16x128xf32>
    %363 = vector.broadcast %273 : vector<1x128xf32> to vector<16x128xf32>
    %364 = arith.addf %362, %363 : vector<16x128xf32>
    %cst_108 = arith.constant 0.000000e+00 : f32
    %365 = vector.broadcast %cst_108 : f32 to vector<16x128xf32>
    %366 = arith.maximumf %364, %365 : vector<16x128xf32>
    %367 = arith.truncf %366 : vector<16x128xf32> to vector<16x128xbf16>
    %c2_109 = arith.constant 2 : index
    %c0_110 = arith.constant 0 : index
    %c0_111 = arith.constant 0 : index
    %368 = vector.load %arg6[%c2_109, %c0_110, %c0_111] : memref<3x128x64xbf16, #tpu.memory_space<vmem>>, vector<1x128x64xbf16>
    %369 = vector.shape_cast %368 : vector<1x128x64xbf16> to vector<128x64xbf16>
    %cst_112 = arith.constant dense<0.000000e+00> : vector<16x64xf32>
    %370 = tpu.matmul %367, %369, %cst_112 {dimension_numbers = #tpu.dot_dimension_numbers<[1], [0], [0], [1], [0, 0, 1, 1], [], []>} : vector<16x128xbf16>, vector<128x64xbf16>, vector<16x64xf32> -> vector<16x64xf32>
    %371 = vector.broadcast %274 : vector<1x64xf32> to vector<16x64xf32>
    %372 = arith.addf %370, %371 : vector<16x64xf32>
    %373 = arith.addf %358, %372 : vector<16x64xf32>
    %cst_113 = arith.constant dense<0.000000e+00> : vector<16xf32>
    %374 = vector.multi_reduction <add>, %373, %cst_113 [1] : vector<16x64xf32> to vector<16xf32>
    %375 = vector.shape_cast %374 : vector<16xf32> to vector<16x1xf32>
    %cst_114 = arith.constant 6.400000e+01 : f32
    %376 = vector.broadcast %cst_114 : f32 to vector<16x1xf32>
    %377 = arith.divf %375, %376 : vector<16x1xf32>
    %378 = vector.broadcast %377 : vector<16x1xf32> to vector<16x64xf32>
    %379 = arith.subf %373, %378 : vector<16x64xf32>
    %380 = arith.mulf %379, %379 : vector<16x64xf32>
    %cst_115 = arith.constant dense<0.000000e+00> : vector<16xf32>
    %381 = vector.multi_reduction <add>, %380, %cst_115 [1] : vector<16x64xf32> to vector<16xf32>
    %382 = vector.shape_cast %381 : vector<16xf32> to vector<16x1xf32>
    %cst_116 = arith.constant 6.400000e+01 : f32
    %383 = vector.broadcast %cst_116 : f32 to vector<16x1xf32>
    %384 = arith.divf %382, %383 : vector<16x1xf32>
    %385 = vector.broadcast %377 : vector<16x1xf32> to vector<16x64xf32>
    %386 = arith.subf %373, %385 : vector<16x64xf32>
    %cst_117 = arith.constant 9.99999974E-6 : f32
    %387 = vector.broadcast %cst_117 : f32 to vector<16x1xf32>
    %388 = arith.addf %384, %387 : vector<16x1xf32>
    %389 = math.rsqrt %388 : vector<16x1xf32>
    %390 = vector.broadcast %389 : vector<16x1xf32> to vector<16x64xf32>
    %391 = arith.mulf %386, %390 : vector<16x64xf32>
    %392 = vector.broadcast %275 : vector<1x64xf32> to vector<16x64xf32>
    %393 = arith.mulf %391, %392 : vector<16x64xf32>
    %394 = vector.broadcast %276 : vector<1x64xf32> to vector<16x64xf32>
    %395 = arith.addf %393, %394 : vector<16x64xf32>
    %396 = vector.shape_cast %395 : vector<16x64xf32> to vector<2x8x64xf32>
    %cst_118 = arith.constant dense<0.000000e+00> : vector<2x64xf32>
    %397 = vector.multi_reduction <add>, %396, %cst_118 [1] : vector<2x8x64xf32> to vector<2x64xf32>
    %cst_119 = arith.constant 8.000000e+00 : f32
    %398 = vector.broadcast %cst_119 : f32 to vector<2x64xf32>
    %399 = arith.divf %397, %398 : vector<2x64xf32>
    %400 = arith.truncf %399 : vector<2x64xf32> to vector<2x64xbf16>
    %c0_120 = arith.constant 0 : index
    %c0_121 = arith.constant 0 : index
    %401 = vector.load %arg7[%c0_120, %c0_121] : memref<64x128xbf16, #tpu.memory_space<vmem>>, vector<64x128xbf16>
    %cst_122 = arith.constant dense<0.000000e+00> : vector<2x128xf32>
    %402 = tpu.matmul %400, %401, %cst_122 {dimension_numbers = #tpu.dot_dimension_numbers<[1], [0], [0], [1], [0, 0, 1, 1], [], []>} : vector<2x64xbf16>, vector<64x128xbf16>, vector<2x128xf32> -> vector<2x128xf32>
    %403 = vector.broadcast %2 : vector<1x128xf32> to vector<2x128xf32>
    %404 = arith.addf %402, %403 : vector<2x128xf32>
    %c0_123 = arith.constant 0 : index
    %c0_124 = arith.constant 0 : index
    %405 = vector.load %arg10[%c0_123, %c0_124] : memref<2x128xf32, #tpu.memory_space<vmem>>, vector<2x128xf32>
    tpu.vector_store %arg10[%c0_123, %c0_124], %404 {strides = array<i32>} : memref<2x128xf32, #tpu.memory_space<vmem>>, vector<2x128xf32>,
    return
  }
  func.func @transform_0(%arg0: i32) -> (i32, i32, i32) {
    %c0_i32 = arith.constant 0 : i32
    %c0_i32_0 = arith.constant 0 : i32
    %c0_i32_1 = arith.constant 0 : i32
    return %arg0, %c0_i32, %c0_i32_0 : i32, i32, i32
  }
  func.func @transform_1(%arg0: i32) -> (i32, i32) {
    %c0_i32 = arith.constant 0 : i32
    %c0_i32_0 = arith.constant 0 : i32
    %c0_i32_1 = arith.constant 0 : i32
    return %c0_i32, %c0_i32_0 : i32, i32
  }
  func.func @transform_2(%arg0: i32) -> (i32, i32, i32) {
    %c0_i32 = arith.constant 0 : i32
    %c0_i32_0 = arith.constant 0 : i32
    %c0_i32_1 = arith.constant 0 : i32
    %c0_i32_2 = arith.constant 0 : i32
    return %c0_i32, %c0_i32_0, %c0_i32_1 : i32, i32, i32
  }
  func.func @transform_3(%arg0: i32) -> (i32, i32, i32) {
    %c0_i32 = arith.constant 0 : i32
    %c0_i32_0 = arith.constant 0 : i32
    %c0_i32_1 = arith.constant 0 : i32
    %c0_i32_2 = arith.constant 0 : i32
    return %c0_i32, %c0_i32_0, %c0_i32_1 : i32, i32, i32
  }
  func.func @transform_4(%arg0: i32) -> (i32, i32, i32) {
    %c0_i32 = arith.constant 0 : i32
    %c0_i32_0 = arith.constant 0 : i32
    %c0_i32_1 = arith.constant 0 : i32
    %c0_i32_2 = arith.constant 0 : i32
    return %c0_i32, %c0_i32_0, %c0_i32_1 : i32, i32, i32
  }
  func.func @transform_5(%arg0: i32) -> (i32, i32, i32) {
    %c0_i32 = arith.constant 0 : i32
    %c0_i32_0 = arith.constant 0 : i32
    %c0_i32_1 = arith.constant 0 : i32
    %c0_i32_2 = arith.constant 0 : i32
    return %c0_i32, %c0_i32_0, %c0_i32_1 : i32, i32, i32
  }
  func.func @transform_6(%arg0: i32) -> (i32, i32) {
    %c0_i32 = arith.constant 0 : i32
    %c0_i32_0 = arith.constant 0 : i32
    %c0_i32_1 = arith.constant 0 : i32
    return %c0_i32, %c0_i32_0 : i32, i32
  }
  func.func @transform_7(%arg0: i32) -> (i32, i32, i32) {
    %c0_i32 = arith.constant 0 : i32
    %c0_i32_0 = arith.constant 0 : i32
    %c0_i32_1 = arith.constant 0 : i32
    %c0_i32_2 = arith.constant 0 : i32
    return %c0_i32, %c0_i32_0, %c0_i32_1 : i32, i32, i32
  }
  func.func @transform_8(%arg0: i32) -> (i32, i32) {
    %c0_i32 = arith.constant 0 : i32
    %c0_i32_0 = arith.constant 0 : i32
    %c0_i32_1 = arith.constant 0 : i32
    return %c0_i32, %c0_i32_0 : i32, i32
  }
  func.func @transform_9(%arg0: i32) -> (i32, i32) {
    %c0_i32 = arith.constant 0 : i32
    %c0_i32_0 = arith.constant 0 : i32
    return %arg0, %c0_i32 : i32, i32
  }
}

</mosaic_0001>

<llo_original>
// kernel: tpu_custom_call.1
$region0: #{tpu_custom_call.1}
  #allocation0 [shape = 'u32[]', space=smem, size = 0x4, offset = 0x4, fixed_abs, tag = 'smem constant byte address 0x4 - core index']
  #allocation1 [shape = 'u32[72,128]{1,0:T(1,128)}', space=vmem, size = 0x9000, scoped, tag = 'internal scratch']
  %s0 = inlined_call_operand.hbm [shape: bf16[2,8,64], index: 0, kind: input, shape index: {}]
  %s1 = inlined_call_operand.hbm [shape: bf16[64,64], index: 1, kind: input, shape index: {}]
  %s2 = inlined_call_operand.vmem [shape: bf16[3,64,192], index: 2, kind: input, shape index: {}]
  %s3 = inlined_call_operand.vmem [shape: bf16[3,64,64], index: 3, kind: input, shape index: {}]
  %s4 = inlined_call_operand.hbm [shape: bf16[3,64,128], index: 4, kind: input, shape index: {}]
  %s5 = inlined_call_operand.vmem [shape: bf16[3,128,64], index: 5, kind: input, shape index: {}]
  %s6 = inlined_call_operand.hbm [shape: bf16[64,128], index: 6, kind: input, shape index: {}]
  %s7 = inlined_call_operand.hbm [shape: f32[3,8,192], index: 7, kind: input, shape index: {}]
  %s8 = inlined_call_operand.vmem [shape: f32[2,128], index: 8, kind: input, shape index: {}]
  %s9 = inlined_call_operand.hbm [shape: f32[2,128], index: 9, kind: output, shape index: {}]
  %s10 = sld [smem:[#allocation0]]
  $region66: #{tpu_custom_call.1} parent=0
    _
  %s12 = ssub.s32 1, %s10
  %s13 = scalar_select 0, %s12, %s10
  $region1: #{tpu_custom_call.1} parent=0
    #allocation2 [shape = 'u8[4096]{0}', space=vmem, size = 0x1000, scoped, tag = 'input window, operand 0, single buffered']
    #allocation3 [shape = 's32[1]{0}', space=sflag, size = 0x4, scoped, tag = 'scoped memory for tpu_custom_call.1']
    #allocation4 [shape = 's32[1]{0}', space=sflag, size = 0x4, scoped, tag = 'scoped memory for tpu_custom_call.1']
    #allocation5 [shape = 'u8[16384]{0}', space=vmem, size = 0x4000, scoped, tag = 'input window, operand 1, single buffered']
    #allocation6 [shape = 's32[1]{0}', space=sflag, size = 0x4, scoped, tag = 'scoped memory for tpu_custom_call.1']
    #allocation7 [shape = 'u8[49152]{0}', space=vmem, size = 0xc000, scoped, tag = 'input window, operand 4, single buffered']
    #allocation8 [shape = 'u8[16384]{0}', space=vmem, size = 0x4000, scoped, tag = 'input window, operand 6, single buffered']
    #allocation9 [shape = 's32[1]{0}', space=sflag, size = 0x4, scoped, tag = 'scoped memory for tpu_custom_call.1']
    #allocation10 [shape = 'u8[24576]{0}', space=vmem, size = 0x6000, scoped, tag = 'input window, operand 7, single buffered']
    #allocation11 [shape = 'u8[1024]{0}', space=vmem, size = 0x400, scoped, tag = 'output window, operand 0, single buffered']
    %14 = vsyncpa [#allocation3], 0
    %15 = vsyncpa [#allocation6], 0
    %16 = vsyncpa [#allocation9], 0
    %17 = vsyncpa [#allocation4], 0
    // Predicated region
    $region2: #{tpu_custom_call.1} parent=1 // pred_check
      _
    $region3: #{tpu_custom_call.1} parent=1 // pred_check_branch
      %19 = sbr.rel (0) target = $region5
    $region4: #{tpu_custom_call.1} parent=1 // pred_region
      %21 = vsyncadd [#allocation3], 0
      %s22 = sshll.u32 %s0, 4
      %s23 = int_to_ptr.hbm [resolvable:$true] %s22
      %s24 = sshll.u32 [#allocation2], 4
      %s25 = int_to_ptr.vmem [resolvable:$true] %s24
      %30 = dma.hbm_to_vmem [thread:$0]  %s23, 128, %s25, [#allocation3], 64, 64, 4
    $region5: #{tpu_custom_call.1} parent=1 // pred_fallthru
      _
    // Predicated region
    $region6: #{tpu_custom_call.1} parent=1 // pred_check
      _
    $region7: #{tpu_custom_call.1} parent=1 // pred_check_branch
      %32 = sbr.rel (0) target = $region9
    $region8: #{tpu_custom_call.1} parent=1 // pred_region
      %34 = vsyncadd [#allocation6], 0
      %s35 = sshll.u32 %s1, 4
      %s36 = int_to_ptr.hbm [resolvable:$true] %s35
      %s37 = sshll.u32 [#allocation5], 4
      %s38 = int_to_ptr.vmem [resolvable:$true] %s37
      %43 = dma.hbm_to_vmem [thread:$0]  %s36, 512, %s38, [#allocation6], 64, 64, 4
    $region9: #{tpu_custom_call.1} parent=1 // pred_fallthru
      _
    // Predicated region
    $region10: #{tpu_custom_call.1} parent=1 // pred_check
      _
    $region11: #{tpu_custom_call.1} parent=1 // pred_check_branch
      %45 = sbr.rel (0) target = $region13
    $region12: #{tpu_custom_call.1} parent=1 // pred_region
      _
    $region13: #{tpu_custom_call.1} parent=1 // pred_fallthru
      _
    // Predicated region
    $region14: #{tpu_custom_call.1} parent=1 // pred_check
      _
    $region15: #{tpu_custom_call.1} parent=1 // pred_check_branch
      %47 = sbr.rel (0) target = $region17
    $region16: #{tpu_custom_call.1} parent=1 // pred_region
      _
    $region17: #{tpu_custom_call.1} parent=1 // pred_fallthru
      _
    // Predicated region
    $region18: #{tpu_custom_call.1} parent=1 // pred_check
      _
    $region19: #{tpu_custom_call.1} parent=1 // pred_check_branch
      %49 = sbr.rel (0) target = $region21
    $region20: #{tpu_custom_call.1} parent=1 // pred_region
      %51 = vsyncadd [#allocation6], 0
      %s52 = sshll.u32 %s4, 4
      %s53 = int_to_ptr.hbm [resolvable:$true] %s52
      %s54 = sshll.u32 [#allocation7], 4
      %s55 = int_to_ptr.vmem [resolvable:$true] %s54
      %60 = dma.hbm_to_vmem [thread:$0]  %s53, 1536, %s55, [#allocation6], 64, 64, 4
    $region21: #{tpu_custom_call.1} parent=1 // pred_fallthru
      _
    // Predicated region
    $region22: #{tpu_custom_call.1} parent=1 // pred_check
      _
    $region23: #{tpu_custom_call.1} parent=1 // pred_check_branch
      %62 = sbr.rel (0) target = $region25
    $region24: #{tpu_custom_call.1} parent=1 // pred_region
      _
    $region25: #{tpu_custom_call.1} parent=1 // pred_fallthru
      _
    // Predicated region
    $region26: #{tpu_custom_call.1} parent=1 // pred_check
      _
    $region27: #{tpu_custom_call.1} parent=1 // pred_check_branch
      %64 = sbr.rel (0) target = $region29
    $region28: #{tpu_custom_call.1} parent=1 // pred_region
      %66 = vsyncadd [#allocation9], 0
      %s67 = sshll.u32 %s6, 4
      %s68 = int_to_ptr.hbm [resolvable:$true] %s67
      %s69 = sshll.u32 [#allocation8], 4
      %s70 = int_to_ptr.vmem [resolvable:$true] %s69
      %75 = dma.hbm_to_vmem [thread:$0]  %s68, 512, %s70, [#allocation9], 64, 64, 4
    $region29: #{tpu_custom_call.1} parent=1 // pred_fallthru
      _
    // Predicated region
    $region30: #{tpu_custom_call.1} parent=1 // pred_check
      _
    $region31: #{tpu_custom_call.1} parent=1 // pred_check_branch
      %77 = sbr.rel (0) target = $region33
    $region32: #{tpu_custom_call.1} parent=1 // pred_region
      %79 = vsyncadd [#allocation9], 0
      %s80 = sshll.u32 %s7, 4
      %s81 = int_to_ptr.hbm [resolvable:$true] %s80
      %s82 = sshll.u32 [#allocation10], 4
      %s83 = int_to_ptr.vmem [resolvable:$true] %s82
      %88 = dma.hbm_to_vmem [thread:$0]  %s81, 768, %s83, [#allocation9], 256, 256, 16
    $region33: #{tpu_custom_call.1} parent=1 // pred_fallthru
      _
    // Predicated region
    $region34: #{tpu_custom_call.1} parent=1 // pred_check
      _
    $region35: #{tpu_custom_call.1} parent=1 // pred_check_branch
      %90 = sbr.rel (0) target = $region37
    $region36: #{tpu_custom_call.1} parent=1 // pred_region
      _
    $region37: #{tpu_custom_call.1} parent=1 // pred_fallthru
      _
    // Predicated region
    $region38: #{tpu_custom_call.1} parent=1 // pred_check
      _
    $region39: #{tpu_custom_call.1} parent=1 // pred_check_branch
      %92 = sbr.rel (0) target = $region41
    $region40: #{tpu_custom_call.1} parent=1 // pred_region
      %94 = dma.done [#allocation3], 128
    $region41: #{tpu_custom_call.1} parent=1 // pred_fallthru
      _
    // Predicated region
    $region42: #{tpu_custom_call.1} parent=1 // pred_check
      _
    $region43: #{tpu_custom_call.1} parent=1 // pred_check_branch
      %96 = sbr.rel (0) target = $region45
    $region44: #{tpu_custom_call.1} parent=1 // pred_region
      %98 = dma.done [#allocation6], 512
    $region45: #{tpu_custom_call.1} parent=1 // pred_fallthru
      _
    // Predicated region
    $region46: #{tpu_custom_call.1} parent=1 // pred_check
      _
    $region47: #{tpu_custom_call.1} parent=1 // pred_check_branch
      %100 = sbr.rel (0) target = $region49
    $region48: #{tpu_custom_call.1} parent=1 // pred_region
      %102 = dma.done [#allocation6], 1536
    $region49: #{tpu_custom_call.1} parent=1 // pred_fallthru
      _
    // Predicated region
    $region50: #{tpu_custom_call.1} parent=1 // pred_check
      _
    $region51: #{tpu_custom_call.1} parent=1 // pred_check_branch
      %104 = sbr.rel (0) target = $region53
    $region52: #{tpu_custom_call.1} parent=1 // pred_region
      %106 = dma.done [#allocation9], 512
    $region53: #{tpu_custom_call.1} parent=1 // pred_fallthru
      _
    // Predicated region
    $region54: #{tpu_custom_call.1} parent=1 // pred_check
      _
    $region55: #{tpu_custom_call.1} parent=1 // pred_check_branch
      %108 = sbr.rel (0) target = $region57
    $region56: #{tpu_custom_call.1} parent=1 // pred_region
      %110 = dma.done [#allocation9], 768
    $region57: #{tpu_custom_call.1} parent=1 // pred_fallthru
      _
    %v112 = vld [vmem:[%s8] sm:$0x3]
    %v113 = vld [vmem:[#allocation2] sm:$0xf]
    %v114 = vld [vmem:[#allocation2 + $0x4] sm:$0xf]
    %v115 = vld [vmem:[#allocation5] sm:$0xf]
    %v116 = vld [vmem:[#allocation5 + $0x4] sm:$0xf]
    %v117 = vld [vmem:[#allocation5 + $0x8] sm:$0xf]
    %v118 = vld [vmem:[#allocation5 + $0xc] sm:$0xf]
    %v119 = vld [vmem:[#allocation5 + $0x10] sm:$0xf]
    %v120 = vld [vmem:[#allocation5 + $0x14] sm:$0xf]
    %v121 = vld [vmem:[#allocation5 + $0x18] sm:$0xf]
    %v122 = vld [vmem:[#allocation5 + $0x1c] sm:$0xf]
    %v123 = vperm.slane %v112, 0
    %v126 = vunpack.c.l.b16 %v113
    %v127 = vunpack.c.l.b16 %v114
    %v128 = vpack.c.b16 %v127, %v126
    %v137 = vunpack.c.l.b16 %v115
    %v138 = vunpack.c.l.b16 %v116
    %v139 = vunpack.c.l.b16 %v117
    %v140 = vunpack.c.l.b16 %v118
    %v141 = vunpack.c.l.b16 %v119
    %v142 = vunpack.c.l.b16 %v120
    %v143 = vunpack.c.l.b16 %v121
    %v144 = vunpack.c.l.b16 %v122
    %v145 = vpack.c.b16 %v138, %v137
    %v146 = vpack.c.b16 %v140, %v139
    %v147 = vpack.c.b16 %v142, %v141
    %v148 = vpack.c.b16 %v144, %v143
    %vm153 = vcmask 523264
    %v155 = vsel %vm153, %v128, 0
    %157 = vmatpush.bf16.msra.mxu0 0
    %158 = vmatpush.bf16.msra.mxu0 0
    %159 = vmatpush.bf16.msra.mxu0 0
    %160 = vmatpush.bf16.msra.mxu0 0
    %161 = vmatpush.bf16.msra.mxu0 %v148
    %162 = vmatpush.bf16.msra.mxu0 %v147
    %163 = vmatpush.bf16.msra.mxu0 %v146
    %164 = vmatpush.bf16.msra.mxu0 %v145
    %165 = vmatmul.bf16.gmra.mxu0 %v155
    %v166 = vpop.f32.mrf.mxu0
    %v167 = vadd.f32 %v123, %v166
    %v168 = vpop.f32.mrf.mxu0
    %v169 = vadd.f32 %v123, %v168
    %170 = vdwg.mxu0
    %v171 = vld [vmem:[#allocation10] sm:$0xff]
    %v172 = vld [vmem:[#allocation10 + $0x8] sm:$0xff]
    %v173 = vpack.c.bf16 %v169, %v167
    %v174 = vld [vmem:[%s2] sm:$0xff]
    %v175 = vld [vmem:[%s2 + $0x8] sm:$0xff]
    %v176 = vld [vmem:[%s2 + $0x10] sm:$0xff]
    %v177 = vld [vmem:[%s2 + $0x18] sm:$0xff]
    %v178 = vld [vmem:[%s2 + $0x20] sm:$0xff]
    %v179 = vld [vmem:[%s2 + $0x28] sm:$0xff]
    %v180 = vld [vmem:[%s2 + $0x30] sm:$0xff]
    %v181 = vld [vmem:[%s2 + $0x38] sm:$0xff]
    %v182 = vperm.slane %v171, 0
    %v183 = vperm.slane %v172, 0
    %v192 = vunpack.c.l.b16 %v174
    %v193 = vunpack.c.h.b16 %v174
    %v194 = vunpack.c.l.b16 %v175
    %v195 = vunpack.c.h.b16 %v175
    %v196 = vunpack.c.l.b16 %v176
    %v197 = vunpack.c.h.b16 %v176
    %v198 = vunpack.c.l.b16 %v177
    %v199 = vunpack.c.h.b16 %v177
    %v200 = vunpack.c.l.b16 %v178
    %v201 = vunpack.c.h.b16 %v178
    %v202 = vunpack.c.l.b16 %v179
    %v203 = vunpack.c.h.b16 %v179
    %v204 = vunpack.c.l.b16 %v180
    %v205 = vunpack.c.h.b16 %v180
    %v206 = vunpack.c.l.b16 %v181
    %v207 = vunpack.c.h.b16 %v181
    %v208 = vpack.c.b16 %v194, %v192
    %v209 = vpack.c.b16 %v195, %v193
    %v210 = vpack.c.b16 %v198, %v196
    %v211 = vpack.c.b16 %v199, %v197
    %v212 = vpack.c.b16 %v202, %v200
    %v213 = vpack.c.b16 %v203, %v201
    %v214 = vpack.c.b16 %v206, %v204
    %v215 = vpack.c.b16 %v207, %v205
    %v225 = vsel %vm153, %v173, 0
    %227 = vmatpush.bf16.msra.mxu0 0
    %228 = vmatpush.bf16.msra.mxu0 0
    %229 = vmatpush.bf16.msra.mxu0 0
    %230 = vmatpush.bf16.msra.mxu0 0
    %231 = vmatpush.bf16.msra.mxu0 %v214
    %232 = vmatpush.bf16.msra.mxu0 %v212
    %233 = vmatpush.bf16.msra.mxu0 %v210
    %234 = vmatpush.bf16.msra.mxu0 %v208
    %235 = vmatmul.bf16.gmra.mxu0 %v225
    %v236 = vpop.f32.mrf.mxu0
    %v237 = vadd.f32 %v182, %v236
    %v238 = vpop.f32.mrf.mxu0
    %v239 = vadd.f32 %v182, %v238
    %240 = vdwg.mxu0
    %241 = vmatpush.bf16.msra.mxu0 0
    %242 = vmatpush.bf16.msra.mxu0 0
    %243 = vmatpush.bf16.msra.mxu0 0
    %244 = vmatpush.bf16.msra.mxu0 0
    %245 = vmatpush.bf16.msra.mxu0 %v215
    %246 = vmatpush.bf16.msra.mxu0 %v213
    %247 = vmatpush.bf16.msra.mxu0 %v211
    %248 = vmatpush.bf16.msra.mxu0 %v209
    %249 = vmatmul.bf16.gmra.mxu0 %v225
    %v250 = vpop.f32.mrf.mxu0
    %v251 = vadd.f32 %v183, %v250
    %v252 = vpop.f32.mrf.mxu0
    %v253 = vadd.f32 %v183, %v252
    %254 = vdwg.mxu0
    %257 = vrot.lane.b32.xlu0 %v237, 96
    %v258 = vpop.permute.xlu0 %257
    %259 = vrot.lane.b32.xlu0 %v239, 96
    %v260 = vpop.permute.xlu0 %259
    %263 = vrot.lane.b32.xlu0 %v237, 64
    %v264 = vpop.permute.xlu0 %263
    %265 = vrot.lane.b32.xlu0 %v239, 64
    %v266 = vpop.permute.xlu0 %265
    %269 = vrot.lane.b32.xlu0 %v237, 32
    %v270 = vpop.permute.xlu0 %269
    %271 = vrot.lane.b32.xlu0 %v239, 32
    %v272 = vpop.permute.xlu0 %271
    %277 = vrot.lane.b32.xlu0 %v251, 96
    %v278 = vpop.permute.xlu0 %277
    %279 = vrot.lane.b32.xlu0 %v253, 96
    %v280 = vpop.permute.xlu0 %279
    %v283 = vrot.slane %v264, 4
    %vm284 = vcmask 1047556
    %v285 = vsel %vm284, %v283, %v237
    %v286 = vrot.slane %v237, 4
    %v287 = vsel %vm284, %v264, %v286
    %v289 = vunpack.c.l.s4 1983009808
    %v290 = vunpack.c.0.s8 %v289
    %v291 = vperm.slane %v285, %v290
    %v293 = vunpack.c.l.s4 1983009808
    %v294 = vunpack.c.0.s8 %v293
    %v295 = vperm.slane %v287, %v294
    %v296 = vrot.slane %v270, 4
    %v297 = vsel %vm284, %v296, %v258
    %v298 = vrot.slane %v258, 4
    %v299 = vsel %vm284, %v270, %v298
    %v301 = vunpack.c.l.s4 1983009808
    %v302 = vunpack.c.0.s8 %v301
    %v303 = vperm.slane %v297, %v302
    %v305 = vunpack.c.l.s4 1983009808
    %v306 = vunpack.c.0.s8 %v305
    %v307 = vperm.slane %v299, %v306
    %v308 = vrot.slane %v251, 4
    %v309 = vsel %vm284, 0.0, %v308
    %v311 = vunpack.c.l.s4 1983009808
    %v312 = vunpack.c.0.s8 %v311
    %v313 = vperm.slane %v251, %v312
    %v315 = vunpack.c.l.s4 1983009808
    %v316 = vunpack.c.0.s8 %v315
    %v317 = vperm.slane %v309, %v316
    %v318 = vrot.slane %v278, 4
    %v319 = vsel %vm284, 0.0, %v318
    %v321 = vunpack.c.l.s4 1983009808
    %v322 = vunpack.c.0.s8 %v321
    %v323 = vperm.slane %v278, %v322
    %v325 = vunpack.c.l.s4 1983009808
    %v326 = vunpack.c.0.s8 %v325
    %v327 = vperm.slane %v319, %v326
    %v328 = vrot.slane %v303, 4
    %v329 = vsel %vm284, %v328, %v291
    %v330 = vrot.slane %v291, 4
    %v331 = vsel %vm284, %v303, %v330
    %v333 = vunpack.c.l.s4 1934713408
    %v334 = vunpack.c.0.s8 %v333
    %v335 = vperm.slane %v329, %v334
    %v337 = vunpack.c.l.s4 1934713408
    %v338 = vunpack.c.0.s8 %v337
    %v339 = vperm.slane %v331, %v338
    %v340 = vrot.slane %v307, 4
    %v341 = vsel %vm284, %v340, %v295
    %v342 = vrot.slane %v295, 4
    %v343 = vsel %vm284, %v307, %v342
    %v345 = vunpack.c.l.s4 1934713408
    %v346 = vunpack.c.0.s8 %v345
    %v347 = vperm.slane %v341, %v346
    %v349 = vunpack.c.l.s4 1934713408
    %v350 = vunpack.c.0.s8 %v349
    %v351 = vperm.slane %v343, %v350
    %v352 = vrot.slane %v323, 4
    %v353 = vsel %vm284, %v352, %v313
    %v354 = vrot.slane %v313, 4
    %v355 = vsel %vm284, %v323, %v354
    %v357 = vunpack.c.l.s4 1934713408
    %v358 = vunpack.c.0.s8 %v357
    %v359 = vperm.slane %v353, %v358
    %v361 = vunpack.c.l.s4 1934713408
    %v362 = vunpack.c.0.s8 %v361
    %v363 = vperm.slane %v355, %v362
    %v364 = vrot.slane %v327, 4
    %v365 = vsel %vm284, %v364, %v317
    %v366 = vrot.slane %v317, 4
    %v367 = vsel %vm284, %v327, %v366
    %v369 = vunpack.c.l.s4 1934713408
    %v370 = vunpack.c.0.s8 %v369
    %v371 = vperm.slane %v365, %v370
    %v373 = vunpack.c.l.s4 1934713408
    %v374 = vunpack.c.0.s8 %v373
    %v375 = vperm.slane %v367, %v374
    %v376 = vrot.slane %v359, 4
    %v377 = vsel %vm284, %v376, %v335
    %v378 = vrot.slane %v335, 4
    %v379 = vsel %vm284, %v359, %v378
    %v380 = vrot.slane %v363, 4
    %v381 = vsel %vm284, %v380, %v339
    %v382 = vrot.slane %v339, 4
    %v383 = vsel %vm284, %v363, %v382
    %v384 = vrot.slane %v371, 4
    %v385 = vsel %vm284, %v384, %v347
    %v386 = vrot.slane %v347, 4
    %v387 = vsel %vm284, %v371, %v386
    %v388 = vrot.slane %v375, 4
    %v389 = vsel %vm284, %v388, %v351
    %v390 = vrot.slane %v351, 4
    %v391 = vsel %vm284, %v375, %v390
    %v392 = vrot.slane %v266, 4
    %v393 = vsel %vm284, %v392, %v239
    %v394 = vrot.slane %v239, 4
    %v395 = vsel %vm284, %v266, %v394
    %v397 = vunpack.c.l.s4 1983009808
    %v398 = vunpack.c.0.s8 %v397
    %v399 = vperm.slane %v393, %v398
    %v401 = vunpack.c.l.s4 1983009808
    %v402 = vunpack.c.0.s8 %v401
    %v403 = vperm.slane %v395, %v402
    %v404 = vrot.slane %v272, 4
    %v405 = vsel %vm284, %v404, %v260
    %v406 = vrot.slane %v260, 4
    %v407 = vsel %vm284, %v272, %v406
    %v409 = vunpack.c.l.s4 1983009808
    %v410 = vunpack.c.0.s8 %v409
    %v411 = vperm.slane %v405, %v410
    %v413 = vunpack.c.l.s4 1983009808
    %v414 = vunpack.c.0.s8 %v413
    %v415 = vperm.slane %v407, %v414
    %v416 = vrot.slane %v253, 4
    %v417 = vsel %vm284, 0.0, %v416
    %v419 = vunpack.c.l.s4 1983009808
    %v420 = vunpack.c.0.s8 %v419
    %v421 = vperm.slane %v253, %v420
    %v423 = vunpack.c.l.s4 1983009808
    %v424 = vunpack.c.0.s8 %v423
    %v425 = vperm.slane %v417, %v424
    %v426 = vrot.slane %v280, 4
    %v427 = vsel %vm284, 0.0, %v426
    %v429 = vunpack.c.l.s4 1983009808
    %v430 = vunpack.c.0.s8 %v429
    %v431 = vperm.slane %v280, %v430
    %v433 = vunpack.c.l.s4 1983009808
    %v434 = vunpack.c.0.s8 %v433
    %v435 = vperm.slane %v427, %v434
    %v436 = vrot.slane %v411, 4
    %v437 = vsel %vm284, %v436, %v399
    %v438 = vrot.slane %v399, 4
    %v439 = vsel %vm284, %v411, %v438
    %v441 = vunpack.c.l.s4 1934713408
    %v442 = vunpack.c.0.s8 %v441
    %v443 = vperm.slane %v437, %v442
    %v445 = vunpack.c.l.s4 1934713408
    %v446 = vunpack.c.0.s8 %v445
    %v447 = vperm.slane %v439, %v446
    %v448 = vrot.slane %v415, 4
    %v449 = vsel %vm284, %v448, %v403
    %v450 = vrot.slane %v403, 4
    %v451 = vsel %vm284, %v415, %v450
    %v453 = vunpack.c.l.s4 1934713408
    %v454 = vunpack.c.0.s8 %v453
    %v455 = vperm.slane %v449, %v454
    %v457 = vunpack.c.l.s4 1934713408
    %v458 = vunpack.c.0.s8 %v457
    %v459 = vperm.slane %v451, %v458
    %v460 = vrot.slane %v431, 4
    %v461 = vsel %vm284, %v460, %v421
    %v462 = vrot.slane %v421, 4
    %v463 = vsel %vm284, %v431, %v462
    %v465 = vunpack.c.l.s4 1934713408
    %v466 = vunpack.c.0.s8 %v465
    %v467 = vperm.slane %v461, %v466
    %v469 = vunpack.c.l.s4 1934713408
    %v470 = vunpack.c.0.s8 %v469
    %v471 = vperm.slane %v463, %v470
    %v472 = vrot.slane %v435, 4
    %v473 = vsel %vm284, %v472, %v425
    %v474 = vrot.slane %v425, 4
    %v475 = vsel %vm284, %v435, %v474
    %v477 = vunpack.c.l.s4 1934713408
    %v478 = vunpack.c.0.s8 %v477
    %v479 = vperm.slane %v473, %v478
    %v481 = vunpack.c.l.s4 1934713408
    %v482 = vunpack.c.0.s8 %v481
    %v483 = vperm.slane %v475, %v482
    %v484 = vrot.slane %v467, 4
    %v485 = vsel %vm284, %v484, %v443
    %v486 = vrot.slane %v443, 4
    %v487 = vsel %vm284, %v467, %v486
    %v488 = vrot.slane %v471, 4
    %v489 = vsel %vm284, %v488, %v447
    %v490 = vrot.slane %v447, 4
    %v491 = vsel %vm284, %v471, %v490
    %v492 = vrot.slane %v479, 4
    %v493 = vsel %vm284, %v492, %v455
    %v494 = vrot.slane %v455, 4
    %v495 = vsel %vm284, %v479, %v494
    %v496 = vrot.slane %v483, 4
    %v497 = vsel %vm284, %v496, %v459
    %v498 = vrot.slane %v459, 4
    %v499 = vsel %vm284, %v483, %v498
    %v500 = vpack.c.bf16 %v377, %v377
    %v501 = vpack.c.bf16 %v379, %v379
    %v502 = vpack.c.bf16 %v381, %v381
    %v503 = vpack.c.bf16 %v383, %v383
    %v504 = vpack.c.bf16 %v385, %v385
    %v505 = vpack.c.bf16 %v387, %v387
    %v506 = vpack.c.bf16 %v389, %v389
    %v507 = vpack.c.bf16 %v391, %v391
    %v508 = vpack.c.bf16 %v485, %v485
    %v509 = vpack.c.bf16 %v487, %v487
    %v510 = vpack.c.bf16 %v489, %v489
    %v511 = vpack.c.bf16 %v491, %v491
    %v512 = vpack.c.bf16 %v493, %v493
    %v513 = vpack.c.bf16 %v495, %v495
    %v514 = vpack.c.bf16 %v497, %v497
    %v515 = vpack.c.bf16 %v499, %v499
    %v524 = vunpack.c.l.b16 %v500
    %v525 = vunpack.c.l.b16 %v501
    %v526 = vunpack.c.l.b16 %v502
    %v527 = vunpack.c.l.b16 %v503
    %v528 = vunpack.c.l.b16 %v504
    %v529 = vunpack.c.l.b16 %v505
    %v530 = vunpack.c.l.b16 %v506
    %v531 = vunpack.c.l.b16 %v507
    %v532 = vpack.c.b16 %v524, %v524
    %v533 = vpack.c.b16 %v525, %v525
    %v534 = vpack.c.b16 %v526, %v526
    %v535 = vpack.c.b16 %v527, %v527
    %v536 = vpack.c.b16 %v528, %v528
    %v537 = vpack.c.b16 %v529, %v529
    %v538 = vpack.c.b16 %v530, %v530
    %v539 = vpack.c.b16 %v531, %v531
    %v540 = vunpack.c.l.b16 %v532
    %v541 = vunpack.c.l.b16 %v533
    %v542 = vunpack.c.l.b16 %v534
    %v543 = vunpack.c.l.b16 %v535
    %v544 = vunpack.c.l.b16 %v536
    %v545 = vunpack.c.l.b16 %v537
    %v546 = vunpack.c.l.b16 %v538
    %v547 = vunpack.c.l.b16 %v539
    %v548 = vrot.slane %v541, 7
    %vm549 = vcmask 1041409
    %v550 = vsel %vm549, %v548, %v540
    %v551 = vrot.slane %v542, 6
    %vm552 = vcmask 1042434
    %v553 = vsel %vm552, %v551, %v550
    %v554 = vrot.slane %v543, 5
    %vm555 = vcmask 1043459
    %v556 = vsel %vm555, %v554, %v553
    %v557 = vrot.slane %v544, 4
    %vm558 = vcmask 1044484
    %v559 = vsel %vm558, %v557, %v556
    %v560 = vrot.slane %v545, 3
    %vm561 = vcmask 1045509
    %v562 = vsel %vm561, %v560, %v559
    %v563 = vrot.slane %v546, 2
    %vm564 = vcmask 1046534
    %v565 = vsel %vm564, %v563, %v562
    %v566 = vrot.slane %v547, 1
    %vm567 = vcmask 1047559
    %v568 = vsel %vm567, %v566, %v565
    %v569 = vpack.c.b16 %v568, %v568
    %v570 = vrot.slane %v540, 2
    %v571 = vrot.slane %v541, 1
    %v572 = vsel %vm549, %v571, %v570
    %v573 = vsel %vm552, %v542, %v572
    %v574 = vrot.slane %v543, 7
    %v575 = vsel %vm555, %v574, %v573
    %v576 = vrot.slane %v544, 6
    %v577 = vsel %vm558, %v576, %v575
    %v578 = vrot.slane %v545, 5
    %v579 = vsel %vm561, %v578, %v577
    %v580 = vrot.slane %v546, 4
    %v581 = vsel %vm564, %v580, %v579
    %v582 = vrot.slane %v547, 3
    %v583 = vsel %vm567, %v582, %v581
    %v584 = vpack.c.b16 %v583, %v583
    %vm585 = vcmask 261120
    %v587 = vsel %vm585, %v569, 0
    %v590 = vsel %vm585, %v584, 0
    %592 = vmatpush.bf16.xpose.msra.mxu0 0
    %593 = vmatpush.bf16.xpose.msra.mxu0 0
    %594 = vmatpush.bf16.xpose.msra.mxu0 0
    %595 = vmatpush.bf16.xpose.msra.mxu0 0
    %596 = vmatpush.bf16.xpose.msra.mxu0 0
    %597 = vmatpush.bf16.xpose.msra.mxu0 0
    %598 = vmatpush.bf16.xpose.msra.mxu0 0
    %599 = vmatpush.bf16.xpose.msra.mxu0 %v590
    %600 = vmatmul.bf16.gmra.mxu0 %v587
    %v601 = vpop.f32.mrf.mxu0
    %v602 = vadd.f32 0.0, %v601
    %v603 = vpop.f32.mrf.mxu0
    %604 = vdwg.mxu0
    %v613 = vunpack.c.l.b16 %v508
    %v614 = vunpack.c.l.b16 %v509
    %v615 = vunpack.c.l.b16 %v510
    %v616 = vunpack.c.l.b16 %v511
    %v617 = vunpack.c.l.b16 %v512
    %v618 = vunpack.c.l.b16 %v513
    %v619 = vunpack.c.l.b16 %v514
    %v620 = vunpack.c.l.b16 %v515
    %v621 = vpack.c.b16 %v613, %v613
    %v622 = vpack.c.b16 %v614, %v614
    %v623 = vpack.c.b16 %v615, %v615
    %v624 = vpack.c.b16 %v616, %v616
    %v625 = vpack.c.b16 %v617, %v617
    %v626 = vpack.c.b16 %v618, %v618
    %v627 = vpack.c.b16 %v619, %v619
    %v628 = vpack.c.b16 %v620, %v620
    %v629 = vunpack.c.l.b16 %v621
    %v630 = vunpack.c.l.b16 %v622
    %v631 = vunpack.c.l.b16 %v623
    %v632 = vunpack.c.l.b16 %v624
    %v633 = vunpack.c.l.b16 %v625
    %v634 = vunpack.c.l.b16 %v626
    %v635 = vunpack.c.l.b16 %v627
    %v636 = vunpack.c.l.b16 %v628
    %v637 = vrot.slane %v630, 7
    %v638 = vsel %vm549, %v637, %v629
    %v639 = vrot.slane %v631, 6
    %v640 = vsel %vm552, %v639, %v638
    %v641 = vrot.slane %v632, 5
    %v642 = vsel %vm555, %v641, %v640
    %v643 = vrot.slane %v633, 4
    %v644 = vsel %vm558, %v643, %v642
    %v645 = vrot.slane %v634, 3
    %v646 = vsel %vm561, %v645, %v644
    %v647 = vrot.slane %v635, 2
    %v648 = vsel %vm564, %v647, %v646
    %v649 = vrot.slane %v636, 1
    %v650 = vsel %vm567, %v649, %v648
    %v651 = vpack.c.b16 %v650, %v650
    %v652 = vrot.slane %v629, 2
    %v653 = vrot.slane %v630, 1
    %v654 = vsel %vm549, %v653, %v652
    %v655 = vsel %vm552, %v631, %v654
    %v656 = vrot.slane %v632, 7
    %v657 = vsel %vm555, %v656, %v655
    %v658 = vrot.slane %v633, 6
    %v659 = vsel %vm558, %v658, %v657
    %v660 = vrot.slane %v634, 5
    %v661 = vsel %vm561, %v660, %v659
    %v662 = vrot.slane %v635, 4
    %v663 = vsel %vm564, %v662, %v661
    %v664 = vrot.slane %v636, 3
    %v665 = vsel %vm567, %v664, %v663
    %v666 = vpack.c.b16 %v665, %v665
    %v668 = vsel %vm585, %v651, 0
    %v671 = vsel %vm585, %v666, 0
    %673 = vmatpush.bf16.xpose.msra.mxu0 0
    %674 = vmatpush.bf16.xpose.msra.mxu0 0
    %675 = vmatpush.bf16.xpose.msra.mxu0 0
    %676 = vmatpush.bf16.xpose.msra.mxu0 0
    %677 = vmatpush.bf16.xpose.msra.mxu0 0
    %678 = vmatpush.bf16.xpose.msra.mxu0 0
    %679 = vmatpush.bf16.xpose.msra.mxu0 0
    %680 = vmatpush.bf16.xpose.msra.mxu0 %v671
    %681 = vmatmul.bf16.gmra.mxu0 %v668
    %v682 = vpop.f32.mrf.mxu0
    %v683 = vadd.f32 0.0, %v682
    %v684 = vpop.f32.mrf.mxu0
    %685 = vdwg.mxu0
    %vm686 = vcmask 64512
    %v687 = vsel %vm686, %v602, -inf
    %688 = vmax.xlane.f32.xlu0 %v687
    %v689 = vpop.xlane.xlu0 %688
    %v690 = vsel %vm686, %v683, -inf
    %691 = vmax.xlane.f32.xlu0 %v690
    %v692 = vpop.xlane.xlu0 %691
    %v693 = vsub.f32 %v602, %v689
    %v694 = vsub.f32 %v683, %v692
    %v695 = vmul.f32 %v693, 1.442695
    %v696 = vpow.pop %v695
    %v697 = vmul.f32 %v694, 1.442695
    %v698 = vpow.pop %v697
    %v699 = vsel %vm686, %v696, 0.0
    %700 = vadd.xlane.f32.xlu0 %v699
    %v701 = vpop.xlane.xlu0 %700
    %v702 = vsel %vm686, %v698, 0.0
    %703 = vadd.xlane.f32.xlu0 %v702
    %v704 = vpop.xlane.xlu0 %703
    %v705 = vrcp.pop %v701
    %v706 = vrcp.pop %v704
    %v707 = vmul.f32 %v696, %v705
    %v708 = vmul.f32 %v698, %v706
    %v709 = vpack.c.bf16 %v707, %v707
    %v710 = vpack.c.bf16 %v708, %v708
    %v711 = vrot.slane %v540, 4
    %v712 = vrot.slane %v541, 3
    %v713 = vsel %vm549, %v712, %v711
    %v714 = vrot.slane %v542, 2
    %v715 = vsel %vm552, %v714, %v713
    %v716 = vrot.slane %v543, 1
    %v717 = vsel %vm555, %v716, %v715
    %v718 = vsel %vm558, %v544, %v717
    %v719 = vrot.slane %v545, 7
    %v720 = vsel %vm561, %v719, %v718
    %v721 = vrot.slane %v546, 6
    %v722 = vsel %vm564, %v721, %v720
    %v723 = vrot.slane %v547, 5
    %v724 = vsel %vm567, %v723, %v722
    %v725 = vpack.c.b16 %v724, %v724
    %v727 = vsel %vm686, %v709, 0
    %vm729 = vcmask 1043456
    %v731 = vsel %vm729, %v725, 0
    %733 = vmatpush.bf16.msra.mxu0 0
    %734 = vmatpush.bf16.msra.mxu0 0
    %735 = vmatpush.bf16.msra.mxu0 0
    %736 = vmatpush.bf16.msra.mxu0 0
    %737 = vmatpush.bf16.msra.mxu0 0
    %738 = vmatpush.bf16.msra.mxu0 0
    %739 = vmatpush.bf16.msra.mxu0 0
    %740 = vmatpush.bf16.msra.mxu0 %v731
    %741 = vmatmul.bf16.gmra.mxu0 %v727
    %v742 = vpop.f32.mrf.mxu0
    %v743 = vadd.f32 0.0, %v742
    %v744 = vpop.f32.mrf.mxu0
    %745 = vdwg.mxu0
    %v746 = vrot.slane %v629, 4
    %v747 = vrot.slane %v630, 3
    %v748 = vsel %vm549, %v747, %v746
    %v749 = vrot.slane %v631, 2
    %v750 = vsel %vm552, %v749, %v748
    %v751 = vrot.slane %v632, 1
    %v752 = vsel %vm555, %v751, %v750
    %v753 = vsel %vm558, %v633, %v752
    %v754 = vrot.slane %v634, 7
    %v755 = vsel %vm561, %v754, %v753
    %v756 = vrot.slane %v635, 6
    %v757 = vsel %vm564, %v756, %v755
    %v758 = vrot.slane %v636, 5
    %v759 = vsel %vm567, %v758, %v757
    %v760 = vpack.c.b16 %v759, %v759
    %v762 = vsel %vm686, %v710, 0
    %v765 = vsel %vm729, %v760, 0
    %767 = vmatpush.bf16.msra.mxu0 0
    %768 = vmatpush.bf16.msra.mxu0 0
    %769 = vmatpush.bf16.msra.mxu0 0
    %770 = vmatpush.bf16.msra.mxu0 0
    %771 = vmatpush.bf16.msra.mxu0 0
    %772 = vmatpush.bf16.msra.mxu0 0
    %773 = vmatpush.bf16.msra.mxu0 0
    %774 = vmatpush.bf16.msra.mxu0 %v765
    %775 = vmatmul.bf16.gmra.mxu0 %v762
    %v776 = vpop.f32.mrf.mxu0
    %v777 = vadd.f32 0.0, %v776
    %v778 = vpop.f32.mrf.mxu0
    %779 = vdwg.mxu0
    %v780 = vrot.slane %v540, 1
    %v781 = vsel %vm549, %v541, %v780
    %v782 = vrot.slane %v542, 7
    %v783 = vsel %vm552, %v782, %v781
    %v784 = vrot.slane %v543, 6
    %v785 = vsel %vm555, %v784, %v783
    %v786 = vrot.slane %v544, 5
    %v787 = vsel %vm558, %v786, %v785
    %v788 = vrot.slane %v545, 4
    %v789 = vsel %vm561, %v788, %v787
    %v790 = vrot.slane %v546, 3
    %v791 = vsel %vm564, %v790, %v789
    %v792 = vrot.slane %v547, 2
    %v793 = vsel %vm567, %v792, %v791
    %v794 = vpack.c.b16 %v793, %v793
    %v795 = vrot.slane %v540, 3
    %v796 = vrot.slane %v541, 2
    %v797 = vsel %vm549, %v796, %v795
    %v798 = vrot.slane %v542, 1
    %v799 = vsel %vm552, %v798, %v797
    %v800 = vsel %vm555, %v543, %v799
    %v801 = vrot.slane %v544, 7
    %v802 = vsel %vm558, %v801, %v800
    %v803 = vrot.slane %v545, 6
    %v804 = vsel %vm561, %v803, %v802
    %v805 = vrot.slane %v546, 5
    %v806 = vsel %vm564, %v805, %v804
    %v807 = vrot.slane %v547, 4
    %v808 = vsel %vm567, %v807, %v806
    %v809 = vpack.c.b16 %v808, %v808
    %v811 = vsel %vm585, %v794, 0
    %v814 = vsel %vm585, %v809, 0
    %816 = vmatpush.bf16.xpose.msra.mxu0 0
    %817 = vmatpush.bf16.xpose.msra.mxu0 0
    %818 = vmatpush.bf16.xpose.msra.mxu0 0
    %819 = vmatpush.bf16.xpose.msra.mxu0 0
    %820 = vmatpush.bf16.xpose.msra.mxu0 0
    %821 = vmatpush.bf16.xpose.msra.mxu0 0
    %822 = vmatpush.bf16.xpose.msra.mxu0 0
    %823 = vmatpush.bf16.xpose.msra.mxu0 %v814
    %824 = vmatmul.bf16.gmra.mxu0 %v811
    %v825 = vpop.f32.mrf.mxu0
    %v826 = vadd.f32 0.0, %v825
    %v827 = vpop.f32.mrf.mxu0
    %828 = vdwg.mxu0
    %v829 = vrot.slane %v629, 1
    %v830 = vsel %vm549, %v630, %v829
    %v831 = vrot.slane %v631, 7
    %v832 = vsel %vm552, %v831, %v830
    %v833 = vrot.slane %v632, 6
    %v834 = vsel %vm555, %v833, %v832
    %v835 = vrot.slane %v633, 5
    %v836 = vsel %vm558, %v835, %v834
    %v837 = vrot.slane %v634, 4
    %v838 = vsel %vm561, %v837, %v836
    %v839 = vrot.slane %v635, 3
    %v840 = vsel %vm564, %v839, %v838
    %v841 = vrot.slane %v636, 2
    %v842 = vsel %vm567, %v841, %v840
    %v843 = vpack.c.b16 %v842, %v842
    %v844 = vrot.slane %v629, 3
    %v845 = vrot.slane %v630, 2
    %v846 = vsel %vm549, %v845, %v844
    %v847 = vrot.slane %v631, 1
    %v848 = vsel %vm552, %v847, %v846
    %v849 = vsel %vm555, %v632, %v848
    %v850 = vrot.slane %v633, 7
    %v851 = vsel %vm558, %v850, %v849
    %v852 = vrot.slane %v634, 6
    %v853 = vsel %vm561, %v852, %v851
    %v854 = vrot.slane %v635, 5
    %v855 = vsel %vm564, %v854, %v853
    %v856 = vrot.slane %v636, 4
    %v857 = vsel %vm567, %v856, %v855
    %v858 = vpack.c.b16 %v857, %v857
    %v860 = vsel %vm585, %v843, 0
    %v863 = vsel %vm585, %v858, 0
    %865 = vmatpush.bf16.xpose.msra.mxu0 0
    %866 = vmatpush.bf16.xpose.msra.mxu0 0
    %867 = vmatpush.bf16.xpose.msra.mxu0 0
    %868 = vmatpush.bf16.xpose.msra.mxu0 0
    %869 = vmatpush.bf16.xpose.msra.mxu0 0
    %870 = vmatpush.bf16.xpose.msra.mxu0 0
    %871 = vmatpush.bf16.xpose.msra.mxu0 0
    %872 = vmatpush.bf16.xpose.msra.mxu0 %v863
    %873 = vmatmul.bf16.gmra.mxu0 %v860
    %v874 = vpop.f32.mrf.mxu0
    %v875 = vadd.f32 0.0, %v874
    %v876 = vpop.f32.mrf.mxu0
    %877 = vdwg.mxu0
    %v878 = vsel %vm686, %v826, -inf
    %879 = vmax.xlane.f32.xlu0 %v878
    %v880 = vpop.xlane.xlu0 %879
    %v881 = vsel %vm686, %v875, -inf
    %882 = vmax.xlane.f32.xlu0 %v881
    %v883 = vpop.xlane.xlu0 %882
    %v884 = vsub.f32 %v826, %v880
    %v885 = vsub.f32 %v875, %v883
    %v886 = vmul.f32 %v884, 1.442695
    %v887 = vpow.pop %v886
    %v888 = vmul.f32 %v885, 1.442695
    %v889 = vpow.pop %v888
    %v890 = vsel %vm686, %v887, 0.0
    %891 = vadd.xlane.f32.xlu0 %v890
    %v892 = vpop.xlane.xlu0 %891
    %v893 = vsel %vm686, %v889, 0.0
    %894 = vadd.xlane.f32.xlu0 %v893
    %v895 = vpop.xlane.xlu0 %894
    %v896 = vrcp.pop %v892
    %v897 = vrcp.pop %v895
    %v898 = vmul.f32 %v887, %v896
    %v899 = vmul.f32 %v889, %v897
    %v900 = vpack.c.bf16 %v898, %v898
    %v901 = vpack.c.bf16 %v899, %v899
    %v902 = vrot.slane %v540, 5
    %v903 = vrot.slane %v541, 4
    %v904 = vsel %vm549, %v903, %v902
    %v905 = vrot.slane %v542, 3
    %v906 = vsel %vm552, %v905, %v904
    %v907 = vrot.slane %v543, 2
    %v908 = vsel %vm555, %v907, %v906
    %v909 = vrot.slane %v544, 1
    %v910 = vsel %vm558, %v909, %v908
    %v911 = vsel %vm561, %v545, %v910
    %v912 = vrot.slane %v546, 7
    %v913 = vsel %vm564, %v912, %v911
    %v914 = vrot.slane %v547, 6
    %v915 = vsel %vm567, %v914, %v913
    %v916 = vpack.c.b16 %v915, %v915
    %v918 = vsel %vm686, %v900, 0
    %v921 = vsel %vm729, %v916, 0
    %923 = vmatpush.bf16.msra.mxu0 0
    %924 = vmatpush.bf16.msra.mxu0 0
    %925 = vmatpush.bf16.msra.mxu0 0
    %926 = vmatpush.bf16.msra.mxu0 0
    %927 = vmatpush.bf16.msra.mxu0 0
    %928 = vmatpush.bf16.msra.mxu0 0
    %929 = vmatpush.bf16.msra.mxu0 0
    %930 = vmatpush.bf16.msra.mxu0 %v921
    %931 = vmatmul.bf16.gmra.mxu0 %v918
    %v932 = vpop.f32.mrf.mxu0
    %v933 = vadd.f32 0.0, %v932
    %v934 = vpop.f32.mrf.mxu0
    %935 = vdwg.mxu0
    %v936 = vrot.slane %v629, 5
    %v937 = vrot.slane %v630, 4
    %v938 = vsel %vm549, %v937, %v936
    %v939 = vrot.slane %v631, 3
    %v940 = vsel %vm552, %v939, %v938
    %v941 = vrot.slane %v632, 2
    %v942 = vsel %vm555, %v941, %v940
    %v943 = vrot.slane %v633, 1
    %v944 = vsel %vm558, %v943, %v942
    %v945 = vsel %vm561, %v634, %v944
    %v946 = vrot.slane %v635, 7
    %v947 = vsel %vm564, %v946, %v945
    %v948 = vrot.slane %v636, 6
    %v949 = vsel %vm567, %v948, %v947
    %v950 = vpack.c.b16 %v949, %v949
    %v952 = vsel %vm686, %v901, 0
    %v955 = vsel %vm729, %v950, 0
    %957 = vmatpush.bf16.msra.mxu0 0
    %958 = vmatpush.bf16.msra.mxu0 0
    %959 = vmatpush.bf16.msra.mxu0 0
    %960 = vmatpush.bf16.msra.mxu0 0
    %961 = vmatpush.bf16.msra.mxu0 0
    %962 = vmatpush.bf16.msra.mxu0 0
    %963 = vmatpush.bf16.msra.mxu0 0
    %964 = vmatpush.bf16.msra.mxu0 %v955
    %965 = vmatmul.bf16.gmra.mxu0 %v952
    %v966 = vpop.f32.mrf.mxu0
    %v967 = vadd.f32 0.0, %v966
    %v968 = vpop.f32.mrf.mxu0
    %969 = vdwg.mxu0
    %972 = vrot.lane.b32.xlu0 %v933, 32
    %v973 = vpop.permute.xlu0 %972
    %974 = vrot.lane.b32.xlu0 %v967, 32
    %v975 = vpop.permute.xlu0 %974
    %v978 = vsel %vm585, %v743, %v973
    %v979 = vsel %vm585, %v777, %v975
    %v980 = vpack.c.bf16 %v979, %v978
    %v981 = vld [vmem:[%s3] sm:$0xf]
    %v982 = vld [vmem:[%s3 + $0x4] sm:$0xf]
    %v983 = vld [vmem:[%s3 + $0x8] sm:$0xf]
    %v984 = vld [vmem:[%s3 + $0xc] sm:$0xf]
    %v985 = vld [vmem:[%s3 + $0x10] sm:$0xf]
    %v986 = vld [vmem:[%s3 + $0x14] sm:$0xf]
    %v987 = vld [vmem:[%s3 + $0x18] sm:$0xf]
    %v988 = vld [vmem:[%s3 + $0x1c] sm:$0xf]
    %v989 = vperm.slane %v171, 1
    %v998 = vunpack.c.l.b16 %v981
    %v999 = vunpack.c.l.b16 %v982
    %v1000 = vunpack.c.l.b16 %v983
    %v1001 = vunpack.c.l.b16 %v984
    %v1002 = vunpack.c.l.b16 %v985
    %v1003 = vunpack.c.l.b16 %v986
    %v1004 = vunpack.c.l.b16 %v987
    %v1005 = vunpack.c.l.b16 %v988
    %v1006 = vpack.c.b16 %v999, %v998
    %v1007 = vpack.c.b16 %v1001, %v1000
    %v1008 = vpack.c.b16 %v1003, %v1002
    %v1009 = vpack.c.b16 %v1005, %v1004
    %v1015 = vsel %vm153, %v980, 0
    %1017 = vmatpush.bf16.msra.mxu0 0
    %1018 = vmatpush.bf16.msra.mxu0 0
    %1019 = vmatpush.bf16.msra.mxu0 0
    %1020 = vmatpush.bf16.msra.mxu0 0
    %1021 = vmatpush.bf16.msra.mxu0 %v1009
    %1022 = vmatpush.bf16.msra.mxu0 %v1008
    %1023 = vmatpush.bf16.msra.mxu0 %v1007
    %1024 = vmatpush.bf16.msra.mxu0 %v1006
    %1025 = vmatmul.bf16.gmra.mxu0 %v1015
    %v1026 = vpop.f32.mrf.mxu0
    %v1027 = vadd.f32 %v989, %v1026
    %v1028 = vpop.f32.mrf.mxu0
    %v1029 = vadd.f32 %v989, %v1028
    %1030 = vdwg.mxu0
    %v1031 = vadd.f32 %v167, %v1027
    %v1032 = vadd.f32 %v169, %v1029
    %v1033 = vsel %vm153, %v1031, 0.0
    %1034 = vadd.xlane.f32.xlu0 %v1033
    %v1035 = vpop.xlane.xlu0 %1034
    %v1036 = vsel %vm153, %v1032, 0.0
    %1037 = vadd.xlane.f32.xlu0 %v1036
    %v1038 = vpop.xlane.xlu0 %1037
    %v1039 = vrcp.pop 64.0
    %v1040 = vmul.f32 64.0, %v1039
    %v1041 = vsub.f32 1.0, %v1040
    %v1042 = vmul.f32 %v1039, %v1041
    %v1043 = vadd.f32 %v1039, %v1042
    %vm1044 = vweird.f32 %v1039
    %v1045 = vsel %vm1044, %v1039, %v1043
    %v1046 = vmul.f32 %v1035, %v1045
    %v1047 = vmul.f32 %v1038, %v1045
    %v1048 = vsub.f32 %v1031, %v1046
    %v1049 = vsub.f32 %v1032, %v1047
    %v1050 = vmul.f32 %v1048, %v1048
    %v1051 = vmul.f32 %v1049, %v1049
    %v1052 = vsel %vm153, %v1050, 0.0
    %1053 = vadd.xlane.f32.xlu0 %v1052
    %v1054 = vpop.xlane.xlu0 %1053
    %v1055 = vsel %vm153, %v1051, 0.0
    %1056 = vadd.xlane.f32.xlu0 %v1055
    %v1057 = vpop.xlane.xlu0 %1056
    %v1058 = vmul.f32 %v1054, %v1045
    %v1059 = vmul.f32 %v1057, %v1045
    %v1060 = vadd.f32 %v1058, 1e-05
    %v1061 = vadd.f32 %v1059, 1e-05
    %v1062 = vrsqrt.pop %v1060
    %v1063 = vmul.f32 %v1062, %v1060
    %v1064 = vmul.f32 %v1063, %v1062
    %v1065 = vmul.f32 0.5, %v1064
    %v1066 = vsub.f32 1.5, %v1065
    %v1067 = vmul.f32 %v1062, %v1066
    %vm1068 = vweird.f32 %v1060
    %vm1069 = vweird.f32 %v1062
    %vm1070 = vmor %vm1068, %vm1069
    %v1071 = vsel %vm1070, %v1062, %v1067
    %v1072 = vrsqrt.pop %v1061
    %v1073 = vmul.f32 %v1072, %v1061
    %v1074 = vmul.f32 %v1073, %v1072
    %v1075 = vmul.f32 0.5, %v1074
    %v1076 = vsub.f32 1.5, %v1075
    %v1077 = vmul.f32 %v1072, %v1076
    %vm1078 = vweird.f32 %v1061
    %vm1079 = vweird.f32 %v1072
    %vm1080 = vmor %vm1078, %vm1079
    %v1081 = vsel %vm1080, %v1072, %v1077
    %v1082 = vmul.f32 %v1048, %v1071
    %v1083 = vmul.f32 %v1049, %v1081
    %v1084 = vperm.slane %v171, 2
    %v1085 = vmul.f32 %v1082, %v1084
    %v1086 = vmul.f32 %v1083, %v1084
    %v1087 = vperm.slane %v171, 3
    %v1088 = vadd.f32 %v1085, %v1087
    %v1089 = vadd.f32 %v1086, %v1087
    %v1090 = vpack.c.bf16 %v1089, %v1088
    %v1091 = vld [vmem:[#allocation7] sm:$0xf]
    %v1092 = vld [vmem:[#allocation7 + $0x4] sm:$0xf]
    %v1093 = vld [vmem:[#allocation7 + $0x8] sm:$0xf]
    %v1094 = vld [vmem:[#allocation7 + $0xc] sm:$0xf]
    %v1095 = vld [vmem:[#allocation7 + $0x10] sm:$0xf]
    %v1096 = vld [vmem:[#allocation7 + $0x14] sm:$0xf]
    %v1097 = vld [vmem:[#allocation7 + $0x18] sm:$0xf]
    %v1098 = vld [vmem:[#allocation7 + $0x1c] sm:$0xf]
    %v1099 = vperm.slane %v171, 4
    %v1108 = vunpack.c.l.b16 %v1091
    %v1109 = vunpack.c.l.b16 %v1092
    %v1110 = vunpack.c.l.b16 %v1093
    %v1111 = vunpack.c.l.b16 %v1094
    %v1112 = vunpack.c.l.b16 %v1095
    %v1113 = vunpack.c.l.b16 %v1096
    %v1114 = vunpack.c.l.b16 %v1097
    %v1115 = vunpack.c.l.b16 %v1098
    %v1116 = vpack.c.b16 %v1109, %v1108
    %v1117 = vpack.c.b16 %v1111, %v1110
    %v1118 = vpack.c.b16 %v1113, %v1112
    %v1119 = vpack.c.b16 %v1115, %v1114
    %v1125 = vsel %vm153, %v1090, 0
    %1127 = vmatpush.bf16.msra.mxu0 0
    %1128 = vmatpush.bf16.msra.mxu0 0
    %1129 = vmatpush.bf16.msra.mxu0 0
    %1130 = vmatpush.bf16.msra.mxu0 0
    %1131 = vmatpush.bf16.msra.mxu0 %v1119
    %1132 = vmatpush.bf16.msra.mxu0 %v1118
    %1133 = vmatpush.bf16.msra.mxu0 %v1117
    %1134 = vmatpush.bf16.msra.mxu0 %v1116
    %1135 = vmatmul.bf16.gmra.mxu0 %v1125
    %v1136 = vpop.f32.mrf.mxu0
    %v1137 = vadd.f32 %v1099, %v1136
    %v1138 = vpop.f32.mrf.mxu0
    %v1139 = vadd.f32 %v1099, %v1138
    %1140 = vdwg.mxu0
    %v1141 = vmax.f32 %v1137, 0.0
    %v1142 = vmax.f32 %v1139, 0.0
    %v1143 = vpack.c.bf16 %v1142, %v1141
    %v1144 = vld [vmem:[%s5] sm:$0xf]
    %v1145 = vld [vmem:[%s5 + $0x4] sm:$0xf]
    %v1146 = vld [vmem:[%s5 + $0x8] sm:$0xf]
    %v1147 = vld [vmem:[%s5 + $0xc] sm:$0xf]
    %v1148 = vld [vmem:[%s5 + $0x10] sm:$0xf]
    %v1149 = vld [vmem:[%s5 + $0x14] sm:$0xf]
    %v1150 = vld [vmem:[%s5 + $0x18] sm:$0xf]
    %v1151 = vld [vmem:[%s5 + $0x1c] sm:$0xf]
    %v1152 = vld [vmem:[%s5 + $0x20] sm:$0xf]
    %v1153 = vld [vmem:[%s5 + $0x24] sm:$0xf]
    %v1154 = vld [vmem:[%s5 + $0x28] sm:$0xf]
    %v1155 = vld [vmem:[%s5 + $0x2c] sm:$0xf]
    %v1156 = vld [vmem:[%s5 + $0x30] sm:$0xf]
    %v1157 = vld [vmem:[%s5 + $0x34] sm:$0xf]
    %v1158 = vld [vmem:[%s5 + $0x38] sm:$0xf]
    %v1159 = vld [vmem:[%s5 + $0x3c] sm:$0xf]
    %v1160 = vperm.slane %v171, 5
    %v1177 = vunpack.c.l.b16 %v1144
    %v1178 = vunpack.c.l.b16 %v1145
    %v1179 = vunpack.c.l.b16 %v1146
    %v1180 = vunpack.c.l.b16 %v1147
    %v1181 = vunpack.c.l.b16 %v1148
    %v1182 = vunpack.c.l.b16 %v1149
    %v1183 = vunpack.c.l.b16 %v1150
    %v1184 = vunpack.c.l.b16 %v1151
    %v1185 = vunpack.c.l.b16 %v1152
    %v1186 = vunpack.c.l.b16 %v1153
    %v1187 = vunpack.c.l.b16 %v1154
    %v1188 = vunpack.c.l.b16 %v1155
    %v1189 = vunpack.c.l.b16 %v1156
    %v1190 = vunpack.c.l.b16 %v1157
    %v1191 = vunpack.c.l.b16 %v1158
    %v1192 = vunpack.c.l.b16 %v1159
    %v1193 = vpack.c.b16 %v1178, %v1177
    %v1194 = vpack.c.b16 %v1180, %v1179
    %v1195 = vpack.c.b16 %v1182, %v1181
    %v1196 = vpack.c.b16 %v1184, %v1183
    %v1197 = vpack.c.b16 %v1186, %v1185
    %v1198 = vpack.c.b16 %v1188, %v1187
    %v1199 = vpack.c.b16 %v1190, %v1189
    %v1200 = vpack.c.b16 %v1192, %v1191
    %1209 = vmatpush.bf16.msra.mxu0 %v1200
    %1210 = vmatpush.bf16.msra.mxu0 %v1199
    %1211 = vmatpush.bf16.msra.mxu0 %v1198
    %1212 = vmatpush.bf16.msra.mxu0 %v1197
    %1213 = vmatpush.bf16.msra.mxu0 %v1196
    %1214 = vmatpush.bf16.msra.mxu0 %v1195
    %1215 = vmatpush.bf16.msra.mxu0 %v1194
    %1216 = vmatpush.bf16.msra.mxu0 %v1193
    %1217 = vmatmul.bf16.gmra.mxu0 %v1143
    %v1218 = vpop.f32.mrf.mxu0
    %v1219 = vadd.f32 %v1160, %v1218
    %v1220 = vpop.f32.mrf.mxu0
    %v1221 = vadd.f32 %v1160, %v1220
    %1222 = vdwg.mxu0
    %v1223 = vadd.f32 %v1088, %v1219
    %v1224 = vadd.f32 %v1089, %v1221
    %v1225 = vsel %vm153, %v1223, 0.0
    %1226 = vadd.xlane.f32.xlu0 %v1225
    %v1227 = vpop.xlane.xlu0 %1226
    %v1228 = vsel %vm153, %v1224, 0.0
    %1229 = vadd.xlane.f32.xlu0 %v1228
    %v1230 = vpop.xlane.xlu0 %1229
    %v1231 = vmul.f32 %v1227, %v1045
    %v1232 = vmul.f32 %v1230, %v1045
    %v1233 = vsub.f32 %v1223, %v1231
    %v1234 = vsub.f32 %v1224, %v1232
    %v1235 = vmul.f32 %v1233, %v1233
    %v1236 = vmul.f32 %v1234, %v1234
    %v1237 = vsel %vm153, %v1235, 0.0
    %1238 = vadd.xlane.f32.xlu0 %v1237
    %v1239 = vpop.xlane.xlu0 %1238
    %v1240 = vsel %vm153, %v1236, 0.0
    %1241 = vadd.xlane.f32.xlu0 %v1240
    %v1242 = vpop.xlane.xlu0 %1241
    %v1243 = vmul.f32 %v1239, %v1045
    %v1244 = vmul.f32 %v1242, %v1045
    %v1245 = vadd.f32 %v1243, 1e-05
    %v1246 = vadd.f32 %v1244, 1e-05
    %v1247 = vrsqrt.pop %v1245
    %v1248 = vmul.f32 %v1247, %v1245
    %v1249 = vmul.f32 %v1248, %v1247
    %v1250 = vmul.f32 0.5, %v1249
    %v1251 = vsub.f32 1.5, %v1250
    %v1252 = vmul.f32 %v1247, %v1251
    %vm1253 = vweird.f32 %v1245
    %vm1254 = vweird.f32 %v1247
    %vm1255 = vmor %vm1253, %vm1254
    %v1256 = vsel %vm1255, %v1247, %v1252
    %v1257 = vrsqrt.pop %v1246
    %v1258 = vmul.f32 %v1257, %v1246
    %v1259 = vmul.f32 %v1258, %v1257
    %v1260 = vmul.f32 0.5, %v1259
    %v1261 = vsub.f32 1.5, %v1260
    %v1262 = vmul.f32 %v1257, %v1261
    %vm1263 = vweird.f32 %v1246
    %vm1264 = vweird.f32 %v1257
    %vm1265 = vmor %vm1263, %vm1264
    %v1266 = vsel %vm1265, %v1257, %v1262
    %v1267 = vmul.f32 %v1233, %v1256
    %v1268 = vmul.f32 %v1234, %v1266
    %v1269 = vperm.slane %v171, 6
    %v1270 = vmul.f32 %v1267, %v1269
    %v1271 = vmul.f32 %v1268, %v1269
    %v1272 = vperm.slane %v171, 7
    %v1273 = vadd.f32 %v1270, %v1272
    %v1274 = vadd.f32 %v1271, %v1272
    %s1275 = scalar_lea.vmem [#allocation10], 16
    %v1276 = vld [vmem:[%s1275] sm:$0xff]
    %v1277 = vld [vmem:[%s1275 + $0x8] sm:$0xff]
    %v1278 = vpack.c.bf16 %v1274, %v1273
    %s1279 = scalar_lea.vmem %s2, 64
    %v1280 = vld [vmem:[%s1279] sm:$0xff]
    %v1281 = vld [vmem:[%s1279 + $0x8] sm:$0xff]
    %v1282 = vld [vmem:[%s1279 + $0x10] sm:$0xff]
    %v1283 = vld [vmem:[%s1279 + $0x18] sm:$0xff]
    %v1284 = vld [vmem:[%s1279 + $0x20] sm:$0xff]
    %v1285 = vld [vmem:[%s1279 + $0x28] sm:$0xff]
    %v1286 = vld [vmem:[%s1279 + $0x30] sm:$0xff]
    %v1287 = vld [vmem:[%s1279 + $0x38] sm:$0xff]
    %v1288 = vperm.slane %v1276, 0
    %v1289 = vperm.slane %v1277, 0
    %v1298 = vunpack.c.l.b16 %v1280
    %v1299 = vunpack.c.h.b16 %v1280
    %v1300 = vunpack.c.l.b16 %v1281
    %v1301 = vunpack.c.h.b16 %v1281
    %v1302 = vunpack.c.l.b16 %v1282
    %v1303 = vunpack.c.h.b16 %v1282
    %v1304 = vunpack.c.l.b16 %v1283
    %v1305 = vunpack.c.h.b16 %v1283
    %v1306 = vunpack.c.l.b16 %v1284
    %v1307 = vunpack.c.h.b16 %v1284
    %v1308 = vunpack.c.l.b16 %v1285
    %v1309 = vunpack.c.h.b16 %v1285
    %v1310 = vunpack.c.l.b16 %v1286
    %v1311 = vunpack.c.h.b16 %v1286
    %v1312 = vunpack.c.l.b16 %v1287
    %v1313 = vunpack.c.h.b16 %v1287
    %v1314 = vpack.c.b16 %v1300, %v1298
    %v1315 = vpack.c.b16 %v1301, %v1299
    %v1316 = vpack.c.b16 %v1304, %v1302
    %v1317 = vpack.c.b16 %v1305, %v1303
    %v1318 = vpack.c.b16 %v1308, %v1306
    %v1319 = vpack.c.b16 %v1309, %v1307
    %v1320 = vpack.c.b16 %v1312, %v1310
    %v1321 = vpack.c.b16 %v1313, %v1311
    %v1331 = vsel %vm153, %v1278, 0
    %1333 = vmatpush.bf16.msra.mxu0 0
    %1334 = vmatpush.bf16.msra.mxu0 0
    %1335 = vmatpush.bf16.msra.mxu0 0
    %1336 = vmatpush.bf16.msra.mxu0 0
    %1337 = vmatpush.bf16.msra.mxu0 %v1320
    %1338 = vmatpush.bf16.msra.mxu0 %v1318
    %1339 = vmatpush.bf16.msra.mxu0 %v1316
    %1340 = vmatpush.bf16.msra.mxu0 %v1314
    %1341 = vmatmul.bf16.gmra.mxu0 %v1331
    %v1342 = vpop.f32.mrf.mxu0
    %v1343 = vadd.f32 %v1288, %v1342
    %v1344 = vpop.f32.mrf.mxu0
    %v1345 = vadd.f32 %v1288, %v1344
    %1346 = vdwg.mxu0
    %1347 = vmatpush.bf16.msra.mxu0 0
    %1348 = vmatpush.bf16.msra.mxu0 0
    %1349 = vmatpush.bf16.msra.mxu0 0
    %1350 = vmatpush.bf16.msra.mxu0 0
    %1351 = vmatpush.bf16.msra.mxu0 %v1321
    %1352 = vmatpush.bf16.msra.mxu0 %v1319
    %1353 = vmatpush.bf16.msra.mxu0 %v1317
    %1354 = vmatpush.bf16.msra.mxu0 %v1315
    %1355 = vmatmul.bf16.gmra.mxu0 %v1331
    %v1356 = vpop.f32.mrf.mxu0
    %v1357 = vadd.f32 %v1289, %v1356
    %v1358 = vpop.f32.mrf.mxu0
    %v1359 = vadd.f32 %v1289, %v1358
    %1360 = vdwg.mxu0
    %1363 = vrot.lane.b32.xlu0 %v1343, 96
    %v1364 = vpop.permute.xlu0 %1363
    %1365 = vrot.lane.b32.xlu0 %v1345, 96
    %v1366 = vpop.permute.xlu0 %1365
    %1369 = vrot.lane.b32.xlu0 %v1343, 64
    %v1370 = vpop.permute.xlu0 %1369
    %1371 = vrot.lane.b32.xlu0 %v1345, 64
    %v1372 = vpop.permute.xlu0 %1371
    %1375 = vrot.lane.b32.xlu0 %v1343, 32
    %v1376 = vpop.permute.xlu0 %1375
    %1377 = vrot.lane.b32.xlu0 %v1345, 32
    %v1378 = vpop.permute.xlu0 %1377
    %1383 = vrot.lane.b32.xlu0 %v1357, 96
    %v1384 = vpop.permute.xlu0 %1383
    %1385 = vrot.lane.b32.xlu0 %v1359, 96
    %v1386 = vpop.permute.xlu0 %1385
    %v1389 = vrot.slane %v1370, 4
    %v1390 = vsel %vm284, %v1389, %v1343
    %v1391 = vrot.slane %v1343, 4
    %v1392 = vsel %vm284, %v1370, %v1391
    %v1394 = vunpack.c.l.s4 1983009808
    %v1395 = vunpack.c.0.s8 %v1394
    %v1396 = vperm.slane %v1390, %v1395
    %v1398 = vunpack.c.l.s4 1983009808
    %v1399 = vunpack.c.0.s8 %v1398
    %v1400 = vperm.slane %v1392, %v1399
    %v1401 = vrot.slane %v1376, 4
    %v1402 = vsel %vm284, %v1401, %v1364
    %v1403 = vrot.slane %v1364, 4
    %v1404 = vsel %vm284, %v1376, %v1403
    %v1406 = vunpack.c.l.s4 1983009808
    %v1407 = vunpack.c.0.s8 %v1406
    %v1408 = vperm.slane %v1402, %v1407
    %v1410 = vunpack.c.l.s4 1983009808
    %v1411 = vunpack.c.0.s8 %v1410
    %v1412 = vperm.slane %v1404, %v1411
    %v1413 = vrot.slane %v1357, 4
    %v1414 = vsel %vm284, 0.0, %v1413
    %v1416 = vunpack.c.l.s4 1983009808
    %v1417 = vunpack.c.0.s8 %v1416
    %v1418 = vperm.slane %v1357, %v1417
    %v1420 = vunpack.c.l.s4 1983009808
    %v1421 = vunpack.c.0.s8 %v1420
    %v1422 = vperm.slane %v1414, %v1421
    %v1423 = vrot.slane %v1384, 4
    %v1424 = vsel %vm284, 0.0, %v1423
    %v1426 = vunpack.c.l.s4 1983009808
    %v1427 = vunpack.c.0.s8 %v1426
    %v1428 = vperm.slane %v1384, %v1427
    %v1430 = vunpack.c.l.s4 1983009808
    %v1431 = vunpack.c.0.s8 %v1430
    %v1432 = vperm.slane %v1424, %v1431
    %v1433 = vrot.slane %v1408, 4
    %v1434 = vsel %vm284, %v1433, %v1396
    %v1435 = vrot.slane %v1396, 4
    %v1436 = vsel %vm284, %v1408, %v1435
    %v1438 = vunpack.c.l.s4 1934713408
    %v1439 = vunpack.c.0.s8 %v1438
    %v1440 = vperm.slane %v1434, %v1439
    %v1442 = vunpack.c.l.s4 1934713408
    %v1443 = vunpack.c.0.s8 %v1442
    %v1444 = vperm.slane %v1436, %v1443
    %v1445 = vrot.slane %v1412, 4
    %v1446 = vsel %vm284, %v1445, %v1400
    %v1447 = vrot.slane %v1400, 4
    %v1448 = vsel %vm284, %v1412, %v1447
    %v1450 = vunpack.c.l.s4 1934713408
    %v1451 = vunpack.c.0.s8 %v1450
    %v1452 = vperm.slane %v1446, %v1451
    %v1454 = vunpack.c.l.s4 1934713408
    %v1455 = vunpack.c.0.s8 %v1454
    %v1456 = vperm.slane %v1448, %v1455
    %v1457 = vrot.slane %v1428, 4
    %v1458 = vsel %vm284, %v1457, %v1418
    %v1459 = vrot.slane %v1418, 4
    %v1460 = vsel %vm284, %v1428, %v1459
    %v1462 = vunpack.c.l.s4 1934713408
    %v1463 = vunpack.c.0.s8 %v1462
    %v1464 = vperm.slane %v1458, %v1463
    %v1466 = vunpack.c.l.s4 1934713408
    %v1467 = vunpack.c.0.s8 %v1466
    %v1468 = vperm.slane %v1460, %v1467
    %v1469 = vrot.slane %v1432, 4
    %v1470 = vsel %vm284, %v1469, %v1422
    %v1471 = vrot.slane %v1422, 4
    %v1472 = vsel %vm284, %v1432, %v1471
    %v1474 = vunpack.c.l.s4 1934713408
    %v1475 = vunpack.c.0.s8 %v1474
    %v1476 = vperm.slane %v1470, %v1475
    %v1478 = vunpack.c.l.s4 1934713408
    %v1479 = vunpack.c.0.s8 %v1478
    %v1480 = vperm.slane %v1472, %v1479
    %v1481 = vrot.slane %v1464, 4
    %v1482 = vsel %vm284, %v1481, %v1440
    %v1483 = vrot.slane %v1440, 4
    %v1484 = vsel %vm284, %v1464, %v1483
    %v1485 = vrot.slane %v1468, 4
    %v1486 = vsel %vm284, %v1485, %v1444
    %v1487 = vrot.slane %v1444, 4
    %v1488 = vsel %vm284, %v1468, %v1487
    %v1489 = vrot.slane %v1476, 4
    %v1490 = vsel %vm284, %v1489, %v1452
    %v1491 = vrot.slane %v1452, 4
    %v1492 = vsel %vm284, %v1476, %v1491
    %v1493 = vrot.slane %v1480, 4
    %v1494 = vsel %vm284, %v1493, %v1456
    %v1495 = vrot.slane %v1456, 4
    %v1496 = vsel %vm284, %v1480, %v1495
    %v1497 = vrot.slane %v1372, 4
    %v1498 = vsel %vm284, %v1497, %v1345
    %v1499 = vrot.slane %v1345, 4
    %v1500 = vsel %vm284, %v1372, %v1499
    %v1502 = vunpack.c.l.s4 1983009808
    %v1503 = vunpack.c.0.s8 %v1502
    %v1504 = vperm.slane %v1498, %v1503
    %v1506 = vunpack.c.l.s4 1983009808
    %v1507 = vunpack.c.0.s8 %v1506
    %v1508 = vperm.slane %v1500, %v1507
    %v1509 = vrot.slane %v1378, 4
    %v1510 = vsel %vm284, %v1509, %v1366
    %v1511 = vrot.slane %v1366, 4
    %v1512 = vsel %vm284, %v1378, %v1511
    %v1514 = vunpack.c.l.s4 1983009808
    %v1515 = vunpack.c.0.s8 %v1514
    %v1516 = vperm.slane %v1510, %v1515
    %v1518 = vunpack.c.l.s4 1983009808
    %v1519 = vunpack.c.0.s8 %v1518
    %v1520 = vperm.slane %v1512, %v1519
    %v1521 = vrot.slane %v1359, 4
    %v1522 = vsel %vm284, 0.0, %v1521
    %v1524 = vunpack.c.l.s4 1983009808
    %v1525 = vunpack.c.0.s8 %v1524
    %v1526 = vperm.slane %v1359, %v1525
    %v1528 = vunpack.c.l.s4 1983009808
    %v1529 = vunpack.c.0.s8 %v1528
    %v1530 = vperm.slane %v1522, %v1529
    %v1531 = vrot.slane %v1386, 4
    %v1532 = vsel %vm284, 0.0, %v1531
    %v1534 = vunpack.c.l.s4 1983009808
    %v1535 = vunpack.c.0.s8 %v1534
    %v1536 = vperm.slane %v1386, %v1535
    %v1538 = vunpack.c.l.s4 1983009808
    %v1539 = vunpack.c.0.s8 %v1538
    %v1540 = vperm.slane %v1532, %v1539
    %v1541 = vrot.slane %v1516, 4
    %v1542 = vsel %vm284, %v1541, %v1504
    %v1543 = vrot.slane %v1504, 4
    %v1544 = vsel %vm284, %v1516, %v1543
    %v1546 = vunpack.c.l.s4 1934713408
    %v1547 = vunpack.c.0.s8 %v1546
    %v1548 = vperm.slane %v1542, %v1547
    %v1550 = vunpack.c.l.s4 1934713408
    %v1551 = vunpack.c.0.s8 %v1550
    %v1552 = vperm.slane %v1544, %v1551
    %v1553 = vrot.slane %v1520, 4
    %v1554 = vsel %vm284, %v1553, %v1508
    %v1555 = vrot.slane %v1508, 4
    %v1556 = vsel %vm284, %v1520, %v1555
    %v1558 = vunpack.c.l.s4 1934713408
    %v1559 = vunpack.c.0.s8 %v1558
    %v1560 = vperm.slane %v1554, %v1559
    %v1562 = vunpack.c.l.s4 1934713408
    %v1563 = vunpack.c.0.s8 %v1562
    %v1564 = vperm.slane %v1556, %v1563
    %v1565 = vrot.slane %v1536, 4
    %v1566 = vsel %vm284, %v1565, %v1526
    %v1567 = vrot.slane %v1526, 4
    %v1568 = vsel %vm284, %v1536, %v1567
    %v1570 = vunpack.c.l.s4 1934713408
    %v1571 = vunpack.c.0.s8 %v1570
    %v1572 = vperm.slane %v1566, %v1571
    %v1574 = vunpack.c.l.s4 1934713408
    %v1575 = vunpack.c.0.s8 %v1574
    %v1576 = vperm.slane %v1568, %v1575
    %v1577 = vrot.slane %v1540, 4
    %v1578 = vsel %vm284, %v1577, %v1530
    %v1579 = vrot.slane %v1530, 4
    %v1580 = vsel %vm284, %v1540, %v1579
    %v1582 = vunpack.c.l.s4 1934713408
    %v1583 = vunpack.c.0.s8 %v1582
    %v1584 = vperm.slane %v1578, %v1583
    %v1586 = vunpack.c.l.s4 1934713408
    %v1587 = vunpack.c.0.s8 %v1586
    %v1588 = vperm.slane %v1580, %v1587
    %v1589 = vrot.slane %v1572, 4
    %v1590 = vsel %vm284, %v1589, %v1548
    %v1591 = vrot.slane %v1548, 4
    %v1592 = vsel %vm284, %v1572, %v1591
    %v1593 = vrot.slane %v1576, 4
    %v1594 = vsel %vm284, %v1593, %v1552
    %v1595 = vrot.slane %v1552, 4
    %v1596 = vsel %vm284, %v1576, %v1595
    %v1597 = vrot.slane %v1584, 4
    %v1598 = vsel %vm284, %v1597, %v1560
    %v1599 = vrot.slane %v1560, 4
    %v1600 = vsel %vm284, %v1584, %v1599
    %v1601 = vrot.slane %v1588, 4
    %v1602 = vsel %vm284, %v1601, %v1564
    %v1603 = vrot.slane %v1564, 4
    %v1604 = vsel %vm284, %v1588, %v1603
    %v1605 = vpack.c.bf16 %v1482, %v1482
    %v1606 = vpack.c.bf16 %v1484, %v1484
    %v1607 = vpack.c.bf16 %v1486, %v1486
    %v1608 = vpack.c.bf16 %v1488, %v1488
    %v1609 = vpack.c.bf16 %v1490, %v1490
    %v1610 = vpack.c.bf16 %v1492, %v1492
    %v1611 = vpack.c.bf16 %v1494, %v1494
    %v1612 = vpack.c.bf16 %v1496, %v1496
    %v1613 = vpack.c.bf16 %v1590, %v1590
    %v1614 = vpack.c.bf16 %v1592, %v1592
    %v1615 = vpack.c.bf16 %v1594, %v1594
    %v1616 = vpack.c.bf16 %v1596, %v1596
    %v1617 = vpack.c.bf16 %v1598, %v1598
    %v1618 = vpack.c.bf16 %v1600, %v1600
    %v1619 = vpack.c.bf16 %v1602, %v1602
    %v1620 = vpack.c.bf16 %v1604, %v1604
    %v1629 = vunpack.c.l.b16 %v1605
    %v1630 = vunpack.c.l.b16 %v1606
    %v1631 = vunpack.c.l.b16 %v1607
    %v1632 = vunpack.c.l.b16 %v1608
    %v1633 = vunpack.c.l.b16 %v1609
    %v1634 = vunpack.c.l.b16 %v1610
    %v1635 = vunpack.c.l.b16 %v1611
    %v1636 = vunpack.c.l.b16 %v1612
    %v1637 = vpack.c.b16 %v1629, %v1629
    %v1638 = vpack.c.b16 %v1630, %v1630
    %v1639 = vpack.c.b16 %v1631, %v1631
    %v1640 = vpack.c.b16 %v1632, %v1632
    %v1641 = vpack.c.b16 %v1633, %v1633
    %v1642 = vpack.c.b16 %v1634, %v1634
    %v1643 = vpack.c.b16 %v1635, %v1635
    %v1644 = vpack.c.b16 %v1636, %v1636
    %v1645 = vunpack.c.l.b16 %v1637
    %v1646 = vunpack.c.l.b16 %v1638
    %v1647 = vunpack.c.l.b16 %v1639
    %v1648 = vunpack.c.l.b16 %v1640
    %v1649 = vunpack.c.l.b16 %v1641
    %v1650 = vunpack.c.l.b16 %v1642
    %v1651 = vunpack.c.l.b16 %v1643
    %v1652 = vunpack.c.l.b16 %v1644
    %v1653 = vrot.slane %v1646, 7
    %v1654 = vsel %vm549, %v1653, %v1645
    %v1655 = vrot.slane %v1647, 6
    %v1656 = vsel %vm552, %v1655, %v1654
    %v1657 = vrot.slane %v1648, 5
    %v1658 = vsel %vm555, %v1657, %v1656
    %v1659 = vrot.slane %v1649, 4
    %v1660 = vsel %vm558, %v1659, %v1658
    %v1661 = vrot.slane %v1650, 3
    %v1662 = vsel %vm561, %v1661, %v1660
    %v1663 = vrot.slane %v1651, 2
    %v1664 = vsel %vm564, %v1663, %v1662
    %v1665 = vrot.slane %v1652, 1
    %v1666 = vsel %vm567, %v1665, %v1664
    %v1667 = vpack.c.b16 %v1666, %v1666
    %v1668 = vrot.slane %v1645, 2
    %v1669 = vrot.slane %v1646, 1
    %v1670 = vsel %vm549, %v1669, %v1668
    %v1671 = vsel %vm552, %v1647, %v1670
    %v1672 = vrot.slane %v1648, 7
    %v1673 = vsel %vm555, %v1672, %v1671
    %v1674 = vrot.slane %v1649, 6
    %v1675 = vsel %vm558, %v1674, %v1673
    %v1676 = vrot.slane %v1650, 5
    %v1677 = vsel %vm561, %v1676, %v1675
    %v1678 = vrot.slane %v1651, 4
    %v1679 = vsel %vm564, %v1678, %v1677
    %v1680 = vrot.slane %v1652, 3
    %v1681 = vsel %vm567, %v1680, %v1679
    %v1682 = vpack.c.b16 %v1681, %v1681
    %v1684 = vsel %vm585, %v1667, 0
    %v1687 = vsel %vm585, %v1682, 0
    %1689 = vmatpush.bf16.xpose.msra.mxu0 0
    %1690 = vmatpush.bf16.xpose.msra.mxu0 0
    %1691 = vmatpush.bf16.xpose.msra.mxu0 0
    %1692 = vmatpush.bf16.xpose.msra.mxu0 0
    %1693 = vmatpush.bf16.xpose.msra.mxu0 0
    %1694 = vmatpush.bf16.xpose.msra.mxu0 0
    %1695 = vmatpush.bf16.xpose.msra.mxu0 0
    %1696 = vmatpush.bf16.xpose.msra.mxu0 %v1687
    %1697 = vmatmul.bf16.gmra.mxu0 %v1684
    %v1698 = vpop.f32.mrf.mxu0
    %v1699 = vadd.f32 0.0, %v1698
    %v1700 = vpop.f32.mrf.mxu0
    %1701 = vdwg.mxu0
    %v1710 = vunpack.c.l.b16 %v1613
    %v1711 = vunpack.c.l.b16 %v1614
    %v1712 = vunpack.c.l.b16 %v1615
    %v1713 = vunpack.c.l.b16 %v1616
    %v1714 = vunpack.c.l.b16 %v1617
    %v1715 = vunpack.c.l.b16 %v1618
    %v1716 = vunpack.c.l.b16 %v1619
    %v1717 = vunpack.c.l.b16 %v1620
    %v1718 = vpack.c.b16 %v1710, %v1710
    %v1719 = vpack.c.b16 %v1711, %v1711
    %v1720 = vpack.c.b16 %v1712, %v1712
    %v1721 = vpack.c.b16 %v1713, %v1713
    %v1722 = vpack.c.b16 %v1714, %v1714
    %v1723 = vpack.c.b16 %v1715, %v1715
    %v1724 = vpack.c.b16 %v1716, %v1716
    %v1725 = vpack.c.b16 %v1717, %v1717
    %v1726 = vunpack.c.l.b16 %v1718
    %v1727 = vunpack.c.l.b16 %v1719
    %v1728 = vunpack.c.l.b16 %v1720
    %v1729 = vunpack.c.l.b16 %v1721
    %v1730 = vunpack.c.l.b16 %v1722
    %v1731 = vunpack.c.l.b16 %v1723
    %v1732 = vunpack.c.l.b16 %v1724
    %v1733 = vunpack.c.l.b16 %v1725
    %v1734 = vrot.slane %v1727, 7
    %v1735 = vsel %vm549, %v1734, %v1726
    %v1736 = vrot.slane %v1728, 6
    %v1737 = vsel %vm552, %v1736, %v1735
    %v1738 = vrot.slane %v1729, 5
    %v1739 = vsel %vm555, %v1738, %v1737
    %v1740 = vrot.slane %v1730, 4
    %v1741 = vsel %vm558, %v1740, %v1739
    %v1742 = vrot.slane %v1731, 3
    %v1743 = vsel %vm561, %v1742, %v1741
    %v1744 = vrot.slane %v1732, 2
    %v1745 = vsel %vm564, %v1744, %v1743
    %v1746 = vrot.slane %v1733, 1
    %v1747 = vsel %vm567, %v1746, %v1745
    %v1748 = vpack.c.b16 %v1747, %v1747
    %v1749 = vrot.slane %v1726, 2
    %v1750 = vrot.slane %v1727, 1
    %v1751 = vsel %vm549, %v1750, %v1749
    %v1752 = vsel %vm552, %v1728, %v1751
    %v1753 = vrot.slane %v1729, 7
    %v1754 = vsel %vm555, %v1753, %v1752
    %v1755 = vrot.slane %v1730, 6
    %v1756 = vsel %vm558, %v1755, %v1754
    %v1757 = vrot.slane %v1731, 5
    %v1758 = vsel %vm561, %v1757, %v1756
    %v1759 = vrot.slane %v1732, 4
    %v1760 = vsel %vm564, %v1759, %v1758
    %v1761 = vrot.slane %v1733, 3
    %v1762 = vsel %vm567, %v1761, %v1760
    %v1763 = vpack.c.b16 %v1762, %v1762
    %v1765 = vsel %vm585, %v1748, 0
    %v1768 = vsel %vm585, %v1763, 0
    %1770 = vmatpush.bf16.xpose.msra.mxu0 0
    %1771 = vmatpush.bf16.xpose.msra.mxu0 0
    %1772 = vmatpush.bf16.xpose.msra.mxu0 0
    %1773 = vmatpush.bf16.xpose.msra.mxu0 0
    %1774 = vmatpush.bf16.xpose.msra.mxu0 0
    %1775 = vmatpush.bf16.xpose.msra.mxu0 0
    %1776 = vmatpush.bf16.xpose.msra.mxu0 0
    %1777 = vmatpush.bf16.xpose.msra.mxu0 %v1768
    %1778 = vmatmul.bf16.gmra.mxu0 %v1765
    %v1779 = vpop.f32.mrf.mxu0
    %v1780 = vadd.f32 0.0, %v1779
    %v1781 = vpop.f32.mrf.mxu0
    %1782 = vdwg.mxu0
    %v1783 = vsel %vm686, %v1699, -inf
    %1784 = vmax.xlane.f32.xlu0 %v1783
    %v1785 = vpop.xlane.xlu0 %1784
    %v1786 = vsel %vm686, %v1780, -inf
    %1787 = vmax.xlane.f32.xlu0 %v1786
    %v1788 = vpop.xlane.xlu0 %1787
    %v1789 = vsub.f32 %v1699, %v1785
    %v1790 = vsub.f32 %v1780, %v1788
    %v1791 = vmul.f32 %v1789, 1.442695
    %v1792 = vpow.pop %v1791
    %v1793 = vmul.f32 %v1790, 1.442695
    %v1794 = vpow.pop %v1793
    %v1795 = vsel %vm686, %v1792, 0.0
    %1796 = vadd.xlane.f32.xlu0 %v1795
    %v1797 = vpop.xlane.xlu0 %1796
    %v1798 = vsel %vm686, %v1794, 0.0
    %1799 = vadd.xlane.f32.xlu0 %v1798
    %v1800 = vpop.xlane.xlu0 %1799
    %v1801 = vrcp.pop %v1797
    %v1802 = vrcp.pop %v1800
    %v1803 = vmul.f32 %v1792, %v1801
    %v1804 = vmul.f32 %v1794, %v1802
    %v1805 = vpack.c.bf16 %v1803, %v1803
    %v1806 = vpack.c.bf16 %v1804, %v1804
    %v1807 = vrot.slane %v1645, 4
    %v1808 = vrot.slane %v1646, 3
    %v1809 = vsel %vm549, %v1808, %v1807
    %v1810 = vrot.slane %v1647, 2
    %v1811 = vsel %vm552, %v1810, %v1809
    %v1812 = vrot.slane %v1648, 1
    %v1813 = vsel %vm555, %v1812, %v1811
    %v1814 = vsel %vm558, %v1649, %v1813
    %v1815 = vrot.slane %v1650, 7
    %v1816 = vsel %vm561, %v1815, %v1814
    %v1817 = vrot.slane %v1651, 6
    %v1818 = vsel %vm564, %v1817, %v1816
    %v1819 = vrot.slane %v1652, 5
    %v1820 = vsel %vm567, %v1819, %v1818
    %v1821 = vpack.c.b16 %v1820, %v1820
    %v1823 = vsel %vm686, %v1805, 0
    %v1826 = vsel %vm729, %v1821, 0
    %1828 = vmatpush.bf16.msra.mxu0 0
    %1829 = vmatpush.bf16.msra.mxu0 0
    %1830 = vmatpush.bf16.msra.mxu0 0
    %1831 = vmatpush.bf16.msra.mxu0 0
    %1832 = vmatpush.bf16.msra.mxu0 0
    %1833 = vmatpush.bf16.msra.mxu0 0
    %1834 = vmatpush.bf16.msra.mxu0 0
    %1835 = vmatpush.bf16.msra.mxu0 %v1826
    %1836 = vmatmul.bf16.gmra.mxu0 %v1823
    %v1837 = vpop.f32.mrf.mxu0
    %v1838 = vadd.f32 0.0, %v1837
    %v1839 = vpop.f32.mrf.mxu0
    %1840 = vdwg.mxu0
    %v1841 = vrot.slane %v1726, 4
    %v1842 = vrot.slane %v1727, 3
    %v1843 = vsel %vm549, %v1842, %v1841
    %v1844 = vrot.slane %v1728, 2
    %v1845 = vsel %vm552, %v1844, %v1843
    %v1846 = vrot.slane %v1729, 1
    %v1847 = vsel %vm555, %v1846, %v1845
    %v1848 = vsel %vm558, %v1730, %v1847
    %v1849 = vrot.slane %v1731, 7
    %v1850 = vsel %vm561, %v1849, %v1848
    %v1851 = vrot.slane %v1732, 6
    %v1852 = vsel %vm564, %v1851, %v1850
    %v1853 = vrot.slane %v1733, 5
    %v1854 = vsel %vm567, %v1853, %v1852
    %v1855 = vpack.c.b16 %v1854, %v1854
    %v1857 = vsel %vm686, %v1806, 0
    %v1860 = vsel %vm729, %v1855, 0
    %1862 = vmatpush.bf16.msra.mxu0 0
    %1863 = vmatpush.bf16.msra.mxu0 0
    %1864 = vmatpush.bf16.msra.mxu0 0
    %1865 = vmatpush.bf16.msra.mxu0 0
    %1866 = vmatpush.bf16.msra.mxu0 0
    %1867 = vmatpush.bf16.msra.mxu0 0
    %1868 = vmatpush.bf16.msra.mxu0 0
    %1869 = vmatpush.bf16.msra.mxu0 %v1860
    %1870 = vmatmul.bf16.gmra.mxu0 %v1857
    %v1871 = vpop.f32.mrf.mxu0
    %v1872 = vadd.f32 0.0, %v1871
    %v1873 = vpop.f32.mrf.mxu0
    %1874 = vdwg.mxu0
    %v1875 = vrot.slane %v1645, 1
    %v1876 = vsel %vm549, %v1646, %v1875
    %v1877 = vrot.slane %v1647, 7
    %v1878 = vsel %vm552, %v1877, %v1876
    %v1879 = vrot.slane %v1648, 6
    %v1880 = vsel %vm555, %v1879, %v1878
    %v1881 = vrot.slane %v1649, 5
    %v1882 = vsel %vm558, %v1881, %v1880
    %v1883 = vrot.slane %v1650, 4
    %v1884 = vsel %vm561, %v1883, %v1882
    %v1885 = vrot.slane %v1651, 3
    %v1886 = vsel %vm564, %v1885, %v1884
    %v1887 = vrot.slane %v1652, 2
    %v1888 = vsel %vm567, %v1887, %v1886
    %v1889 = vpack.c.b16 %v1888, %v1888
    %v1890 = vrot.slane %v1645, 3
    %v1891 = vrot.slane %v1646, 2
    %v1892 = vsel %vm549, %v1891, %v1890
    %v1893 = vrot.slane %v1647, 1
    %v1894 = vsel %vm552, %v1893, %v1892
    %v1895 = vsel %vm555, %v1648, %v1894
    %v1896 = vrot.slane %v1649, 7
    %v1897 = vsel %vm558, %v1896, %v1895
    %v1898 = vrot.slane %v1650, 6
    %v1899 = vsel %vm561, %v1898, %v1897
    %v1900 = vrot.slane %v1651, 5
    %v1901 = vsel %vm564, %v1900, %v1899
    %v1902 = vrot.slane %v1652, 4
    %v1903 = vsel %vm567, %v1902, %v1901
    %v1904 = vpack.c.b16 %v1903, %v1903
    %v1906 = vsel %vm585, %v1889, 0
    %v1909 = vsel %vm585, %v1904, 0
    %1911 = vmatpush.bf16.xpose.msra.mxu0 0
    %1912 = vmatpush.bf16.xpose.msra.mxu0 0
    %1913 = vmatpush.bf16.xpose.msra.mxu0 0
    %1914 = vmatpush.bf16.xpose.msra.mxu0 0
    %1915 = vmatpush.bf16.xpose.msra.mxu0 0
    %1916 = vmatpush.bf16.xpose.msra.mxu0 0
    %1917 = vmatpush.bf16.xpose.msra.mxu0 0
    %1918 = vmatpush.bf16.xpose.msra.mxu0 %v1909
    %1919 = vmatmul.bf16.gmra.mxu0 %v1906
    %v1920 = vpop.f32.mrf.mxu0
    %v1921 = vadd.f32 0.0, %v1920
    %v1922 = vpop.f32.mrf.mxu0
    %1923 = vdwg.mxu0
    %v1924 = vrot.slane %v1726, 1
    %v1925 = vsel %vm549, %v1727, %v1924
    %v1926 = vrot.slane %v1728, 7
    %v1927 = vsel %vm552, %v1926, %v1925
    %v1928 = vrot.slane %v1729, 6
    %v1929 = vsel %vm555, %v1928, %v1927
    %v1930 = vrot.slane %v1730, 5
    %v1931 = vsel %vm558, %v1930, %v1929
    %v1932 = vrot.slane %v1731, 4
    %v1933 = vsel %vm561, %v1932, %v1931
    %v1934 = vrot.slane %v1732, 3
    %v1935 = vsel %vm564, %v1934, %v1933
    %v1936 = vrot.slane %v1733, 2
    %v1937 = vsel %vm567, %v1936, %v1935
    %v1938 = vpack.c.b16 %v1937, %v1937
    %v1939 = vrot.slane %v1726, 3
    %v1940 = vrot.slane %v1727, 2
    %v1941 = vsel %vm549, %v1940, %v1939
    %v1942 = vrot.slane %v1728, 1
    %v1943 = vsel %vm552, %v1942, %v1941
    %v1944 = vsel %vm555, %v1729, %v1943
    %v1945 = vrot.slane %v1730, 7
    %v1946 = vsel %vm558, %v1945, %v1944
    %v1947 = vrot.slane %v1731, 6
    %v1948 = vsel %vm561, %v1947, %v1946
    %v1949 = vrot.slane %v1732, 5
    %v1950 = vsel %vm564, %v1949, %v1948
    %v1951 = vrot.slane %v1733, 4
    %v1952 = vsel %vm567, %v1951, %v1950
    %v1953 = vpack.c.b16 %v1952, %v1952
    %v1955 = vsel %vm585, %v1938, 0
    %v1958 = vsel %vm585, %v1953, 0
    %1960 = vmatpush.bf16.xpose.msra.mxu0 0
    %1961 = vmatpush.bf16.xpose.msra.mxu0 0
    %1962 = vmatpush.bf16.xpose.msra.mxu0 0
    %1963 = vmatpush.bf16.xpose.msra.mxu0 0
    %1964 = vmatpush.bf16.xpose.msra.mxu0 0
    %1965 = vmatpush.bf16.xpose.msra.mxu0 0
    %1966 = vmatpush.bf16.xpose.msra.mxu0 0
    %1967 = vmatpush.bf16.xpose.msra.mxu0 %v1958
    %1968 = vmatmul.bf16.gmra.mxu0 %v1955
    %v1969 = vpop.f32.mrf.mxu0
    %v1970 = vadd.f32 0.0, %v1969
    %v1971 = vpop.f32.mrf.mxu0
    %1972 = vdwg.mxu0
    %v1973 = vsel %vm686, %v1921, -inf
    %1974 = vmax.xlane.f32.xlu0 %v1973
    %v1975 = vpop.xlane.xlu0 %1974
    %v1976 = vsel %vm686, %v1970, -inf
    %1977 = vmax.xlane.f32.xlu0 %v1976
    %v1978 = vpop.xlane.xlu0 %1977
    %v1979 = vsub.f32 %v1921, %v1975
    %v1980 = vsub.f32 %v1970, %v1978
    %v1981 = vmul.f32 %v1979, 1.442695
    %v1982 = vpow.pop %v1981
    %v1983 = vmul.f32 %v1980, 1.442695
    %v1984 = vpow.pop %v1983
    %v1985 = vsel %vm686, %v1982, 0.0
    %1986 = vadd.xlane.f32.xlu0 %v1985
    %v1987 = vpop.xlane.xlu0 %1986
    %v1988 = vsel %vm686, %v1984, 0.0
    %1989 = vadd.xlane.f32.xlu0 %v1988
    %v1990 = vpop.xlane.xlu0 %1989
    %v1991 = vrcp.pop %v1987
    %v1992 = vrcp.pop %v1990
    %v1993 = vmul.f32 %v1982, %v1991
    %v1994 = vmul.f32 %v1984, %v1992
    %v1995 = vpack.c.bf16 %v1993, %v1993
    %v1996 = vpack.c.bf16 %v1994, %v1994
    %v1997 = vrot.slane %v1645, 5
    %v1998 = vrot.slane %v1646, 4
    %v1999 = vsel %vm549, %v1998, %v1997
    %v2000 = vrot.slane %v1647, 3
    %v2001 = vsel %vm552, %v2000, %v1999
    %v2002 = vrot.slane %v1648, 2
    %v2003 = vsel %vm555, %v2002, %v2001
    %v2004 = vrot.slane %v1649, 1
    %v2005 = vsel %vm558, %v2004, %v2003
    %v2006 = vsel %vm561, %v1650, %v2005
    %v2007 = vrot.slane %v1651, 7
    %v2008 = vsel %vm564, %v2007, %v2006
    %v2009 = vrot.slane %v1652, 6
    %v2010 = vsel %vm567, %v2009, %v2008
    %v2011 = vpack.c.b16 %v2010, %v2010
    %v2013 = vsel %vm686, %v1995, 0
    %v2016 = vsel %vm729, %v2011, 0
    %2018 = vmatpush.bf16.msra.mxu0 0
    %2019 = vmatpush.bf16.msra.mxu0 0
    %2020 = vmatpush.bf16.msra.mxu0 0
    %2021 = vmatpush.bf16.msra.mxu0 0
    %2022 = vmatpush.bf16.msra.mxu0 0
    %2023 = vmatpush.bf16.msra.mxu0 0
    %2024 = vmatpush.bf16.msra.mxu0 0
    %2025 = vmatpush.bf16.msra.mxu0 %v2016
    %2026 = vmatmul.bf16.gmra.mxu0 %v2013
    %v2027 = vpop.f32.mrf.mxu0
    %v2028 = vadd.f32 0.0, %v2027
    %v2029 = vpop.f32.mrf.mxu0
    %2030 = vdwg.mxu0
    %v2031 = vrot.slane %v1726, 5
    %v2032 = vrot.slane %v1727, 4
    %v2033 = vsel %vm549, %v2032, %v2031
    %v2034 = vrot.slane %v1728, 3
    %v2035 = vsel %vm552, %v2034, %v2033
    %v2036 = vrot.slane %v1729, 2
    %v2037 = vsel %vm555, %v2036, %v2035
    %v2038 = vrot.slane %v1730, 1
    %v2039 = vsel %vm558, %v2038, %v2037
    %v2040 = vsel %vm561, %v1731, %v2039
    %v2041 = vrot.slane %v1732, 7
    %v2042 = vsel %vm564, %v2041, %v2040
    %v2043 = vrot.slane %v1733, 6
    %v2044 = vsel %vm567, %v2043, %v2042
    %v2045 = vpack.c.b16 %v2044, %v2044
    %v2047 = vsel %vm686, %v1996, 0
    %v2050 = vsel %vm729, %v2045, 0
    %2052 = vmatpush.bf16.msra.mxu0 0
    %2053 = vmatpush.bf16.msra.mxu0 0
    %2054 = vmatpush.bf16.msra.mxu0 0
    %2055 = vmatpush.bf16.msra.mxu0 0
    %2056 = vmatpush.bf16.msra.mxu0 0
    %2057 = vmatpush.bf16.msra.mxu0 0
    %2058 = vmatpush.bf16.msra.mxu0 0
    %2059 = vmatpush.bf16.msra.mxu0 %v2050
    %2060 = vmatmul.bf16.gmra.mxu0 %v2047
    %v2061 = vpop.f32.mrf.mxu0
    %v2062 = vadd.f32 0.0, %v2061
    %v2063 = vpop.f32.mrf.mxu0
    %2064 = vdwg.mxu0
    %2067 = vrot.lane.b32.xlu0 %v2028, 32
    %v2068 = vpop.permute.xlu0 %2067
    %2069 = vrot.lane.b32.xlu0 %v2062, 32
    %v2070 = vpop.permute.xlu0 %2069
    %v2073 = vsel %vm585, %v1838, %v2068
    %v2074 = vsel %vm585, %v1872, %v2070
    %v2075 = vpack.c.bf16 %v2074, %v2073
    %s2076 = scalar_lea.vmem %s3, 32
    %v2077 = vld [vmem:[%s2076] sm:$0xf]
    %v2078 = vld [vmem:[%s2076 + $0x4] sm:$0xf]
    %v2079 = vld [vmem:[%s2076 + $0x8] sm:$0xf]
    %v2080 = vld [vmem:[%s2076 + $0xc] sm:$0xf]
    %v2081 = vld [vmem:[%s2076 + $0x10] sm:$0xf]
    %v2082 = vld [vmem:[%s2076 + $0x14] sm:$0xf]
    %v2083 = vld [vmem:[%s2076 + $0x18] sm:$0xf]
    %v2084 = vld [vmem:[%s2076 + $0x1c] sm:$0xf]
    %v2085 = vperm.slane %v1276, 1
    %v2094 = vunpack.c.l.b16 %v2077
    %v2095 = vunpack.c.l.b16 %v2078
    %v2096 = vunpack.c.l.b16 %v2079
    %v2097 = vunpack.c.l.b16 %v2080
    %v2098 = vunpack.c.l.b16 %v2081
    %v2099 = vunpack.c.l.b16 %v2082
    %v2100 = vunpack.c.l.b16 %v2083
    %v2101 = vunpack.c.l.b16 %v2084
    %v2102 = vpack.c.b16 %v2095, %v2094
    %v2103 = vpack.c.b16 %v2097, %v2096
    %v2104 = vpack.c.b16 %v2099, %v2098
    %v2105 = vpack.c.b16 %v2101, %v2100
    %v2111 = vsel %vm153, %v2075, 0
    %2113 = vmatpush.bf16.msra.mxu0 0
    %2114 = vmatpush.bf16.msra.mxu0 0
    %2115 = vmatpush.bf16.msra.mxu0 0
    %2116 = vmatpush.bf16.msra.mxu0 0
    %2117 = vmatpush.bf16.msra.mxu0 %v2105
    %2118 = vmatpush.bf16.msra.mxu0 %v2104
    %2119 = vmatpush.bf16.msra.mxu0 %v2103
    %2120 = vmatpush.bf16.msra.mxu0 %v2102
    %2121 = vmatmul.bf16.gmra.mxu0 %v2111
    %v2122 = vpop.f32.mrf.mxu0
    %v2123 = vadd.f32 %v2085, %v2122
    %v2124 = vpop.f32.mrf.mxu0
    %v2125 = vadd.f32 %v2085, %v2124
    %2126 = vdwg.mxu0
    %v2127 = vadd.f32 %v1273, %v2123
    %v2128 = vadd.f32 %v1274, %v2125
    %v2129 = vsel %vm153, %v2127, 0.0
    %2130 = vadd.xlane.f32.xlu0 %v2129
    %v2131 = vpop.xlane.xlu0 %2130
    %v2132 = vsel %vm153, %v2128, 0.0
    %2133 = vadd.xlane.f32.xlu0 %v2132
    %v2134 = vpop.xlane.xlu0 %2133
    %v2135 = vmul.f32 %v2131, %v1045
    %v2136 = vmul.f32 %v2134, %v1045
    %v2137 = vsub.f32 %v2127, %v2135
    %v2138 = vsub.f32 %v2128, %v2136
    %v2139 = vmul.f32 %v2137, %v2137
    %v2140 = vmul.f32 %v2138, %v2138
    %v2141 = vsel %vm153, %v2139, 0.0
    %2142 = vadd.xlane.f32.xlu0 %v2141
    %v2143 = vpop.xlane.xlu0 %2142
    %v2144 = vsel %vm153, %v2140, 0.0
    %2145 = vadd.xlane.f32.xlu0 %v2144
    %v2146 = vpop.xlane.xlu0 %2145
    %v2147 = vmul.f32 %v2143, %v1045
    %v2148 = vmul.f32 %v2146, %v1045
    %v2149 = vadd.f32 %v2147, 1e-05
    %v2150 = vadd.f32 %v2148, 1e-05
    %v2151 = vrsqrt.pop %v2149
    %v2152 = vmul.f32 %v2151, %v2149
    %v2153 = vmul.f32 %v2152, %v2151
    %v2154 = vmul.f32 0.5, %v2153
    %v2155 = vsub.f32 1.5, %v2154
    %v2156 = vmul.f32 %v2151, %v2155
    %vm2157 = vweird.f32 %v2149
    %vm2158 = vweird.f32 %v2151
    %vm2159 = vmor %vm2157, %vm2158
    %v2160 = vsel %vm2159, %v2151, %v2156
    %v2161 = vrsqrt.pop %v2150
    %v2162 = vmul.f32 %v2161, %v2150
    %v2163 = vmul.f32 %v2162, %v2161
    %v2164 = vmul.f32 0.5, %v2163
    %v2165 = vsub.f32 1.5, %v2164
    %v2166 = vmul.f32 %v2161, %v2165
    %vm2167 = vweird.f32 %v2150
    %vm2168 = vweird.f32 %v2161
    %vm2169 = vmor %vm2167, %vm2168
    %v2170 = vsel %vm2169, %v2161, %v2166
    %v2171 = vmul.f32 %v2137, %v2160
    %v2172 = vmul.f32 %v2138, %v2170
    %v2173 = vperm.slane %v1276, 2
    %v2174 = vmul.f32 %v2171, %v2173
    %v2175 = vmul.f32 %v2172, %v2173
    %v2176 = vperm.slane %v1276, 3
    %v2177 = vadd.f32 %v2174, %v2176
    %v2178 = vadd.f32 %v2175, %v2176
    %v2179 = vpack.c.bf16 %v2178, %v2177
    %s2180 = scalar_lea.vmem [#allocation7], 32
    %v2181 = vld [vmem:[%s2180] sm:$0xf]
    %v2182 = vld [vmem:[%s2180 + $0x4] sm:$0xf]
    %v2183 = vld [vmem:[%s2180 + $0x8] sm:$0xf]
    %v2184 = vld [vmem:[%s2180 + $0xc] sm:$0xf]
    %v2185 = vld [vmem:[%s2180 + $0x10] sm:$0xf]
    %v2186 = vld [vmem:[%s2180 + $0x14] sm:$0xf]
    %v2187 = vld [vmem:[%s2180 + $0x18] sm:$0xf]
    %v2188 = vld [vmem:[%s2180 + $0x1c] sm:$0xf]
    %v2189 = vperm.slane %v1276, 4
    %v2198 = vunpack.c.l.b16 %v2181
    %v2199 = vunpack.c.l.b16 %v2182
    %v2200 = vunpack.c.l.b16 %v2183
    %v2201 = vunpack.c.l.b16 %v2184
    %v2202 = vunpack.c.l.b16 %v2185
    %v2203 = vunpack.c.l.b16 %v2186
    %v2204 = vunpack.c.l.b16 %v2187
    %v2205 = vunpack.c.l.b16 %v2188
    %v2206 = vpack.c.b16 %v2199, %v2198
    %v2207 = vpack.c.b16 %v2201, %v2200
    %v2208 = vpack.c.b16 %v2203, %v2202
    %v2209 = vpack.c.b16 %v2205, %v2204
    %v2215 = vsel %vm153, %v2179, 0
    %2217 = vmatpush.bf16.msra.mxu0 0
    %2218 = vmatpush.bf16.msra.mxu0 0
    %2219 = vmatpush.bf16.msra.mxu0 0
    %2220 = vmatpush.bf16.msra.mxu0 0
    %2221 = vmatpush.bf16.msra.mxu0 %v2209
    %2222 = vmatpush.bf16.msra.mxu0 %v2208
    %2223 = vmatpush.bf16.msra.mxu0 %v2207
    %2224 = vmatpush.bf16.msra.mxu0 %v2206
    %2225 = vmatmul.bf16.gmra.mxu0 %v2215
    %v2226 = vpop.f32.mrf.mxu0
    %v2227 = vadd.f32 %v2189, %v2226
    %v2228 = vpop.f32.mrf.mxu0
    %v2229 = vadd.f32 %v2189, %v2228
    %2230 = vdwg.mxu0
    %v2231 = vmax.f32 %v2227, 0.0
    %v2232 = vmax.f32 %v2229, 0.0
    %v2233 = vpack.c.bf16 %v2232, %v2231
    %s2234 = scalar_lea.vmem %s5, 64
    %v2235 = vld [vmem:[%s2234] sm:$0xf]
    %v2236 = vld [vmem:[%s2234 + $0x4] sm:$0xf]
    %v2237 = vld [vmem:[%s2234 + $0x8] sm:$0xf]
    %v2238 = vld [vmem:[%s2234 + $0xc] sm:$0xf]
    %v2239 = vld [vmem:[%s2234 + $0x10] sm:$0xf]
    %v2240 = vld [vmem:[%s2234 + $0x14] sm:$0xf]
    %v2241 = vld [vmem:[%s2234 + $0x18] sm:$0xf]
    %v2242 = vld [vmem:[%s2234 + $0x1c] sm:$0xf]
    %v2243 = vld [vmem:[%s2234 + $0x20] sm:$0xf]
    %v2244 = vld [vmem:[%s2234 + $0x24] sm:$0xf]
    %v2245 = vld [vmem:[%s2234 + $0x28] sm:$0xf]
    %v2246 = vld [vmem:[%s2234 + $0x2c] sm:$0xf]
    %v2247 = vld [vmem:[%s2234 + $0x30] sm:$0xf]
    %v2248 = vld [vmem:[%s2234 + $0x34] sm:$0xf]
    %v2249 = vld [vmem:[%s2234 + $0x38] sm:$0xf]
    %v2250 = vld [vmem:[%s2234 + $0x3c] sm:$0xf]
    %v2251 = vperm.slane %v1276, 5
    %v2268 = vunpack.c.l.b16 %v2235
    %v2269 = vunpack.c.l.b16 %v2236
    %v2270 = vunpack.c.l.b16 %v2237
    %v2271 = vunpack.c.l.b16 %v2238
    %v2272 = vunpack.c.l.b16 %v2239
    %v2273 = vunpack.c.l.b16 %v2240
    %v2274 = vunpack.c.l.b16 %v2241
    %v2275 = vunpack.c.l.b16 %v2242
    %v2276 = vunpack.c.l.b16 %v2243
    %v2277 = vunpack.c.l.b16 %v2244
    %v2278 = vunpack.c.l.b16 %v2245
    %v2279 = vunpack.c.l.b16 %v2246
    %v2280 = vunpack.c.l.b16 %v2247
    %v2281 = vunpack.c.l.b16 %v2248
    %v2282 = vunpack.c.l.b16 %v2249
    %v2283 = vunpack.c.l.b16 %v2250
    %v2284 = vpack.c.b16 %v2269, %v2268
    %v2285 = vpack.c.b16 %v2271, %v2270
    %v2286 = vpack.c.b16 %v2273, %v2272
    %v2287 = vpack.c.b16 %v2275, %v2274
    %v2288 = vpack.c.b16 %v2277, %v2276
    %v2289 = vpack.c.b16 %v2279, %v2278
    %v2290 = vpack.c.b16 %v2281, %v2280
    %v2291 = vpack.c.b16 %v2283, %v2282
    %2300 = vmatpush.bf16.msra.mxu0 %v2291
    %2301 = vmatpush.bf16.msra.mxu0 %v2290
    %2302 = vmatpush.bf16.msra.mxu0 %v2289
    %2303 = vmatpush.bf16.msra.mxu0 %v2288
    %2304 = vmatpush.bf16.msra.mxu0 %v2287
    %2305 = vmatpush.bf16.msra.mxu0 %v2286
    %2306 = vmatpush.bf16.msra.mxu0 %v2285
    %2307 = vmatpush.bf16.msra.mxu0 %v2284
    %2308 = vmatmul.bf16.gmra.mxu0 %v2233
    %v2309 = vpop.f32.mrf.mxu0
    %v2310 = vadd.f32 %v2251, %v2309
    %v2311 = vpop.f32.mrf.mxu0
    %v2312 = vadd.f32 %v2251, %v2311
    %2313 = vdwg.mxu0
    %v2314 = vadd.f32 %v2177, %v2310
    %v2315 = vadd.f32 %v2178, %v2312
    %v2316 = vsel %vm153, %v2314, 0.0
    %2317 = vadd.xlane.f32.xlu0 %v2316
    %v2318 = vpop.xlane.xlu0 %2317
    %v2319 = vsel %vm153, %v2315, 0.0
    %2320 = vadd.xlane.f32.xlu0 %v2319
    %v2321 = vpop.xlane.xlu0 %2320
    %v2322 = vmul.f32 %v2318, %v1045
    %v2323 = vmul.f32 %v2321, %v1045
    %v2324 = vsub.f32 %v2314, %v2322
    %v2325 = vsub.f32 %v2315, %v2323
    %v2326 = vmul.f32 %v2324, %v2324
    %v2327 = vmul.f32 %v2325, %v2325
    %v2328 = vsel %vm153, %v2326, 0.0
    %2329 = vadd.xlane.f32.xlu0 %v2328
    %v2330 = vpop.xlane.xlu0 %2329
    %v2331 = vsel %vm153, %v2327, 0.0
    %2332 = vadd.xlane.f32.xlu0 %v2331
    %v2333 = vpop.xlane.xlu0 %2332
    %v2334 = vmul.f32 %v2330, %v1045
    %v2335 = vmul.f32 %v2333, %v1045
    %v2336 = vadd.f32 %v2334, 1e-05
    %v2337 = vadd.f32 %v2335, 1e-05
    %v2338 = vrsqrt.pop %v2336
    %v2339 = vmul.f32 %v2338, %v2336
    %v2340 = vmul.f32 %v2339, %v2338
    %v2341 = vmul.f32 0.5, %v2340
    %v2342 = vsub.f32 1.5, %v2341
    %v2343 = vmul.f32 %v2338, %v2342
    %vm2344 = vweird.f32 %v2336
    %vm2345 = vweird.f32 %v2338
    %vm2346 = vmor %vm2344, %vm2345
    %v2347 = vsel %vm2346, %v2338, %v2343
    %v2348 = vrsqrt.pop %v2337
    %v2349 = vmul.f32 %v2348, %v2337
    %v2350 = vmul.f32 %v2349, %v2348
    %v2351 = vmul.f32 0.5, %v2350
    %v2352 = vsub.f32 1.5, %v2351
    %v2353 = vmul.f32 %v2348, %v2352
    %vm2354 = vweird.f32 %v2337
    %vm2355 = vweird.f32 %v2348
    %vm2356 = vmor %vm2354, %vm2355
    %v2357 = vsel %vm2356, %v2348, %v2353
    %v2358 = vmul.f32 %v2324, %v2347
    %v2359 = vmul.f32 %v2325, %v2357
    %v2360 = vperm.slane %v1276, 6
    %v2361 = vmul.f32 %v2358, %v2360
    %v2362 = vmul.f32 %v2359, %v2360
    %v2363 = vperm.slane %v1276, 7
    %v2364 = vadd.f32 %v2361, %v2363
    %v2365 = vadd.f32 %v2362, %v2363
    %s2366 = scalar_lea.vmem [#allocation10], 32
    %v2367 = vld [vmem:[%s2366] sm:$0xff]
    %v2368 = vld [vmem:[%s2366 + $0x8] sm:$0xff]
    %v2369 = vpack.c.bf16 %v2365, %v2364
    %s2370 = scalar_lea.vmem %s2, 128
    %v2371 = vld [vmem:[%s2370] sm:$0xff]
    %v2372 = vld [vmem:[%s2370 + $0x8] sm:$0xff]
    %v2373 = vld [vmem:[%s2370 + $0x10] sm:$0xff]
    %v2374 = vld [vmem:[%s2370 + $0x18] sm:$0xff]
    %v2375 = vld [vmem:[%s2370 + $0x20] sm:$0xff]
    %v2376 = vld [vmem:[%s2370 + $0x28] sm:$0xff]
    %v2377 = vld [vmem:[%s2370 + $0x30] sm:$0xff]
    %v2378 = vld [vmem:[%s2370 + $0x38] sm:$0xff]
    %v2379 = vperm.slane %v2367, 0
    %v2380 = vperm.slane %v2368, 0
    %v2389 = vunpack.c.l.b16 %v2371
    %v2390 = vunpack.c.h.b16 %v2371
    %v2391 = vunpack.c.l.b16 %v2372
    %v2392 = vunpack.c.h.b16 %v2372
    %v2393 = vunpack.c.l.b16 %v2373
    %v2394 = vunpack.c.h.b16 %v2373
    %v2395 = vunpack.c.l.b16 %v2374
    %v2396 = vunpack.c.h.b16 %v2374
    %v2397 = vunpack.c.l.b16 %v2375
    %v2398 = vunpack.c.h.b16 %v2375
    %v2399 = vunpack.c.l.b16 %v2376
    %v2400 = vunpack.c.h.b16 %v2376
    %v2401 = vunpack.c.l.b16 %v2377
    %v2402 = vunpack.c.h.b16 %v2377
    %v2403 = vunpack.c.l.b16 %v2378
    %v2404 = vunpack.c.h.b16 %v2378
    %v2405 = vpack.c.b16 %v2391, %v2389
    %v2406 = vpack.c.b16 %v2392, %v2390
    %v2407 = vpack.c.b16 %v2395, %v2393
    %v2408 = vpack.c.b16 %v2396, %v2394
    %v2409 = vpack.c.b16 %v2399, %v2397
    %v2410 = vpack.c.b16 %v2400, %v2398
    %v2411 = vpack.c.b16 %v2403, %v2401
    %v2412 = vpack.c.b16 %v2404, %v2402
    %v2422 = vsel %vm153, %v2369, 0
    %2424 = vmatpush.bf16.msra.mxu0 0
    %2425 = vmatpush.bf16.msra.mxu0 0
    %2426 = vmatpush.bf16.msra.mxu0 0
    %2427 = vmatpush.bf16.msra.mxu0 0
    %2428 = vmatpush.bf16.msra.mxu0 %v2411
    %2429 = vmatpush.bf16.msra.mxu0 %v2409
    %2430 = vmatpush.bf16.msra.mxu0 %v2407
    %2431 = vmatpush.bf16.msra.mxu0 %v2405
    %2432 = vmatmul.bf16.gmra.mxu0 %v2422
    %v2433 = vpop.f32.mrf.mxu0
    %v2434 = vadd.f32 %v2379, %v2433
    %v2435 = vpop.f32.mrf.mxu0
    %v2436 = vadd.f32 %v2379, %v2435
    %2437 = vdwg.mxu0
    %2438 = vmatpush.bf16.msra.mxu0 0
    %2439 = vmatpush.bf16.msra.mxu0 0
    %2440 = vmatpush.bf16.msra.mxu0 0
    %2441 = vmatpush.bf16.msra.mxu0 0
    %2442 = vmatpush.bf16.msra.mxu0 %v2412
    %2443 = vmatpush.bf16.msra.mxu0 %v2410
    %2444 = vmatpush.bf16.msra.mxu0 %v2408
    %2445 = vmatpush.bf16.msra.mxu0 %v2406
    %2446 = vmatmul.bf16.gmra.mxu0 %v2422
    %v2447 = vpop.f32.mrf.mxu0
    %v2448 = vadd.f32 %v2380, %v2447
    %v2449 = vpop.f32.mrf.mxu0
    %v2450 = vadd.f32 %v2380, %v2449
    %2451 = vdwg.mxu0
    %2454 = vrot.lane.b32.xlu0 %v2434, 96
    %v2455 = vpop.permute.xlu0 %2454
    %2456 = vrot.lane.b32.xlu0 %v2436, 96
    %v2457 = vpop.permute.xlu0 %2456
    %2460 = vrot.lane.b32.xlu0 %v2434, 64
    %v2461 = vpop.permute.xlu0 %2460
    %2462 = vrot.lane.b32.xlu0 %v2436, 64
    %v2463 = vpop.permute.xlu0 %2462
    %2466 = vrot.lane.b32.xlu0 %v2434, 32
    %v2467 = vpop.permute.xlu0 %2466
    %2468 = vrot.lane.b32.xlu0 %v2436, 32
    %v2469 = vpop.permute.xlu0 %2468
    %2474 = vrot.lane.b32.xlu0 %v2448, 96
    %v2475 = vpop.permute.xlu0 %2474
    %2476 = vrot.lane.b32.xlu0 %v2450, 96
    %v2477 = vpop.permute.xlu0 %2476
    %v2480 = vrot.slane %v2461, 4
    %v2481 = vsel %vm284, %v2480, %v2434
    %v2482 = vrot.slane %v2434, 4
    %v2483 = vsel %vm284, %v2461, %v2482
    %v2485 = vunpack.c.l.s4 1983009808
    %v2486 = vunpack.c.0.s8 %v2485
    %v2487 = vperm.slane %v2481, %v2486
    %v2489 = vunpack.c.l.s4 1983009808
    %v2490 = vunpack.c.0.s8 %v2489
    %v2491 = vperm.slane %v2483, %v2490
    %v2492 = vrot.slane %v2467, 4
    %v2493 = vsel %vm284, %v2492, %v2455
    %v2494 = vrot.slane %v2455, 4
    %v2495 = vsel %vm284, %v2467, %v2494
    %v2497 = vunpack.c.l.s4 1983009808
    %v2498 = vunpack.c.0.s8 %v2497
    %v2499 = vperm.slane %v2493, %v2498
    %v2501 = vunpack.c.l.s4 1983009808
    %v2502 = vunpack.c.0.s8 %v2501
    %v2503 = vperm.slane %v2495, %v2502
    %v2504 = vrot.slane %v2448, 4
    %v2505 = vsel %vm284, 0.0, %v2504
    %v2507 = vunpack.c.l.s4 1983009808
    %v2508 = vunpack.c.0.s8 %v2507
    %v2509 = vperm.slane %v2448, %v2508
    %v2511 = vunpack.c.l.s4 1983009808
    %v2512 = vunpack.c.0.s8 %v2511
    %v2513 = vperm.slane %v2505, %v2512
    %v2514 = vrot.slane %v2475, 4
    %v2515 = vsel %vm284, 0.0, %v2514
    %v2517 = vunpack.c.l.s4 1983009808
    %v2518 = vunpack.c.0.s8 %v2517
    %v2519 = vperm.slane %v2475, %v2518
    %v2521 = vunpack.c.l.s4 1983009808
    %v2522 = vunpack.c.0.s8 %v2521
    %v2523 = vperm.slane %v2515, %v2522
    %v2524 = vrot.slane %v2499, 4
    %v2525 = vsel %vm284, %v2524, %v2487
    %v2526 = vrot.slane %v2487, 4
    %v2527 = vsel %vm284, %v2499, %v2526
    %v2529 = vunpack.c.l.s4 1934713408
    %v2530 = vunpack.c.0.s8 %v2529
    %v2531 = vperm.slane %v2525, %v2530
    %v2533 = vunpack.c.l.s4 1934713408
    %v2534 = vunpack.c.0.s8 %v2533
    %v2535 = vperm.slane %v2527, %v2534
    %v2536 = vrot.slane %v2503, 4
    %v2537 = vsel %vm284, %v2536, %v2491
    %v2538 = vrot.slane %v2491, 4
    %v2539 = vsel %vm284, %v2503, %v2538
    %v2541 = vunpack.c.l.s4 1934713408
    %v2542 = vunpack.c.0.s8 %v2541
    %v2543 = vperm.slane %v2537, %v2542
    %v2545 = vunpack.c.l.s4 1934713408
    %v2546 = vunpack.c.0.s8 %v2545
    %v2547 = vperm.slane %v2539, %v2546
    %v2548 = vrot.slane %v2519, 4
    %v2549 = vsel %vm284, %v2548, %v2509
    %v2550 = vrot.slane %v2509, 4
    %v2551 = vsel %vm284, %v2519, %v2550
    %v2553 = vunpack.c.l.s4 1934713408
    %v2554 = vunpack.c.0.s8 %v2553
    %v2555 = vperm.slane %v2549, %v2554
    %v2557 = vunpack.c.l.s4 1934713408
    %v2558 = vunpack.c.0.s8 %v2557
    %v2559 = vperm.slane %v2551, %v2558
    %v2560 = vrot.slane %v2523, 4
    %v2561 = vsel %vm284, %v2560, %v2513
    %v2562 = vrot.slane %v2513, 4
    %v2563 = vsel %vm284, %v2523, %v2562
    %v2565 = vunpack.c.l.s4 1934713408
    %v2566 = vunpack.c.0.s8 %v2565
    %v2567 = vperm.slane %v2561, %v2566
    %v2569 = vunpack.c.l.s4 1934713408
    %v2570 = vunpack.c.0.s8 %v2569
    %v2571 = vperm.slane %v2563, %v2570
    %v2572 = vrot.slane %v2555, 4
    %v2573 = vsel %vm284, %v2572, %v2531
    %v2574 = vrot.slane %v2531, 4
    %v2575 = vsel %vm284, %v2555, %v2574
    %v2576 = vrot.slane %v2559, 4
    %v2577 = vsel %vm284, %v2576, %v2535
    %v2578 = vrot.slane %v2535, 4
    %v2579 = vsel %vm284, %v2559, %v2578
    %v2580 = vrot.slane %v2567, 4
    %v2581 = vsel %vm284, %v2580, %v2543
    %v2582 = vrot.slane %v2543, 4
    %v2583 = vsel %vm284, %v2567, %v2582
    %v2584 = vrot.slane %v2571, 4
    %v2585 = vsel %vm284, %v2584, %v2547
    %v2586 = vrot.slane %v2547, 4
    %v2587 = vsel %vm284, %v2571, %v2586
    %v2588 = vrot.slane %v2463, 4
    %v2589 = vsel %vm284, %v2588, %v2436
    %v2590 = vrot.slane %v2436, 4
    %v2591 = vsel %vm284, %v2463, %v2590
    %v2593 = vunpack.c.l.s4 1983009808
    %v2594 = vunpack.c.0.s8 %v2593
    %v2595 = vperm.slane %v2589, %v2594
    %v2597 = vunpack.c.l.s4 1983009808
    %v2598 = vunpack.c.0.s8 %v2597
    %v2599 = vperm.slane %v2591, %v2598
    %v2600 = vrot.slane %v2469, 4
    %v2601 = vsel %vm284, %v2600, %v2457
    %v2602 = vrot.slane %v2457, 4
    %v2603 = vsel %vm284, %v2469, %v2602
    %v2605 = vunpack.c.l.s4 1983009808
    %v2606 = vunpack.c.0.s8 %v2605
    %v2607 = vperm.slane %v2601, %v2606
    %v2609 = vunpack.c.l.s4 1983009808
    %v2610 = vunpack.c.0.s8 %v2609
    %v2611 = vperm.slane %v2603, %v2610
    %v2612 = vrot.slane %v2450, 4
    %v2613 = vsel %vm284, 0.0, %v2612
    %v2615 = vunpack.c.l.s4 1983009808
    %v2616 = vunpack.c.0.s8 %v2615
    %v2617 = vperm.slane %v2450, %v2616
    %v2619 = vunpack.c.l.s4 1983009808
    %v2620 = vunpack.c.0.s8 %v2619
    %v2621 = vperm.slane %v2613, %v2620
    %v2622 = vrot.slane %v2477, 4
    %v2623 = vsel %vm284, 0.0, %v2622
    %v2625 = vunpack.c.l.s4 1983009808
    %v2626 = vunpack.c.0.s8 %v2625
    %v2627 = vperm.slane %v2477, %v2626
    %v2629 = vunpack.c.l.s4 1983009808
    %v2630 = vunpack.c.0.s8 %v2629
    %v2631 = vperm.slane %v2623, %v2630
    %v2632 = vrot.slane %v2607, 4
    %v2633 = vsel %vm284, %v2632, %v2595
    %v2634 = vrot.slane %v2595, 4
    %v2635 = vsel %vm284, %v2607, %v2634
    %v2637 = vunpack.c.l.s4 1934713408
    %v2638 = vunpack.c.0.s8 %v2637
    %v2639 = vperm.slane %v2633, %v2638
    %v2641 = vunpack.c.l.s4 1934713408
    %v2642 = vunpack.c.0.s8 %v2641
    %v2643 = vperm.slane %v2635, %v2642
    %v2644 = vrot.slane %v2611, 4
    %v2645 = vsel %vm284, %v2644, %v2599
    %v2646 = vrot.slane %v2599, 4
    %v2647 = vsel %vm284, %v2611, %v2646
    %v2649 = vunpack.c.l.s4 1934713408
    %v2650 = vunpack.c.0.s8 %v2649
    %v2651 = vperm.slane %v2645, %v2650
    %v2653 = vunpack.c.l.s4 1934713408
    %v2654 = vunpack.c.0.s8 %v2653
    %v2655 = vperm.slane %v2647, %v2654
    %v2656 = vrot.slane %v2627, 4
    %v2657 = vsel %vm284, %v2656, %v2617
    %v2658 = vrot.slane %v2617, 4
    %v2659 = vsel %vm284, %v2627, %v2658
    %v2661 = vunpack.c.l.s4 1934713408
    %v2662 = vunpack.c.0.s8 %v2661
    %v2663 = vperm.slane %v2657, %v2662
    %v2665 = vunpack.c.l.s4 1934713408
    %v2666 = vunpack.c.0.s8 %v2665
    %v2667 = vperm.slane %v2659, %v2666
    %v2668 = vrot.slane %v2631, 4
    %v2669 = vsel %vm284, %v2668, %v2621
    %v2670 = vrot.slane %v2621, 4
    %v2671 = vsel %vm284, %v2631, %v2670
    %v2673 = vunpack.c.l.s4 1934713408
    %v2674 = vunpack.c.0.s8 %v2673
    %v2675 = vperm.slane %v2669, %v2674
    %v2677 = vunpack.c.l.s4 1934713408
    %v2678 = vunpack.c.0.s8 %v2677
    %v2679 = vperm.slane %v2671, %v2678
    %v2680 = vrot.slane %v2663, 4
    %v2681 = vsel %vm284, %v2680, %v2639
    %v2682 = vrot.slane %v2639, 4
    %v2683 = vsel %vm284, %v2663, %v2682
    %v2684 = vrot.slane %v2667, 4
    %v2685 = vsel %vm284, %v2684, %v2643
    %v2686 = vrot.slane %v2643, 4
    %v2687 = vsel %vm284, %v2667, %v2686
    %v2688 = vrot.slane %v2675, 4
    %v2689 = vsel %vm284, %v2688, %v2651
    %v2690 = vrot.slane %v2651, 4
    %v2691 = vsel %vm284, %v2675, %v2690
    %v2692 = vrot.slane %v2679, 4
    %v2693 = vsel %vm284, %v2692, %v2655
    %v2694 = vrot.slane %v2655, 4
    %v2695 = vsel %vm284, %v2679, %v2694
    %v2696 = vpack.c.bf16 %v2573, %v2573
    %v2697 = vpack.c.bf16 %v2575, %v2575
    %v2698 = vpack.c.bf16 %v2577, %v2577
    %v2699 = vpack.c.bf16 %v2579, %v2579
    %v2700 = vpack.c.bf16 %v2581, %v2581
    %v2701 = vpack.c.bf16 %v2583, %v2583
    %v2702 = vpack.c.bf16 %v2585, %v2585
    %v2703 = vpack.c.bf16 %v2587, %v2587
    %v2704 = vpack.c.bf16 %v2681, %v2681
    %v2705 = vpack.c.bf16 %v2683, %v2683
    %v2706 = vpack.c.bf16 %v2685, %v2685
    %v2707 = vpack.c.bf16 %v2687, %v2687
    %v2708 = vpack.c.bf16 %v2689, %v2689
    %v2709 = vpack.c.bf16 %v2691, %v2691
    %v2710 = vpack.c.bf16 %v2693, %v2693
    %v2711 = vpack.c.bf16 %v2695, %v2695
    %v2720 = vunpack.c.l.b16 %v2696
    %v2721 = vunpack.c.l.b16 %v2697
    %v2722 = vunpack.c.l.b16 %v2698
    %v2723 = vunpack.c.l.b16 %v2699
    %v2724 = vunpack.c.l.b16 %v2700
    %v2725 = vunpack.c.l.b16 %v2701
    %v2726 = vunpack.c.l.b16 %v2702
    %v2727 = vunpack.c.l.b16 %v2703
    %v2728 = vpack.c.b16 %v2720, %v2720
    %v2729 = vpack.c.b16 %v2721, %v2721
    %v2730 = vpack.c.b16 %v2722, %v2722
    %v2731 = vpack.c.b16 %v2723, %v2723
    %v2732 = vpack.c.b16 %v2724, %v2724
    %v2733 = vpack.c.b16 %v2725, %v2725
    %v2734 = vpack.c.b16 %v2726, %v2726
    %v2735 = vpack.c.b16 %v2727, %v2727
    %v2736 = vunpack.c.l.b16 %v2728
    %v2737 = vunpack.c.l.b16 %v2729
    %v2738 = vunpack.c.l.b16 %v2730
    %v2739 = vunpack.c.l.b16 %v2731
    %v2740 = vunpack.c.l.b16 %v2732
    %v2741 = vunpack.c.l.b16 %v2733
    %v2742 = vunpack.c.l.b16 %v2734
    %v2743 = vunpack.c.l.b16 %v2735
    %v2744 = vrot.slane %v2737, 7
    %v2745 = vsel %vm549, %v2744, %v2736
    %v2746 = vrot.slane %v2738, 6
    %v2747 = vsel %vm552, %v2746, %v2745
    %v2748 = vrot.slane %v2739, 5
    %v2749 = vsel %vm555, %v2748, %v2747
    %v2750 = vrot.slane %v2740, 4
    %v2751 = vsel %vm558, %v2750, %v2749
    %v2752 = vrot.slane %v2741, 3
    %v2753 = vsel %vm561, %v2752, %v2751
    %v2754 = vrot.slane %v2742, 2
    %v2755 = vsel %vm564, %v2754, %v2753
    %v2756 = vrot.slane %v2743, 1
    %v2757 = vsel %vm567, %v2756, %v2755
    %v2758 = vpack.c.b16 %v2757, %v2757
    %v2759 = vrot.slane %v2736, 2
    %v2760 = vrot.slane %v2737, 1
    %v2761 = vsel %vm549, %v2760, %v2759
    %v2762 = vsel %vm552, %v2738, %v2761
    %v2763 = vrot.slane %v2739, 7
    %v2764 = vsel %vm555, %v2763, %v2762
    %v2765 = vrot.slane %v2740, 6
    %v2766 = vsel %vm558, %v2765, %v2764
    %v2767 = vrot.slane %v2741, 5
    %v2768 = vsel %vm561, %v2767, %v2766
    %v2769 = vrot.slane %v2742, 4
    %v2770 = vsel %vm564, %v2769, %v2768
    %v2771 = vrot.slane %v2743, 3
    %v2772 = vsel %vm567, %v2771, %v2770
    %v2773 = vpack.c.b16 %v2772, %v2772
    %v2775 = vsel %vm585, %v2758, 0
    %v2778 = vsel %vm585, %v2773, 0
    %2780 = vmatpush.bf16.xpose.msra.mxu0 0
    %2781 = vmatpush.bf16.xpose.msra.mxu0 0
    %2782 = vmatpush.bf16.xpose.msra.mxu0 0
    %2783 = vmatpush.bf16.xpose.msra.mxu0 0
    %2784 = vmatpush.bf16.xpose.msra.mxu0 0
    %2785 = vmatpush.bf16.xpose.msra.mxu0 0
    %2786 = vmatpush.bf16.xpose.msra.mxu0 0
    %2787 = vmatpush.bf16.xpose.msra.mxu0 %v2778
    %2788 = vmatmul.bf16.gmra.mxu0 %v2775
    %v2789 = vpop.f32.mrf.mxu0
    %v2790 = vadd.f32 0.0, %v2789
    %v2791 = vpop.f32.mrf.mxu0
    %2792 = vdwg.mxu0
    %v2801 = vunpack.c.l.b16 %v2704
    %v2802 = vunpack.c.l.b16 %v2705
    %v2803 = vunpack.c.l.b16 %v2706
    %v2804 = vunpack.c.l.b16 %v2707
    %v2805 = vunpack.c.l.b16 %v2708
    %v2806 = vunpack.c.l.b16 %v2709
    %v2807 = vunpack.c.l.b16 %v2710
    %v2808 = vunpack.c.l.b16 %v2711
    %v2809 = vpack.c.b16 %v2801, %v2801
    %v2810 = vpack.c.b16 %v2802, %v2802
    %v2811 = vpack.c.b16 %v2803, %v2803
    %v2812 = vpack.c.b16 %v2804, %v2804
    %v2813 = vpack.c.b16 %v2805, %v2805
    %v2814 = vpack.c.b16 %v2806, %v2806
    %v2815 = vpack.c.b16 %v2807, %v2807
    %v2816 = vpack.c.b16 %v2808, %v2808
    %v2817 = vunpack.c.l.b16 %v2809
    %v2818 = vunpack.c.l.b16 %v2810
    %v2819 = vunpack.c.l.b16 %v2811
    %v2820 = vunpack.c.l.b16 %v2812
    %v2821 = vunpack.c.l.b16 %v2813
    %v2822 = vunpack.c.l.b16 %v2814
    %v2823 = vunpack.c.l.b16 %v2815
    %v2824 = vunpack.c.l.b16 %v2816
    %v2825 = vrot.slane %v2818, 7
    %v2826 = vsel %vm549, %v2825, %v2817
    %v2827 = vrot.slane %v2819, 6
    %v2828 = vsel %vm552, %v2827, %v2826
    %v2829 = vrot.slane %v2820, 5
    %v2830 = vsel %vm555, %v2829, %v2828
    %v2831 = vrot.slane %v2821, 4
    %v2832 = vsel %vm558, %v2831, %v2830
    %v2833 = vrot.slane %v2822, 3
    %v2834 = vsel %vm561, %v2833, %v2832
    %v2835 = vrot.slane %v2823, 2
    %v2836 = vsel %vm564, %v2835, %v2834
    %v2837 = vrot.slane %v2824, 1
    %v2838 = vsel %vm567, %v2837, %v2836
    %v2839 = vpack.c.b16 %v2838, %v2838
    %v2840 = vrot.slane %v2817, 2
    %v2841 = vrot.slane %v2818, 1
    %v2842 = vsel %vm549, %v2841, %v2840
    %v2843 = vsel %vm552, %v2819, %v2842
    %v2844 = vrot.slane %v2820, 7
    %v2845 = vsel %vm555, %v2844, %v2843
    %v2846 = vrot.slane %v2821, 6
    %v2847 = vsel %vm558, %v2846, %v2845
    %v2848 = vrot.slane %v2822, 5
    %v2849 = vsel %vm561, %v2848, %v2847
    %v2850 = vrot.slane %v2823, 4
    %v2851 = vsel %vm564, %v2850, %v2849
    %v2852 = vrot.slane %v2824, 3
    %v2853 = vsel %vm567, %v2852, %v2851
    %v2854 = vpack.c.b16 %v2853, %v2853
    %v2856 = vsel %vm585, %v2839, 0
    %v2859 = vsel %vm585, %v2854, 0
    %2861 = vmatpush.bf16.xpose.msra.mxu0 0
    %2862 = vmatpush.bf16.xpose.msra.mxu0 0
    %2863 = vmatpush.bf16.xpose.msra.mxu0 0
    %2864 = vmatpush.bf16.xpose.msra.mxu0 0
    %2865 = vmatpush.bf16.xpose.msra.mxu0 0
    %2866 = vmatpush.bf16.xpose.msra.mxu0 0
    %2867 = vmatpush.bf16.xpose.msra.mxu0 0
    %2868 = vmatpush.bf16.xpose.msra.mxu0 %v2859
    %2869 = vmatmul.bf16.gmra.mxu0 %v2856
    %v2870 = vpop.f32.mrf.mxu0
    %v2871 = vadd.f32 0.0, %v2870
    %v2872 = vpop.f32.mrf.mxu0
    %2873 = vdwg.mxu0
    %v2874 = vsel %vm686, %v2790, -inf
    %2875 = vmax.xlane.f32.xlu0 %v2874
    %v2876 = vpop.xlane.xlu0 %2875
    %v2877 = vsel %vm686, %v2871, -inf
    %2878 = vmax.xlane.f32.xlu0 %v2877
    %v2879 = vpop.xlane.xlu0 %2878
    %v2880 = vsub.f32 %v2790, %v2876
    %v2881 = vsub.f32 %v2871, %v2879
    %v2882 = vmul.f32 %v2880, 1.442695
    %v2883 = vpow.pop %v2882
    %v2884 = vmul.f32 %v2881, 1.442695
    %v2885 = vpow.pop %v2884
    %v2886 = vsel %vm686, %v2883, 0.0
    %2887 = vadd.xlane.f32.xlu0 %v2886
    %v2888 = vpop.xlane.xlu0 %2887
    %v2889 = vsel %vm686, %v2885, 0.0
    %2890 = vadd.xlane.f32.xlu0 %v2889
    %v2891 = vpop.xlane.xlu0 %2890
    %v2892 = vrcp.pop %v2888
    %v2893 = vrcp.pop %v2891
    %v2894 = vmul.f32 %v2883, %v2892
    %v2895 = vmul.f32 %v2885, %v2893
    %v2896 = vpack.c.bf16 %v2894, %v2894
    %v2897 = vpack.c.bf16 %v2895, %v2895
    %v2898 = vrot.slane %v2736, 4
    %v2899 = vrot.slane %v2737, 3
    %v2900 = vsel %vm549, %v2899, %v2898
    %v2901 = vrot.slane %v2738, 2
    %v2902 = vsel %vm552, %v2901, %v2900
    %v2903 = vrot.slane %v2739, 1
    %v2904 = vsel %vm555, %v2903, %v2902
    %v2905 = vsel %vm558, %v2740, %v2904
    %v2906 = vrot.slane %v2741, 7
    %v2907 = vsel %vm561, %v2906, %v2905
    %v2908 = vrot.slane %v2742, 6
    %v2909 = vsel %vm564, %v2908, %v2907
    %v2910 = vrot.slane %v2743, 5
    %v2911 = vsel %vm567, %v2910, %v2909
    %v2912 = vpack.c.b16 %v2911, %v2911
    %v2914 = vsel %vm686, %v2896, 0
    %v2917 = vsel %vm729, %v2912, 0
    %2919 = vmatpush.bf16.msra.mxu0 0
    %2920 = vmatpush.bf16.msra.mxu0 0
    %2921 = vmatpush.bf16.msra.mxu0 0
    %2922 = vmatpush.bf16.msra.mxu0 0
    %2923 = vmatpush.bf16.msra.mxu0 0
    %2924 = vmatpush.bf16.msra.mxu0 0
    %2925 = vmatpush.bf16.msra.mxu0 0
    %2926 = vmatpush.bf16.msra.mxu0 %v2917
    %2927 = vmatmul.bf16.gmra.mxu0 %v2914
    %v2928 = vpop.f32.mrf.mxu0
    %v2929 = vadd.f32 0.0, %v2928
    %v2930 = vpop.f32.mrf.mxu0
    %2931 = vdwg.mxu0
    %v2932 = vrot.slane %v2817, 4
    %v2933 = vrot.slane %v2818, 3
    %v2934 = vsel %vm549, %v2933, %v2932
    %v2935 = vrot.slane %v2819, 2
    %v2936 = vsel %vm552, %v2935, %v2934
    %v2937 = vrot.slane %v2820, 1
    %v2938 = vsel %vm555, %v2937, %v2936
    %v2939 = vsel %vm558, %v2821, %v2938
    %v2940 = vrot.slane %v2822, 7
    %v2941 = vsel %vm561, %v2940, %v2939
    %v2942 = vrot.slane %v2823, 6
    %v2943 = vsel %vm564, %v2942, %v2941
    %v2944 = vrot.slane %v2824, 5
    %v2945 = vsel %vm567, %v2944, %v2943
    %v2946 = vpack.c.b16 %v2945, %v2945
    %v2948 = vsel %vm686, %v2897, 0
    %v2951 = vsel %vm729, %v2946, 0
    %2953 = vmatpush.bf16.msra.mxu0 0
    %2954 = vmatpush.bf16.msra.mxu0 0
    %2955 = vmatpush.bf16.msra.mxu0 0
    %2956 = vmatpush.bf16.msra.mxu0 0
    %2957 = vmatpush.bf16.msra.mxu0 0
    %2958 = vmatpush.bf16.msra.mxu0 0
    %2959 = vmatpush.bf16.msra.mxu0 0
    %2960 = vmatpush.bf16.msra.mxu0 %v2951
    %2961 = vmatmul.bf16.gmra.mxu0 %v2948
    %v2962 = vpop.f32.mrf.mxu0
    %v2963 = vadd.f32 0.0, %v2962
    %v2964 = vpop.f32.mrf.mxu0
    %2965 = vdwg.mxu0
    %v2966 = vrot.slane %v2736, 1
    %v2967 = vsel %vm549, %v2737, %v2966
    %v2968 = vrot.slane %v2738, 7
    %v2969 = vsel %vm552, %v2968, %v2967
    %v2970 = vrot.slane %v2739, 6
    %v2971 = vsel %vm555, %v2970, %v2969
    %v2972 = vrot.slane %v2740, 5
    %v2973 = vsel %vm558, %v2972, %v2971
    %v2974 = vrot.slane %v2741, 4
    %v2975 = vsel %vm561, %v2974, %v2973
    %v2976 = vrot.slane %v2742, 3
    %v2977 = vsel %vm564, %v2976, %v2975
    %v2978 = vrot.slane %v2743, 2
    %v2979 = vsel %vm567, %v2978, %v2977
    %v2980 = vpack.c.b16 %v2979, %v2979
    %v2981 = vrot.slane %v2736, 3
    %v2982 = vrot.slane %v2737, 2
    %v2983 = vsel %vm549, %v2982, %v2981
    %v2984 = vrot.slane %v2738, 1
    %v2985 = vsel %vm552, %v2984, %v2983
    %v2986 = vsel %vm555, %v2739, %v2985
    %v2987 = vrot.slane %v2740, 7
    %v2988 = vsel %vm558, %v2987, %v2986
    %v2989 = vrot.slane %v2741, 6
    %v2990 = vsel %vm561, %v2989, %v2988
    %v2991 = vrot.slane %v2742, 5
    %v2992 = vsel %vm564, %v2991, %v2990
    %v2993 = vrot.slane %v2743, 4
    %v2994 = vsel %vm567, %v2993, %v2992
    %v2995 = vpack.c.b16 %v2994, %v2994
    %v2997 = vsel %vm585, %v2980, 0
    %v3000 = vsel %vm585, %v2995, 0
    %3002 = vmatpush.bf16.xpose.msra.mxu0 0
    %3003 = vmatpush.bf16.xpose.msra.mxu0 0
    %3004 = vmatpush.bf16.xpose.msra.mxu0 0
    %3005 = vmatpush.bf16.xpose.msra.mxu0 0
    %3006 = vmatpush.bf16.xpose.msra.mxu0 0
    %3007 = vmatpush.bf16.xpose.msra.mxu0 0
    %3008 = vmatpush.bf16.xpose.msra.mxu0 0
    %3009 = vmatpush.bf16.xpose.msra.mxu0 %v3000
    %3010 = vmatmul.bf16.gmra.mxu0 %v2997
    %v3011 = vpop.f32.mrf.mxu0
    %v3012 = vadd.f32 0.0, %v3011
    %v3013 = vpop.f32.mrf.mxu0
    %3014 = vdwg.mxu0
    %v3015 = vrot.slane %v2817, 1
    %v3016 = vsel %vm549, %v2818, %v3015
    %v3017 = vrot.slane %v2819, 7
    %v3018 = vsel %vm552, %v3017, %v3016
    %v3019 = vrot.slane %v2820, 6
    %v3020 = vsel %vm555, %v3019, %v3018
    %v3021 = vrot.slane %v2821, 5
    %v3022 = vsel %vm558, %v3021, %v3020
    %v3023 = vrot.slane %v2822, 4
    %v3024 = vsel %vm561, %v3023, %v3022
    %v3025 = vrot.slane %v2823, 3
    %v3026 = vsel %vm564, %v3025, %v3024
    %v3027 = vrot.slane %v2824, 2
    %v3028 = vsel %vm567, %v3027, %v3026
    %v3029 = vpack.c.b16 %v3028, %v3028
    %v3030 = vrot.slane %v2817, 3
    %v3031 = vrot.slane %v2818, 2
    %v3032 = vsel %vm549, %v3031, %v3030
    %v3033 = vrot.slane %v2819, 1
    %v3034 = vsel %vm552, %v3033, %v3032
    %v3035 = vsel %vm555, %v2820, %v3034
    %v3036 = vrot.slane %v2821, 7
    %v3037 = vsel %vm558, %v3036, %v3035
    %v3038 = vrot.slane %v2822, 6
    %v3039 = vsel %vm561, %v3038, %v3037
    %v3040 = vrot.slane %v2823, 5
    %v3041 = vsel %vm564, %v3040, %v3039
    %v3042 = vrot.slane %v2824, 4
    %v3043 = vsel %vm567, %v3042, %v3041
    %v3044 = vpack.c.b16 %v3043, %v3043
    %v3046 = vsel %vm585, %v3029, 0
    %v3049 = vsel %vm585, %v3044, 0
    %3051 = vmatpush.bf16.xpose.msra.mxu0 0
    %3052 = vmatpush.bf16.xpose.msra.mxu0 0
    %3053 = vmatpush.bf16.xpose.msra.mxu0 0
    %3054 = vmatpush.bf16.xpose.msra.mxu0 0
    %3055 = vmatpush.bf16.xpose.msra.mxu0 0
    %3056 = vmatpush.bf16.xpose.msra.mxu0 0
    %3057 = vmatpush.bf16.xpose.msra.mxu0 0
    %3058 = vmatpush.bf16.xpose.msra.mxu0 %v3049
    %3059 = vmatmul.bf16.gmra.mxu0 %v3046
    %v3060 = vpop.f32.mrf.mxu0
    %v3061 = vadd.f32 0.0, %v3060
    %v3062 = vpop.f32.mrf.mxu0
    %3063 = vdwg.mxu0
    %v3064 = vsel %vm686, %v3012, -inf
    %3065 = vmax.xlane.f32.xlu0 %v3064
    %v3066 = vpop.xlane.xlu0 %3065
    %v3067 = vsel %vm686, %v3061, -inf
    %3068 = vmax.xlane.f32.xlu0 %v3067
    %v3069 = vpop.xlane.xlu0 %3068
    %v3070 = vsub.f32 %v3012, %v3066
    %v3071 = vsub.f32 %v3061, %v3069
    %v3072 = vmul.f32 %v3070, 1.442695
    %v3073 = vpow.pop %v3072
    %v3074 = vmul.f32 %v3071, 1.442695
    %v3075 = vpow.pop %v3074
    %v3076 = vsel %vm686, %v3073, 0.0
    %3077 = vadd.xlane.f32.xlu0 %v3076
    %v3078 = vpop.xlane.xlu0 %3077
    %v3079 = vsel %vm686, %v3075, 0.0
    %3080 = vadd.xlane.f32.xlu0 %v3079
    %v3081 = vpop.xlane.xlu0 %3080
    %v3082 = vrcp.pop %v3078
    %v3083 = vrcp.pop %v3081
    %v3084 = vmul.f32 %v3073, %v3082
    %v3085 = vmul.f32 %v3075, %v3083
    %v3086 = vpack.c.bf16 %v3084, %v3084
    %v3087 = vpack.c.bf16 %v3085, %v3085
    %v3088 = vrot.slane %v2736, 5
    %v3089 = vrot.slane %v2737, 4
    %v3090 = vsel %vm549, %v3089, %v3088
    %v3091 = vrot.slane %v2738, 3
    %v3092 = vsel %vm552, %v3091, %v3090
    %v3093 = vrot.slane %v2739, 2
    %v3094 = vsel %vm555, %v3093, %v3092
    %v3095 = vrot.slane %v2740, 1
    %v3096 = vsel %vm558, %v3095, %v3094
    %v3097 = vsel %vm561, %v2741, %v3096
    %v3098 = vrot.slane %v2742, 7
    %v3099 = vsel %vm564, %v3098, %v3097
    %v3100 = vrot.slane %v2743, 6
    %v3101 = vsel %vm567, %v3100, %v3099
    %v3102 = vpack.c.b16 %v3101, %v3101
    %v3104 = vsel %vm686, %v3086, 0
    %v3107 = vsel %vm729, %v3102, 0
    %3109 = vmatpush.bf16.msra.mxu0 0
    %3110 = vmatpush.bf16.msra.mxu0 0
    %3111 = vmatpush.bf16.msra.mxu0 0
    %3112 = vmatpush.bf16.msra.mxu0 0
    %3113 = vmatpush.bf16.msra.mxu0 0
    %3114 = vmatpush.bf16.msra.mxu0 0
    %3115 = vmatpush.bf16.msra.mxu0 0
    %3116 = vmatpush.bf16.msra.mxu0 %v3107
    %3117 = vmatmul.bf16.gmra.mxu0 %v3104
    %v3118 = vpop.f32.mrf.mxu0
    %v3119 = vadd.f32 0.0, %v3118
    %v3120 = vpop.f32.mrf.mxu0
    %3121 = vdwg.mxu0
    %v3122 = vrot.slane %v2817, 5
    %v3123 = vrot.slane %v2818, 4
    %v3124 = vsel %vm549, %v3123, %v3122
    %v3125 = vrot.slane %v2819, 3
    %v3126 = vsel %vm552, %v3125, %v3124
    %v3127 = vrot.slane %v2820, 2
    %v3128 = vsel %vm555, %v3127, %v3126
    %v3129 = vrot.slane %v2821, 1
    %v3130 = vsel %vm558, %v3129, %v3128
    %v3131 = vsel %vm561, %v2822, %v3130
    %v3132 = vrot.slane %v2823, 7
    %v3133 = vsel %vm564, %v3132, %v3131
    %v3134 = vrot.slane %v2824, 6
    %v3135 = vsel %vm567, %v3134, %v3133
    %v3136 = vpack.c.b16 %v3135, %v3135
    %v3138 = vsel %vm686, %v3087, 0
    %v3141 = vsel %vm729, %v3136, 0
    %3143 = vmatpush.bf16.msra.mxu0 0
    %3144 = vmatpush.bf16.msra.mxu0 0
    %3145 = vmatpush.bf16.msra.mxu0 0
    %3146 = vmatpush.bf16.msra.mxu0 0
    %3147 = vmatpush.bf16.msra.mxu0 0
    %3148 = vmatpush.bf16.msra.mxu0 0
    %3149 = vmatpush.bf16.msra.mxu0 0
    %3150 = vmatpush.bf16.msra.mxu0 %v3141
    %3151 = vmatmul.bf16.gmra.mxu0 %v3138
    %v3152 = vpop.f32.mrf.mxu0
    %v3153 = vadd.f32 0.0, %v3152
    %v3154 = vpop.f32.mrf.mxu0
    %3155 = vdwg.mxu0
    %3158 = vrot.lane.b32.xlu0 %v3119, 32
    %v3159 = vpop.permute.xlu0 %3158
    %3160 = vrot.lane.b32.xlu0 %v3153, 32
    %v3161 = vpop.permute.xlu0 %3160
    %v3164 = vsel %vm585, %v2929, %v3159
    %v3165 = vsel %vm585, %v2963, %v3161
    %v3166 = vpack.c.bf16 %v3165, %v3164
    %s3167 = scalar_lea.vmem %s3, 64
    %v3168 = vld [vmem:[%s3167] sm:$0xf]
    %v3169 = vld [vmem:[%s3167 + $0x4] sm:$0xf]
    %v3170 = vld [vmem:[%s3167 + $0x8] sm:$0xf]
    %v3171 = vld [vmem:[%s3167 + $0xc] sm:$0xf]
    %v3172 = vld [vmem:[%s3167 + $0x10] sm:$0xf]
    %v3173 = vld [vmem:[%s3167 + $0x14] sm:$0xf]
    %v3174 = vld [vmem:[%s3167 + $0x18] sm:$0xf]
    %v3175 = vld [vmem:[%s3167 + $0x1c] sm:$0xf]
    %v3176 = vperm.slane %v2367, 1
    %v3185 = vunpack.c.l.b16 %v3168
    %v3186 = vunpack.c.l.b16 %v3169
    %v3187 = vunpack.c.l.b16 %v3170
    %v3188 = vunpack.c.l.b16 %v3171
    %v3189 = vunpack.c.l.b16 %v3172
    %v3190 = vunpack.c.l.b16 %v3173
    %v3191 = vunpack.c.l.b16 %v3174
    %v3192 = vunpack.c.l.b16 %v3175
    %v3193 = vpack.c.b16 %v3186, %v3185
    %v3194 = vpack.c.b16 %v3188, %v3187
    %v3195 = vpack.c.b16 %v3190, %v3189
    %v3196 = vpack.c.b16 %v3192, %v3191
    %v3202 = vsel %vm153, %v3166, 0
    %3204 = vmatpush.bf16.msra.mxu0 0
    %3205 = vmatpush.bf16.msra.mxu0 0
    %3206 = vmatpush.bf16.msra.mxu0 0
    %3207 = vmatpush.bf16.msra.mxu0 0
    %3208 = vmatpush.bf16.msra.mxu0 %v3196
    %3209 = vmatpush.bf16.msra.mxu0 %v3195
    %3210 = vmatpush.bf16.msra.mxu0 %v3194
    %3211 = vmatpush.bf16.msra.mxu0 %v3193
    %3212 = vmatmul.bf16.gmra.mxu0 %v3202
    %v3213 = vpop.f32.mrf.mxu0
    %v3214 = vadd.f32 %v3176, %v3213
    %v3215 = vpop.f32.mrf.mxu0
    %v3216 = vadd.f32 %v3176, %v3215
    %3217 = vdwg.mxu0
    %v3218 = vadd.f32 %v2364, %v3214
    %v3219 = vadd.f32 %v2365, %v3216
    %v3220 = vsel %vm153, %v3218, 0.0
    %3221 = vadd.xlane.f32.xlu0 %v3220
    %v3222 = vpop.xlane.xlu0 %3221
    %v3223 = vsel %vm153, %v3219, 0.0
    %3224 = vadd.xlane.f32.xlu0 %v3223
    %v3225 = vpop.xlane.xlu0 %3224
    %v3226 = vmul.f32 %v3222, %v1045
    %v3227 = vmul.f32 %v3225, %v1045
    %v3228 = vsub.f32 %v3218, %v3226
    %v3229 = vsub.f32 %v3219, %v3227
    %v3230 = vmul.f32 %v3228, %v3228
    %v3231 = vmul.f32 %v3229, %v3229
    %v3232 = vsel %vm153, %v3230, 0.0
    %3233 = vadd.xlane.f32.xlu0 %v3232
    %v3234 = vpop.xlane.xlu0 %3233
    %v3235 = vsel %vm153, %v3231, 0.0
    %3236 = vadd.xlane.f32.xlu0 %v3235
    %v3237 = vpop.xlane.xlu0 %3236
    %v3238 = vmul.f32 %v3234, %v1045
    %v3239 = vmul.f32 %v3237, %v1045
    %v3240 = vadd.f32 %v3238, 1e-05
    %v3241 = vadd.f32 %v3239, 1e-05
    %v3242 = vrsqrt.pop %v3240
    %v3243 = vmul.f32 %v3242, %v3240
    %v3244 = vmul.f32 %v3243, %v3242
    %v3245 = vmul.f32 0.5, %v3244
    %v3246 = vsub.f32 1.5, %v3245
    %v3247 = vmul.f32 %v3242, %v3246
    %vm3248 = vweird.f32 %v3240
    %vm3249 = vweird.f32 %v3242
    %vm3250 = vmor %vm3248, %vm3249
    %v3251 = vsel %vm3250, %v3242, %v3247
    %v3252 = vrsqrt.pop %v3241
    %v3253 = vmul.f32 %v3252, %v3241
    %v3254 = vmul.f32 %v3253, %v3252
    %v3255 = vmul.f32 0.5, %v3254
    %v3256 = vsub.f32 1.5, %v3255
    %v3257 = vmul.f32 %v3252, %v3256
    %vm3258 = vweird.f32 %v3241
    %vm3259 = vweird.f32 %v3252
    %vm3260 = vmor %vm3258, %vm3259
    %v3261 = vsel %vm3260, %v3252, %v3257
    %v3262 = vmul.f32 %v3228, %v3251
    %v3263 = vmul.f32 %v3229, %v3261
    %v3264 = vperm.slane %v2367, 2
    %v3265 = vmul.f32 %v3262, %v3264
    %v3266 = vmul.f32 %v3263, %v3264
    %v3267 = vperm.slane %v2367, 3
    %v3268 = vadd.f32 %v3265, %v3267
    %v3269 = vadd.f32 %v3266, %v3267
    %v3270 = vpack.c.bf16 %v3269, %v3268
    %s3271 = scalar_lea.vmem [#allocation7], 64
    %v3272 = vld [vmem:[%s3271] sm:$0xf]
    %v3273 = vld [vmem:[%s3271 + $0x4] sm:$0xf]
    %v3274 = vld [vmem:[%s3271 + $0x8] sm:$0xf]
    %v3275 = vld [vmem:[%s3271 + $0xc] sm:$0xf]
    %v3276 = vld [vmem:[%s3271 + $0x10] sm:$0xf]
    %v3277 = vld [vmem:[%s3271 + $0x14] sm:$0xf]
    %v3278 = vld [vmem:[%s3271 + $0x18] sm:$0xf]
    %v3279 = vld [vmem:[%s3271 + $0x1c] sm:$0xf]
    %v3280 = vperm.slane %v2367, 4
    %v3289 = vunpack.c.l.b16 %v3272
    %v3290 = vunpack.c.l.b16 %v3273
    %v3291 = vunpack.c.l.b16 %v3274
    %v3292 = vunpack.c.l.b16 %v3275
    %v3293 = vunpack.c.l.b16 %v3276
    %v3294 = vunpack.c.l.b16 %v3277
    %v3295 = vunpack.c.l.b16 %v3278
    %v3296 = vunpack.c.l.b16 %v3279
    %v3297 = vpack.c.b16 %v3290, %v3289
    %v3298 = vpack.c.b16 %v3292, %v3291
    %v3299 = vpack.c.b16 %v3294, %v3293
    %v3300 = vpack.c.b16 %v3296, %v3295
    %v3306 = vsel %vm153, %v3270, 0
    %3308 = vmatpush.bf16.msra.mxu0 0
    %3309 = vmatpush.bf16.msra.mxu0 0
    %3310 = vmatpush.bf16.msra.mxu0 0
    %3311 = vmatpush.bf16.msra.mxu0 0
    %3312 = vmatpush.bf16.msra.mxu0 %v3300
    %3313 = vmatpush.bf16.msra.mxu0 %v3299
    %3314 = vmatpush.bf16.msra.mxu0 %v3298
    %3315 = vmatpush.bf16.msra.mxu0 %v3297
    %3316 = vmatmul.bf16.gmra.mxu0 %v3306
    %v3317 = vpop.f32.mrf.mxu0
    %v3318 = vadd.f32 %v3280, %v3317
    %v3319 = vpop.f32.mrf.mxu0
    %v3320 = vadd.f32 %v3280, %v3319
    %3321 = vdwg.mxu0
    %v3322 = vmax.f32 %v3318, 0.0
    %v3323 = vmax.f32 %v3320, 0.0
    %v3324 = vpack.c.bf16 %v3323, %v3322
    %s3325 = scalar_lea.vmem %s5, 128
    %v3326 = vld [vmem:[%s3325] sm:$0xf]
    %v3327 = vld [vmem:[%s3325 + $0x4] sm:$0xf]
    %v3328 = vld [vmem:[%s3325 + $0x8] sm:$0xf]
    %v3329 = vld [vmem:[%s3325 + $0xc] sm:$0xf]
    %v3330 = vld [vmem:[%s3325 + $0x10] sm:$0xf]
    %v3331 = vld [vmem:[%s3325 + $0x14] sm:$0xf]
    %v3332 = vld [vmem:[%s3325 + $0x18] sm:$0xf]
    %v3333 = vld [vmem:[%s3325 + $0x1c] sm:$0xf]
    %v3334 = vld [vmem:[%s3325 + $0x20] sm:$0xf]
    %v3335 = vld [vmem:[%s3325 + $0x24] sm:$0xf]
    %v3336 = vld [vmem:[%s3325 + $0x28] sm:$0xf]
    %v3337 = vld [vmem:[%s3325 + $0x2c] sm:$0xf]
    %v3338 = vld [vmem:[%s3325 + $0x30] sm:$0xf]
    %v3339 = vld [vmem:[%s3325 + $0x34] sm:$0xf]
    %v3340 = vld [vmem:[%s3325 + $0x38] sm:$0xf]
    %v3341 = vld [vmem:[%s3325 + $0x3c] sm:$0xf]
    %v3342 = vperm.slane %v2367, 5
    %v3359 = vunpack.c.l.b16 %v3326
    %v3360 = vunpack.c.l.b16 %v3327
    %v3361 = vunpack.c.l.b16 %v3328
    %v3362 = vunpack.c.l.b16 %v3329
    %v3363 = vunpack.c.l.b16 %v3330
    %v3364 = vunpack.c.l.b16 %v3331
    %v3365 = vunpack.c.l.b16 %v3332
    %v3366 = vunpack.c.l.b16 %v3333
    %v3367 = vunpack.c.l.b16 %v3334
    %v3368 = vunpack.c.l.b16 %v3335
    %v3369 = vunpack.c.l.b16 %v3336
    %v3370 = vunpack.c.l.b16 %v3337
    %v3371 = vunpack.c.l.b16 %v3338
    %v3372 = vunpack.c.l.b16 %v3339
    %v3373 = vunpack.c.l.b16 %v3340
    %v3374 = vunpack.c.l.b16 %v3341
    %v3375 = vpack.c.b16 %v3360, %v3359
    %v3376 = vpack.c.b16 %v3362, %v3361
    %v3377 = vpack.c.b16 %v3364, %v3363
    %v3378 = vpack.c.b16 %v3366, %v3365
    %v3379 = vpack.c.b16 %v3368, %v3367
    %v3380 = vpack.c.b16 %v3370, %v3369
    %v3381 = vpack.c.b16 %v3372, %v3371
    %v3382 = vpack.c.b16 %v3374, %v3373
    %3391 = vmatpush.bf16.msra.mxu0 %v3382
    %3392 = vmatpush.bf16.msra.mxu0 %v3381
    %3393 = vmatpush.bf16.msra.mxu0 %v3380
    %3394 = vmatpush.bf16.msra.mxu0 %v3379
    %3395 = vmatpush.bf16.msra.mxu0 %v3378
    %3396 = vmatpush.bf16.msra.mxu0 %v3377
    %3397 = vmatpush.bf16.msra.mxu0 %v3376
    %3398 = vmatpush.bf16.msra.mxu0 %v3375
    %3399 = vmatmul.bf16.gmra.mxu0 %v3324
    %v3400 = vpop.f32.mrf.mxu0
    %v3401 = vadd.f32 %v3342, %v3400
    %v3402 = vpop.f32.mrf.mxu0
    %v3403 = vadd.f32 %v3342, %v3402
    %3404 = vdwg.mxu0
    %v3405 = vadd.f32 %v3268, %v3401
    %v3406 = vadd.f32 %v3269, %v3403
    %v3407 = vsel %vm153, %v3405, 0.0
    %3408 = vadd.xlane.f32.xlu0 %v3407
    %v3409 = vpop.xlane.xlu0 %3408
    %v3410 = vsel %vm153, %v3406, 0.0
    %3411 = vadd.xlane.f32.xlu0 %v3410
    %v3412 = vpop.xlane.xlu0 %3411
    %v3413 = vmul.f32 %v3409, %v1045
    %v3414 = vmul.f32 %v3412, %v1045
    %v3415 = vsub.f32 %v3405, %v3413
    %v3416 = vsub.f32 %v3406, %v3414
    %v3417 = vmul.f32 %v3415, %v3415
    %v3418 = vmul.f32 %v3416, %v3416
    %v3419 = vsel %vm153, %v3417, 0.0
    %3420 = vadd.xlane.f32.xlu0 %v3419
    %v3421 = vpop.xlane.xlu0 %3420
    %v3422 = vsel %vm153, %v3418, 0.0
    %3423 = vadd.xlane.f32.xlu0 %v3422
    %v3424 = vpop.xlane.xlu0 %3423
    %v3425 = vmul.f32 %v3421, %v1045
    %v3426 = vmul.f32 %v3424, %v1045
    %v3427 = vadd.f32 %v3425, 1e-05
    %v3428 = vadd.f32 %v3426, 1e-05
    %v3429 = vrsqrt.pop %v3427
    %v3430 = vmul.f32 %v3429, %v3427
    %v3431 = vmul.f32 %v3430, %v3429
    %v3432 = vmul.f32 0.5, %v3431
    %v3433 = vsub.f32 1.5, %v3432
    %v3434 = vmul.f32 %v3429, %v3433
    %vm3435 = vweird.f32 %v3427
    %vm3436 = vweird.f32 %v3429
    %vm3437 = vmor %vm3435, %vm3436
    %v3438 = vsel %vm3437, %v3429, %v3434
    %v3439 = vrsqrt.pop %v3428
    %v3440 = vmul.f32 %v3439, %v3428
    %v3441 = vmul.f32 %v3440, %v3439
    %v3442 = vmul.f32 0.5, %v3441
    %v3443 = vsub.f32 1.5, %v3442
    %v3444 = vmul.f32 %v3439, %v3443
    %vm3445 = vweird.f32 %v3428
    %vm3446 = vweird.f32 %v3439
    %vm3447 = vmor %vm3445, %vm3446
    %v3448 = vsel %vm3447, %v3439, %v3444
    %v3449 = vmul.f32 %v3415, %v3438
    %v3450 = vmul.f32 %v3416, %v3448
    %v3451 = vperm.slane %v2367, 6
    %v3452 = vmul.f32 %v3449, %v3451
    %v3453 = vmul.f32 %v3450, %v3451
    %v3454 = vperm.slane %v2367, 7
    %v3455 = vadd.f32 %v3452, %v3454
    %v3456 = vadd.f32 %v3453, %v3454
    %v3457 = vsel %vm153, %v3455, 0.0
    %v3458 = vrot.slane %v3457, 4
    %v3459 = vadd.f32 %v3457, %v3458
    %v3460 = vrot.slane %v3459, 2
    %v3461 = vadd.f32 %v3459, %v3460
    %v3462 = vrot.slane %v3461, 1
    %v3463 = vadd.f32 %v3461, %v3462
    %v3464 = vsel %vm153, %v3456, 0.0
    %v3465 = vrot.slane %v3464, 4
    %v3466 = vadd.f32 %v3464, %v3465
    %v3467 = vrot.slane %v3466, 2
    %v3468 = vadd.f32 %v3466, %v3467
    %v3469 = vrot.slane %v3468, 1
    %v3470 = vadd.f32 %v3468, %v3469
    %v3471 = vrcp.pop 8.0
    %v3472 = vmul.f32 8.0, %v3471
    %v3473 = vsub.f32 1.0, %v3472
    %v3474 = vmul.f32 %v3471, %v3473
    %v3475 = vadd.f32 %v3471, %v3474
    %vm3476 = vweird.f32 %v3471
    %v3477 = vsel %vm3476, %v3471, %v3475
    %v3478 = vmul.f32 %v3463, %v3477
    %v3479 = vmul.f32 %v3470, %v3477
    %v3480 = vpack.c.bf16 %v3478, %v3478
    %v3481 = vpack.c.bf16 %v3479, %v3479
    %v3482 = vld [vmem:[#allocation8] sm:$0xf]
    %v3483 = vld [vmem:[#allocation8 + $0x4] sm:$0xf]
    %v3484 = vld [vmem:[#allocation8 + $0x8] sm:$0xf]
    %v3485 = vld [vmem:[#allocation8 + $0xc] sm:$0xf]
    %v3486 = vld [vmem:[#allocation8 + $0x10] sm:$0xf]
    %v3487 = vld [vmem:[#allocation8 + $0x14] sm:$0xf]
    %v3488 = vld [vmem:[#allocation8 + $0x18] sm:$0xf]
    %v3489 = vld [vmem:[#allocation8 + $0x1c] sm:$0xf]
    %v3490 = vperm.slane %v112, 1
    %v3493 = vunpack.c.l.b16 %v3480
    %v3494 = vunpack.c.l.b16 %v3481
    %v3495 = vsel %vm549, %v3494, %v3493
    %v3496 = vpack.c.b16 %v3495, %v3495
    %v3505 = vunpack.c.l.b16 %v3482
    %v3506 = vunpack.c.l.b16 %v3483
    %v3507 = vunpack.c.l.b16 %v3484
    %v3508 = vunpack.c.l.b16 %v3485
    %v3509 = vunpack.c.l.b16 %v3486
    %v3510 = vunpack.c.l.b16 %v3487
    %v3511 = vunpack.c.l.b16 %v3488
    %v3512 = vunpack.c.l.b16 %v3489
    %v3513 = vpack.c.b16 %v3506, %v3505
    %v3514 = vpack.c.b16 %v3508, %v3507
    %v3515 = vpack.c.b16 %v3510, %v3509
    %v3516 = vpack.c.b16 %v3512, %v3511
    %v3522 = vsel %vm153, %v3496, 0
    %3524 = vmatpush.bf16.msra.mxu0 0
    %3525 = vmatpush.bf16.msra.mxu0 0
    %3526 = vmatpush.bf16.msra.mxu0 0
    %3527 = vmatpush.bf16.msra.mxu0 0
    %3528 = vmatpush.bf16.msra.mxu0 %v3516
    %3529 = vmatpush.bf16.msra.mxu0 %v3515
    %3530 = vmatpush.bf16.msra.mxu0 %v3514
    %3531 = vmatpush.bf16.msra.mxu0 %v3513
    %3532 = vmatmul.bf16.gmra.mxu0 %v3522
    %v3533 = vpop.f32.mrf.mxu0
    %v3534 = vadd.f32 %v3490, %v3533
    %v3535 = vpop.f32.mrf.mxu0
    %3536 = vdwg.mxu0
    %3537 = vst [vmem:[#allocation11] sm:$0x3] %v3534
    // Predicated region
    $region58: #{tpu_custom_call.1} parent=1 // pred_check
      _
    $region59: #{tpu_custom_call.1} parent=1 // pred_check_branch
      %3539 = sbr.rel (0) target = $region61
    $region60: #{tpu_custom_call.1} parent=1 // pred_region
      %3541 = vsyncadd [#allocation4], 0
      %s3543 = sshll.u32 [#allocation11], 4
      %s3544 = int_to_ptr.vmem [resolvable:$true] %s3543
      %s3545 = sshll.u32 %s9, 4
      %s3546 = int_to_ptr.hbm [resolvable:$true] %s3545
      %3548 = dma.vmem_to_hbm [thread:$0]  %s3544, 32, %s3546, [#allocation4]
    $region61: #{tpu_custom_call.1} parent=1 // pred_fallthru
      _
    // Predicated region
    $region62: #{tpu_custom_call.1} parent=1 // pred_check
      _
    $region63: #{tpu_custom_call.1} parent=1 // pred_check_branch
      %3550 = sbr.rel (0) target = $region65
    $region64: #{tpu_custom_call.1} parent=1 // pred_region
      %3552 = dma.done [#allocation4], 32
    $region65: #{tpu_custom_call.1} parent=1 // pred_fallthru
      _
    %3553 = vsyncpa [#allocation3], 1
    %3554 = vsyncpa [#allocation6], 1
    %3555 = vsyncpa [#allocation9], 1
    %3556 = vsyncpa [#allocation4], 1

</llo_original>
